<compile_context>
chip_gen: v5e
topology: v5e:2x2
jax: 0.10.0
libtpu: 0.0.40
codegen_flags: <defaults>
</compile_context>

<pallas_src>
import functools

import numpy as np
import jax
import jax.numpy as jnp
from jax.experimental import pallas as pl
from jax.experimental.pallas import tpu as pltpu


# ----------------------------- Pallas kernels -----------------------------

def _tower_kernel(x_ref, w_ref, s_ref, b_ref, m_ref, hw_ref, hs_ref, hb_ref,
                  hf_ref, act_ref, res_ref, *, rows, guard, pw, resident):
    """One grid step == one conv layer; the last step also runs the head convs.

    Activation layout: per-image zero-padded spatial (nb, H+2, W+2, C) flattened
    to `rows` rows, stored bf16 in `act_ref` with `guard` extra (zero) rows at
    each end so all 9 tap slices are in-bounds static slices.
    """
    l = pl.program_id(1)
    n_layers = pl.num_programs(1)
    c = act_ref.shape[1]

    # ---- seed the resident activation with the (already zero-padded) input ----
    @pl.when(l == 0)
    def _init():
        act_ref[...] = jnp.zeros_like(act_ref)          # zero guards + padding rows
        act_ref[pl.ds(guard, rows), :] = x_ref[...]     # input already bf16 + padded
        # res_ref needs no init: it is written at the end of layer 0, and the
        # select below never *uses* it before layer 2.

    # Weight indexing: per-layer streamed block (w_base == 0) or fully resident
    # stack indexed dynamically at l*9 + kk.
    w_base = l * 9 if resident else 0

    # ---- 3x3 conv as 9 shifted (rows,C)x(C,C) bf16 MXU matmuls, f32 acc ----
    acc = jnp.zeros((rows, c), jnp.float32)
    for kk in range(9):
        dh, dw = kk // 3 - 1, kk % 3 - 1
        off = guard + dh * pw + dw                      # static sublane offset
        acc = acc + jnp.dot(act_ref[pl.ds(off, rows), :], w_ref[w_base + kk],
                            preferred_element_type=jnp.float32)

    # ---- folded eval-mode BN + (residual on 2nd conv of each block) + ReLU ----
    y = acc * s_ref[0] + b_ref[0]
    add_res = jnp.logical_and(l > 0, l % 2 == 0)
    # A single value-level select is cheaper than gating the add with pl.when
    # through an extra (rows,C) VMEM round trip.
    y = y + jnp.where(add_res, res_ref[...], 0.0)
    new_act = jnp.maximum(y, 0.0) * m_ref[...]          # re-zero per-image padding rows
    act_ref[pl.ds(guard, rows), :] = new_act.astype(act_ref.dtype)

    # ---- snapshot the block input (f32) at the end of even layers ----
    @pl.when(jnp.logical_and(l % 2 == 0, l < n_layers - 1))
    def _snap():
        res_ref[...] = new_act

    # ---- fused policy/value head convs (Cout = 2 + 1) on the final activation ----
    @pl.when(l == n_layers - 1)
    def _heads():
        hacc = jnp.zeros((rows, hw_ref.shape[-1]), jnp.float32)
        for kk in range(9):
            dh, dw = kk // 3 - 1, kk % 3 - 1
            off = guard + dh * pw + dw
            hacc = hacc + jnp.dot(act_ref[pl.ds(off, rows), :], hw_ref[kk],
                                  preferred_element_type=jnp.float32)
        hf_ref[...] = jnp.maximum(hacc * hs_ref[...] + hb_ref[...], 0.0)


def _heads_fc_kernel(p_ref, wp_ref, bp_ref, v_ref, w1_ref, b1_ref, w2_ref, b2_ref,
                     plog_ref, vout_ref):
    # policy: FC + log_softmax(dim=1)
    logits = jnp.dot(p_ref[...], wp_ref[...],
                     preferred_element_type=jnp.float32) + bp_ref[...]
    m = jnp.max(logits, axis=-1, keepdims=True)
    z = logits - m
    lse = jnp.log(jnp.sum(jnp.exp(z), axis=-1, keepdims=True))
    plog_ref[...] = z - lse
    # value: FC -> ReLU -> FC -> tanh
    h = jnp.maximum(jnp.dot(v_ref[...], w1_ref[...],
                            preferred_element_type=jnp.float32) + b1_ref[...], 0.0)
    v = jnp.dot(h, w2_ref[...], preferred_element_type=jnp.float32) + b2_ref[...]
    vout_ref[...] = jnp.tanh(v)


# ----------------------------- wrappers -----------------------------

def _build_interior_mask(nb_tile, h, w, c):
    """(nb*(H+2)*(W+2), C) f32 mask: 1 on real pixels, 0 on the padding rows."""
    ph, pw = h + 2, w + 2
    m = np.zeros((nb_tile, ph, pw), np.float32)
    m[:, 1:h + 1, 1:w + 1] = 1.0
    m = m.reshape(nb_tile * ph * pw, 1)
    return jnp.asarray(np.ascontiguousarray(np.broadcast_to(m, (nb_tile * ph * pw, c))))


def _tower_call(prep, x2d, n, h, w):
    c = prep["tower_s"].shape[-1]
    ph, pw = h + 2, w + 2
    phw = ph * pw
    assert prep["mask"].shape[0] % phw == 0
    nb = prep["mask"].shape[0] // phw          # samples per batch tile
    assert n % nb == 0
    n_tiles = n // nb
    rows = nb * phw                            # GEMM M dimension (padded layout)
    assert rows % 8 == 0, "rows per tile must be a multiple of 8"
    guard = ((pw + 1 + 15) // 16) * 16         # bf16-aligned halo so stores stay packed
    n_convs = prep["tower_s"].shape[0]

    # Weight residency: only pays when the same weights would be re-streamed for
    # every batch tile AND the whole stack comfortably fits in VMEM (v5e/v6e).
    weight_bytes = int(np.prod(prep["tower_w"].shape)) * 2   # bf16
    resident = (n_tiles > 1) and (weight_bytes <= 16 * 1024 * 1024)
    if resident:
        w_spec = pl.BlockSpec((n_convs * 9, c, c), lambda i, l: (0, 0, 0))
    else:
        w_spec = pl.BlockSpec((9, c, c), lambda i, l: (l, 0, 0))   # streamed per layer

    kernel = functools.partial(_tower_kernel, rows=rows, guard=guard, pw=pw,
                               resident=resident)
    return pl.pallas_call(
        kernel,
        out_shape=jax.ShapeDtypeStruct((n * phw, 3), jnp.float32),
        grid_spec=pltpu.PrefetchScalarGridSpec(
            num_scalar_prefetch=0,
            grid=(n_tiles, n_convs),
            in_specs=[
                pl.BlockSpec((rows, c), lambda i, l: (i, 0)),          # padded input slab (bf16)
                w_spec,                                                # tower weights (bf16)
                pl.BlockSpec((1, 1, c), lambda i, l: (l, 0, 0)),       # layer BN scale
                pl.BlockSpec((1, 1, c), lambda i, l: (l, 0, 0)),       # layer BN bias
                pl.BlockSpec((rows, c), lambda i, l: (0, 0)),          # interior mask (resident)
                pl.BlockSpec((9, c, 3), lambda i, l: (0, 0, 0)),       # head conv weights (bf16)
                pl.BlockSpec((1, 3), lambda i, l: (0, 0)),             # head BN scale
                pl.BlockSpec((1, 3), lambda i, l: (0, 0)),             # head BN bias
            ],
            out_specs=pl.BlockSpec((rows, 3), lambda i, l: (i, 0)),
            scratch_shapes=[
                pltpu.VMEM((rows + 2 * guard, c), jnp.bfloat16),   # resident activation (bf16)
                pltpu.VMEM((rows, c), jnp.float32),                # f32 residual snapshot
            ],
        ),
        compiler_params=pltpu.CompilerParams(
            dimension_semantics=("parallel", "arbitrary"),
            vmem_limit_bytes=32 * 1024 * 1024),
    )(x2d, prep["tower_w"], prep["tower_s"], prep["tower_b"], prep["mask"],
      prep["head_conv_w"], prep["head_s"], prep["head_b"])


def _heads_call(prep, p_flat, v_flat):
    n, twohw = p_flat.shape
    hw = v_flat.shape[1]
    a = prep["p_fc_w"].shape[1]
    c = prep["v_fc1_w"].shape[1]
    return pl.pallas_call(
        _heads_fc_kernel,
        out_shape=(jax.ShapeDtypeStruct((n, a), jnp.float32),
                   jax.ShapeDtypeStruct((n, 1), jnp.float32)),
        grid=(1,),
        in_specs=[pl.BlockSpec((n, twohw), lambda i: (0, 0)),
                  pl.BlockSpec((twohw, a), lambda i: (0, 0)),
                  pl.BlockSpec((1, a), lambda i: (0, 0)),
                  pl.BlockSpec((n, hw), lambda i: (0, 0)),
                  pl.BlockSpec((hw, c), lambda i: (0, 0)),
                  pl.BlockSpec((1, c), lambda i: (0, 0)),
                  pl.BlockSpec((c, 1), lambda i: (0, 0)),
                  pl.BlockSpec((1, 1), lambda i: (0, 0))],
        out_specs=(pl.BlockSpec((n, a), lambda i: (0, 0)),
                   pl.BlockSpec((n, 1), lambda i: (0, 0))),
    )(p_flat, prep["p_fc_w"], prep["p_fc_b"], v_flat,
      prep["v_fc1_w"], prep["v_fc1_b"], prep["v_fc2_w"], prep["v_fc2_b"])


# ----------------------------- parameters -----------------------------

def init_params(key, num_features, num_channels, num_layers, board_size, action_size):
    eps = 1e-5  # PyTorch BatchNorm2d default

    def conv_w(k, cin, cout):
        return jax.random.normal(k, (3, 3, cin, cout), jnp.float32) / np.sqrt(9 * cin)

    def bn_fold(k, c):
        k1, k2, k3, k4 = jax.random.split(k, 4)
        gamma = 1.0 + 0.1 * jax.random.normal(k1, (c,), jnp.float32)
        beta = 0.1 * jax.random.normal(k2, (c,), jnp.float32)
        mean = 0.1 * jax.random.normal(k3, (c,), jnp.float32)
        var = 0.9 + 0.2 * jax.random.uniform(k4, (c,), jnp.float32)
        scale = gamma / jnp.sqrt(var + eps)
        bias = beta - mean * scale
        return scale.reshape(1, c), bias.reshape(1, c)

    def linear(k, fin, fout):
        kw, kb = jax.random.split(k)
        w = jax.random.normal(kw, (fin, fout), jnp.float32) / np.sqrt(fin)
        b = 0.1 * jax.random.normal(kb, (1, fout), jnp.float32)
        return w, b

    keys = jax.random.split(key, 16 + 4 * num_layers)
    ki = iter(range(len(keys)))
    p = {}
    p["conv_w"] = conv_w(keys[next(ki)], num_features, num_channels)
    p["bn_scale"], p["bn_bias"] = bn_fold(keys[next(ki)], num_channels)
    blocks = []
    for _ in range(num_layers):
        w1 = conv_w(keys[next(ki)], num_channels, num_channels)
        s1, b1 = bn_fold(keys[next(ki)], num_channels)
        w2 = conv_w(keys[next(ki)], num_channels, num_channels)
        s2, b2 = bn_fold(keys[next(ki)], num_channels)
        blocks.append(dict(w1=w1, s1=s1, b1=b1, w2=w2, s2=s2, b2=b2))
    p["res_blocks"] = blocks
    p["p_conv_w"] = conv_w(keys[next(ki)], num_channels, 2)
    p["p_bn_scale"], p["p_bn_bias"] = bn_fold(keys[next(ki)], 2)
    p["p_fc_w"], p["p_fc_b"] = linear(keys[next(ki)], 2 * board_size ** 2, action_size)
    p["v_conv_w"] = conv_w(keys[next(ki)], num_channels, 1)
    p["v_bn_scale"], p["v_bn_bias"] = bn_fold(keys[next(ki)], 1)
    p["v_fc1_w"], p["v_fc1_b"] = linear(keys[next(ki)], board_size ** 2, num_channels)
    p["v_fc2_w"], p["v_fc2_b"] = linear(keys[next(ki)], num_channels, 1)
    return p


def prepare_params(params, num_channels, board_size, nb_tile):
    """One-time repack of PyTorch-semantic params into kernel-ready buffers."""
    c = num_channels
    hw = board_size * board_size

    def conv9(w_hwio):
        cin = w_hwio.shape[2]
        wp = jnp.pad(w_hwio, ((0, 0), (0, 0), (0, c - cin), (0, 0)))  # pad Cin -> C
        return wp.reshape(9, c, w_hwio.shape[3])                      # (kk, Cin, Cout)

    ws = [conv9(params["conv_w"])]
    ss = [params["bn_scale"]]
    bs = [params["bn_bias"]]
    for blk in params["res_blocks"]:
        ws += [conv9(blk["w1"]), conv9(blk["w2"])]
        ss += [blk["s1"], blk["s2"]]
        bs += [blk["b1"], blk["b2"]]

    a = params["p_fc_w"].shape[1]
    # Fold the PyTorch NCHW .view(N,-1) flatten into the FC weight:
    # torch row index c*HW + hw  ->  kernel row index hw*2 + c.
    p_fc_w = params["p_fc_w"].reshape(2, hw, a).transpose(1, 0, 2).reshape(2 * hw, a)

    return dict(
        tower_w=jnp.stack(ws).reshape(-1, c, c).astype(jnp.bfloat16),  # (n_convs*9, C, C) bf16
        tower_s=jnp.stack(ss),                                         # (n_convs, 1, C) f32
        tower_b=jnp.stack(bs),
        head_conv_w=jnp.concatenate(
            [conv9(params["p_conv_w"]), conv9(params["v_conv_w"])],
            axis=-1).astype(jnp.bfloat16),                             # (9, C, 3) bf16
        head_s=jnp.concatenate([params["p_bn_scale"], params["v_bn_scale"]], axis=-1),
        head_b=jnp.concatenate([params["p_bn_bias"], params["v_bn_bias"]], axis=-1),
        mask=_build_interior_mask(nb_tile, board_size, board_size, c),
        p_fc_w=p_fc_w, p_fc_b=params["p_fc_b"],
        v_fc1_w=params["v_fc1_w"], v_fc1_b=params["v_fc1_b"],
        v_fc2_w=params["v_fc2_w"], v_fc2_b=params["v_fc2_b"],
    )


# ----------------------------- forward (Pallas) -----------------------------

def alphago_forward(prep, state_nchw):
    """state_nchw: (N, num_features, B, B) float32, same convention as PyTorch."""
    n, f, h, w = state_nchw.shape
    c = prep["tower_s"].shape[-1]
    ph, pw = h + 2, w + 2
    x = jnp.transpose(state_nchw, (0, 2, 3, 1))                       # NCHW -> NHWC
    # Spatial zero-pad once (per-image padded layout used inside the kernel);
    # channel-pad Cin -> C and cast to bf16 so the DMA is half-size.
    # TODO(synk): for very large C, stream only the true F channels and zero-fill
    # the remaining channels inside the l==0 init instead of padding here.
    x = jnp.pad(x, ((0, 0), (1, 1), (1, 1), (0, c - f)))
    x2d = x.reshape(n * ph * pw, c).astype(jnp.bfloat16)

    hf = _tower_call(prep, x2d, n, h, w)                              # (N*PH*PW, 3)
    hf4 = hf.reshape(n, ph, pw, 3)[:, 1:h + 1, 1:w + 1, :]            # drop padding rows
    hw_sz = h * w
    p_flat = hf4[..., 0:2].reshape(n, 2 * hw_sz)   # (hw, c)-ordered flatten; p_fc_w permuted to match
    v_flat = hf4[..., 2:3].reshape(n, hw_sz)       # single channel: flatten order identical
    return _heads_call(prep, p_flat, v_flat)


# ----------------------------- pure-JAX reference -----------------------------

def _ref_forward(params, state_nchw):
    x = jnp.transpose(state_nchw, (0, 2, 3, 1))
    n, h, w, _ = x.shape

    def conv(y, wk):
        return jax.lax.conv_general_dilated(
            y, wk, (1, 1), "SAME",
            dimension_numbers=("NHWC", "HWIO", "NHWC"),
            precision=jax.lax.Precision.HIGHEST)

    def cbr(y, wk, s, b):
        return jnp.maximum(conv(y, wk) * s.reshape(1, 1, 1, -1) + b.reshape(1, 1, 1, -1), 0.0)

    out = cbr(x, params["conv_w"], params["bn_scale"], params["bn_bias"])
    for blk in params["res_blocks"]:
        hmid = cbr(out, blk["w1"], blk["s1"], blk["b1"])
        pre = conv(hmid, blk["w2"]) * blk["s2"].reshape(1, 1, 1, -1) + blk["b2"].reshape(1, 1, 1, -1)
        out = jnp.maximum(pre + out, 0.0)

    p_feat = cbr(out, params["p_conv_w"], params["p_bn_scale"], params["p_bn_bias"])
    p_flat = jnp.transpose(p_feat, (0, 3, 1, 2)).reshape(n, 2 * h * w)
    logits = p_flat @ params["p_fc_w"] + params["p_fc_b"]
    p_log = jax.nn.log_softmax(logits, axis=1)

    v_feat = cbr(out, params["v_conv_w"], params["v_bn_scale"], params["v_bn_bias"])
    v_flat = v_feat.reshape(n, h * w)
    vh = jnp.maximum(v_flat @ params["v_fc1_w"] + params["v_fc1_b"], 0.0)
    v = jnp.tanh(vh @ params["v_fc2_w"] + params["v_fc2_b"])
    return p_log, v


# ----------------------------- main -----------------------------

if __name__ == "__main__":
    # small config: batch=2, num_features=4, board_size=8, num_channels=32,
    # num_layers=2, action_size=board_size**2 + 1
    N, F, B = 2, 4, 8
    C, L = 32, 2
    A = B * B + 1

    key = jax.random.PRNGKey(0)
    k_param, k_in = jax.random.split(key)
    params = init_params(k_param, F, C, L, B, A)
    state = jax.random.normal(k_in, (N, F, B, B), jnp.float32)   # NCHW like PyTorch

    # nb_tile = samples per grid tile.  v7x: prefer nb_tile such that n_tiles is
    # an even number >= 2 so both TensorCores get work; v5e/v6e: prefer a single
    # large tile (rows >= ~512).  The (8,128) row constraint forces nb_tile = N
    # at this tiny demo size.
    prep = prepare_params(params, num_channels=C, board_size=B, nb_tile=N)

    fwd = jax.jit(alphago_forward)
    p_log, v = fwd(prep, state)
    p_log = jax.block_until_ready(p_log)
    v = jax.block_until_ready(v)
    assert p_log.shape == (N, A) and v.shape == (N, 1)

    p_ref, v_ref = _ref_forward(params, state)
    # Tolerance sized for the bf16 resident activation / bf16 MXU inputs in the
    # conv tower (f32 accumulation, f32 residual path and heads); the reference
    # runs fully in f32 / HIGHEST precision.
    np.testing.assert_allclose(np.asarray(p_log), np.asarray(p_ref), atol=5e-2, rtol=5e-2)
    np.testing.assert_allclose(np.asarray(v), np.asarray(v_ref), atol=5e-2, rtol=5e-2)

    print("KERNEL_OK")
</pallas_src>

<mosaic_0001>
module attributes {stable_mosaic.version = 11 : i64} {
  func.func @_tower_kernel(%arg0: i32, %arg1: i32, %arg2: memref<200x32xbf16, #tpu.memory_space<vmem>>, %arg3: memref<9x32x32xbf16, #tpu.memory_space<vmem>>, %arg4: memref<1x1x32xf32, #tpu.memory_space<vmem>>, %arg5: memref<1x1x32xf32, #tpu.memory_space<vmem>>, %arg6: memref<200x32xf32, #tpu.memory_space<vmem>>, %arg7: memref<9x32x3xbf16, #tpu.memory_space<vmem>>, %arg8: memref<1x3xf32, #tpu.memory_space<vmem>>, %arg9: memref<1x3xf32, #tpu.memory_space<vmem>>, %arg10: memref<200x3xf32, #tpu.memory_space<vmem>>, %arg11: memref<232x32xbf16, #tpu.memory_space<vmem>>, %arg12: memref<200x32xf32, #tpu.memory_space<vmem>>) attributes {dimension_semantics = [#tpu.dimension_semantics<parallel>, #tpu.dimension_semantics<arbitrary>], iteration_bounds = array<i64: 1, 5>, scalar_prefetch = 0 : i64, scratch_operands = 2 : i64, tpu.core_type = #tpu.core_type<tc>, window_params = [{transform_indices = @transform_0, window_bounds = array<i64: 200, 32>}, {transform_indices = @transform_1, window_bounds = array<i64: 9, 32, 32>}, {transform_indices = @transform_2, window_bounds = array<i64: 1, 1, 32>}, {transform_indices = @transform_3, window_bounds = array<i64: 1, 1, 32>}, {pipeline_mode = #tpu.pipeline_mode<synchronous>, transform_indices = @transform_4, window_bounds = array<i64: 200, 32>}, {pipeline_mode = #tpu.pipeline_mode<synchronous>, transform_indices = @transform_5, window_bounds = array<i64: 9, 32, 3>}, {pipeline_mode = #tpu.pipeline_mode<synchronous>, transform_indices = @transform_6, window_bounds = array<i64: 1, 3>}, {pipeline_mode = #tpu.pipeline_mode<synchronous>, transform_indices = @transform_7, window_bounds = array<i64: 1, 3>}, {transform_indices = @transform_8, window_bounds = array<i64: 200, 3>}]} {
    %c0_i32 = arith.constant 0 : i32
    %0 = arith.cmpi eq, %arg1, %c0_i32 : i32
    %1 = arith.extui %0 : i1 to i32
    %c0_i32_0 = arith.constant 0 : i32
    %2 = arith.cmpi ne, %1, %c0_i32_0 : i32
    scf.if %2 {
      %cst_70 = arith.constant 0.000000e+00 : bf16
      %98 = vector.broadcast %cst_70 : bf16 to vector<232x32xbf16>
      %c0_71 = arith.constant 0 : index
      %c0_72 = arith.constant 0 : index
      %99 = vector.load %arg11[%c0_71, %c0_72] : memref<232x32xbf16, #tpu.memory_space<vmem>>, vector<232x32xbf16>
      tpu.vector_store %arg11[%c0_71, %c0_72], %98 {strides = array<i32>} : memref<232x32xbf16, #tpu.memory_space<vmem>>, vector<232x32xbf16>,
      %c0_73 = arith.constant 0 : index
      %c0_74 = arith.constant 0 : index
      %100 = vector.load %arg2[%c0_73, %c0_74] : memref<200x32xbf16, #tpu.memory_space<vmem>>, vector<200x32xbf16>
      %c16_75 = arith.constant 16 : index
      %c0_76 = arith.constant 0 : index
      %101 = vector.load %arg11[%c16_75, %c0_76] : memref<232x32xbf16, #tpu.memory_space<vmem>>, vector<200x32xbf16>
      tpu.vector_store %arg11[%c16_75, %c0_76], %100 {strides = array<i32>} : memref<232x32xbf16, #tpu.memory_space<vmem>>, vector<200x32xbf16>,
    } else {
    }
    %cst = arith.constant 0.000000e+00 : f32
    %3 = vector.broadcast %cst : f32 to vector<200x32xf32>
    %c5 = arith.constant 5 : index
    %c0 = arith.constant 0 : index
    %4 = vector.load %arg11[%c5, %c0] : memref<232x32xbf16, #tpu.memory_space<vmem>>, vector<200x32xbf16>
    %c0_1 = arith.constant 0 : index
    %c0_2 = arith.constant 0 : index
    %c0_3 = arith.constant 0 : index
    %5 = vector.load %arg3[%c0_1, %c0_2, %c0_3] : memref<9x32x32xbf16, #tpu.memory_space<vmem>>, vector<1x32x32xbf16>
    %6 = vector.shape_cast %5 : vector<1x32x32xbf16> to vector<32x32xbf16>
    %cst_4 = arith.constant dense<0.000000e+00> : vector<200x32xf32>
    %7 = tpu.matmul %4, %6, %cst_4 {dimension_numbers = #tpu.dot_dimension_numbers<[1], [0], [0], [1], [0, 0, 1, 1], [], []>} : vector<200x32xbf16>, vector<32x32xbf16>, vector<200x32xf32> -> vector<200x32xf32>
    %8 = arith.addf %3, %7 : vector<200x32xf32>
    %c6 = arith.constant 6 : index
    %c0_5 = arith.constant 0 : index
    %9 = vector.load %arg11[%c6, %c0_5] : memref<232x32xbf16, #tpu.memory_space<vmem>>, vector<200x32xbf16>
    %c1 = arith.constant 1 : index
    %c0_6 = arith.constant 0 : index
    %c0_7 = arith.constant 0 : index
    %10 = vector.load %arg3[%c1, %c0_6, %c0_7] : memref<9x32x32xbf16, #tpu.memory_space<vmem>>, vector<1x32x32xbf16>
    %11 = vector.shape_cast %10 : vector<1x32x32xbf16> to vector<32x32xbf16>
    %cst_8 = arith.constant dense<0.000000e+00> : vector<200x32xf32>
    %12 = tpu.matmul %9, %11, %cst_8 {dimension_numbers = #tpu.dot_dimension_numbers<[1], [0], [0], [1], [0, 0, 1, 1], [], []>} : vector<200x32xbf16>, vector<32x32xbf16>, vector<200x32xf32> -> vector<200x32xf32>
    %13 = arith.addf %8, %12 : vector<200x32xf32>
    %c7 = arith.constant 7 : index
    %c0_9 = arith.constant 0 : index
    %14 = vector.load %arg11[%c7, %c0_9] : memref<232x32xbf16, #tpu.memory_space<vmem>>, vector<200x32xbf16>
    %c2 = arith.constant 2 : index
    %c0_10 = arith.constant 0 : index
    %c0_11 = arith.constant 0 : index
    %15 = vector.load %arg3[%c2, %c0_10, %c0_11] : memref<9x32x32xbf16, #tpu.memory_space<vmem>>, vector<1x32x32xbf16>
    %16 = vector.shape_cast %15 : vector<1x32x32xbf16> to vector<32x32xbf16>
    %cst_12 = arith.constant dense<0.000000e+00> : vector<200x32xf32>
    %17 = tpu.matmul %14, %16, %cst_12 {dimension_numbers = #tpu.dot_dimension_numbers<[1], [0], [0], [1], [0, 0, 1, 1], [], []>} : vector<200x32xbf16>, vector<32x32xbf16>, vector<200x32xf32> -> vector<200x32xf32>
    %18 = arith.addf %13, %17 : vector<200x32xf32>
    %c15 = arith.constant 15 : index
    %c0_13 = arith.constant 0 : index
    %19 = vector.load %arg11[%c15, %c0_13] : memref<232x32xbf16, #tpu.memory_space<vmem>>, vector<200x32xbf16>
    %c3 = arith.constant 3 : index
    %c0_14 = arith.constant 0 : index
    %c0_15 = arith.constant 0 : index
    %20 = vector.load %arg3[%c3, %c0_14, %c0_15] : memref<9x32x32xbf16, #tpu.memory_space<vmem>>, vector<1x32x32xbf16>
    %21 = vector.shape_cast %20 : vector<1x32x32xbf16> to vector<32x32xbf16>
    %cst_16 = arith.constant dense<0.000000e+00> : vector<200x32xf32>
    %22 = tpu.matmul %19, %21, %cst_16 {dimension_numbers = #tpu.dot_dimension_numbers<[1], [0], [0], [1], [0, 0, 1, 1], [], []>} : vector<200x32xbf16>, vector<32x32xbf16>, vector<200x32xf32> -> vector<200x32xf32>
    %23 = arith.addf %18, %22 : vector<200x32xf32>
    %c16 = arith.constant 16 : index
    %c0_17 = arith.constant 0 : index
    %24 = vector.load %arg11[%c16, %c0_17] : memref<232x32xbf16, #tpu.memory_space<vmem>>, vector<200x32xbf16>
    %c4 = arith.constant 4 : index
    %c0_18 = arith.constant 0 : index
    %c0_19 = arith.constant 0 : index
    %25 = vector.load %arg3[%c4, %c0_18, %c0_19] : memref<9x32x32xbf16, #tpu.memory_space<vmem>>, vector<1x32x32xbf16>
    %26 = vector.shape_cast %25 : vector<1x32x32xbf16> to vector<32x32xbf16>
    %cst_20 = arith.constant dense<0.000000e+00> : vector<200x32xf32>
    %27 = tpu.matmul %24, %26, %cst_20 {dimension_numbers = #tpu.dot_dimension_numbers<[1], [0], [0], [1], [0, 0, 1, 1], [], []>} : vector<200x32xbf16>, vector<32x32xbf16>, vector<200x32xf32> -> vector<200x32xf32>
    %28 = arith.addf %23, %27 : vector<200x32xf32>
    %c17 = arith.constant 17 : index
    %c0_21 = arith.constant 0 : index
    %29 = vector.load %arg11[%c17, %c0_21] : memref<232x32xbf16, #tpu.memory_space<vmem>>, vector<200x32xbf16>
    %c5_22 = arith.constant 5 : index
    %c0_23 = arith.constant 0 : index
    %c0_24 = arith.constant 0 : index
    %30 = vector.load %arg3[%c5_22, %c0_23, %c0_24] : memref<9x32x32xbf16, #tpu.memory_space<vmem>>, vector<1x32x32xbf16>
    %31 = vector.shape_cast %30 : vector<1x32x32xbf16> to vector<32x32xbf16>
    %cst_25 = arith.constant dense<0.000000e+00> : vector<200x32xf32>
    %32 = tpu.matmul %29, %31, %cst_25 {dimension_numbers = #tpu.dot_dimension_numbers<[1], [0], [0], [1], [0, 0, 1, 1], [], []>} : vector<200x32xbf16>, vector<32x32xbf16>, vector<200x32xf32> -> vector<200x32xf32>
    %33 = arith.addf %28, %32 : vector<200x32xf32>
    %c25 = arith.constant 25 : index
    %c0_26 = arith.constant 0 : index
    %34 = vector.load %arg11[%c25, %c0_26] : memref<232x32xbf16, #tpu.memory_space<vmem>>, vector<200x32xbf16>
    %c6_27 = arith.constant 6 : index
    %c0_28 = arith.constant 0 : index
    %c0_29 = arith.constant 0 : index
    %35 = vector.load %arg3[%c6_27, %c0_28, %c0_29] : memref<9x32x32xbf16, #tpu.memory_space<vmem>>, vector<1x32x32xbf16>
    %36 = vector.shape_cast %35 : vector<1x32x32xbf16> to vector<32x32xbf16>
    %cst_30 = arith.constant dense<0.000000e+00> : vector<200x32xf32>
    %37 = tpu.matmul %34, %36, %cst_30 {dimension_numbers = #tpu.dot_dimension_numbers<[1], [0], [0], [1], [0, 0, 1, 1], [], []>} : vector<200x32xbf16>, vector<32x32xbf16>, vector<200x32xf32> -> vector<200x32xf32>
    %38 = arith.addf %33, %37 : vector<200x32xf32>
    %c26 = arith.constant 26 : index
    %c0_31 = arith.constant 0 : index
    %39 = vector.load %arg11[%c26, %c0_31] : memref<232x32xbf16, #tpu.memory_space<vmem>>, vector<200x32xbf16>
    %c7_32 = arith.constant 7 : index
    %c0_33 = arith.constant 0 : index
    %c0_34 = arith.constant 0 : index
    %40 = vector.load %arg3[%c7_32, %c0_33, %c0_34] : memref<9x32x32xbf16, #tpu.memory_space<vmem>>, vector<1x32x32xbf16>
    %41 = vector.shape_cast %40 : vector<1x32x32xbf16> to vector<32x32xbf16>
    %cst_35 = arith.constant dense<0.000000e+00> : vector<200x32xf32>
    %42 = tpu.matmul %39, %41, %cst_35 {dimension_numbers = #tpu.dot_dimension_numbers<[1], [0], [0], [1], [0, 0, 1, 1], [], []>} : vector<200x32xbf16>, vector<32x32xbf16>, vector<200x32xf32> -> vector<200x32xf32>
    %43 = arith.addf %38, %42 : vector<200x32xf32>
    %c27 = arith.constant 27 : index
    %c0_36 = arith.constant 0 : index
    %44 = vector.load %arg11[%c27, %c0_36] : memref<232x32xbf16, #tpu.memory_space<vmem>>, vector<200x32xbf16>
    %c8 = arith.constant 8 : index
    %c0_37 = arith.constant 0 : index
    %c0_38 = arith.constant 0 : index
    %45 = vector.load %arg3[%c8, %c0_37, %c0_38] : memref<9x32x32xbf16, #tpu.memory_space<vmem>>, vector<1x32x32xbf16>
    %46 = vector.shape_cast %45 : vector<1x32x32xbf16> to vector<32x32xbf16>
    %cst_39 = arith.constant dense<0.000000e+00> : vector<200x32xf32>
    %47 = tpu.matmul %44, %46, %cst_39 {dimension_numbers = #tpu.dot_dimension_numbers<[1], [0], [0], [1], [0, 0, 1, 1], [], []>} : vector<200x32xbf16>, vector<32x32xbf16>, vector<200x32xf32> -> vector<200x32xf32>
    %48 = arith.addf %43, %47 : vector<200x32xf32>
    %c0_40 = arith.constant 0 : index
    %c0_41 = arith.constant 0 : index
    %c0_42 = arith.constant 0 : index
    %49 = vector.load %arg4[%c0_40, %c0_41, %c0_42] : memref<1x1x32xf32, #tpu.memory_space<vmem>>, vector<1x1x32xf32>
    %50 = vector.shape_cast %49 : vector<1x1x32xf32> to vector<1x32xf32>
    %51 = vector.broadcast %50 : vector<1x32xf32> to vector<200x32xf32>
    %52 = arith.mulf %48, %51 : vector<200x32xf32>
    %c0_43 = arith.constant 0 : index
    %c0_44 = arith.constant 0 : index
    %c0_45 = arith.constant 0 : index
    %53 = vector.load %arg5[%c0_43, %c0_44, %c0_45] : memref<1x1x32xf32, #tpu.memory_space<vmem>>, vector<1x1x32xf32>
    %54 = vector.shape_cast %53 : vector<1x1x32xf32> to vector<1x32xf32>
    %55 = vector.broadcast %54 : vector<1x32xf32> to vector<200x32xf32>
    %56 = arith.addf %52, %55 : vector<200x32xf32>
    %c0_i32_46 = arith.constant 0 : i32
    %57 = arith.cmpi sgt, %arg1, %c0_i32_46 : i32
    %c2_i32 = arith.constant 2 : i32
    %c0_i32_47 = arith.constant 0 : i32
    %58 = arith.cmpi eq, %c2_i32, %c0_i32_47 : i32
    %c1_i32 = arith.constant 1 : i32
    %59 = arith.select %58, %c1_i32, %c2_i32 : i32
    %60 = arith.remsi %arg1, %59 : i32
    %c0_i32_48 = arith.constant 0 : i32
    %61 = arith.cmpi ne, %60, %c0_i32_48 : i32
    %c0_i32_49 = arith.constant 0 : i32
    %62 = arith.cmpi slt, %60, %c0_i32_49 : i32
    %c0_i32_50 = arith.constant 0 : i32
    %63 = arith.cmpi slt, %59, %c0_i32_50 : i32
    %64 = arith.xori %62, %63 : i1
    %65 = arith.andi %64, %61 : i1
    %66 = arith.addi %60, %59 : i32
    %67 = arith.select %65, %66, %60 : i32
    %c0_i32_51 = arith.constant 0 : i32
    %68 = arith.cmpi eq, %67, %c0_i32_51 : i32
    %69 = arith.andi %57, %68 : i1
    %c0_52 = arith.constant 0 : index
    %c0_53 = arith.constant 0 : index
    %70 = vector.load %arg12[%c0_52, %c0_53] : memref<200x32xf32, #tpu.memory_space<vmem>>, vector<200x32xf32>
    %cst_54 = arith.constant 0.000000e+00 : f32
    %71 = vector.broadcast %cst_54 : f32 to vector<200x32xf32>
    %72 = arith.select %69, %70, %71 : vector<200x32xf32>
    %73 = arith.addf %56, %72 : vector<200x32xf32>
    %cst_55 = arith.constant 0.000000e+00 : f32
    %74 = vector.broadcast %cst_55 : f32 to vector<200x32xf32>
    %75 = arith.maximumf %73, %74 : vector<200x32xf32>
    %c0_56 = arith.constant 0 : index
    %c0_57 = arith.constant 0 : index
    %76 = vector.load %arg6[%c0_56, %c0_57] : memref<200x32xf32, #tpu.memory_space<vmem>>, vector<200x32xf32>
    %77 = arith.mulf %75, %76 : vector<200x32xf32>
    %78 = arith.truncf %77 : vector<200x32xf32> to vector<200x32xbf16>
    %c16_58 = arith.constant 16 : index
    %c0_59 = arith.constant 0 : index
    %79 = vector.load %arg11[%c16_58, %c0_59] : memref<232x32xbf16, #tpu.memory_space<vmem>>, vector<200x32xbf16>
    tpu.vector_store %arg11[%c16_58, %c0_59], %78 {strides = array<i32>} : memref<232x32xbf16, #tpu.memory_space<vmem>>, vector<200x32xbf16>,
    %c2_i32_60 = arith.constant 2 : i32
    %c0_i32_61 = arith.constant 0 : i32
    %80 = arith.cmpi eq, %c2_i32_60, %c0_i32_61 : i32
    %c1_i32_62 = arith.constant 1 : i32
    %81 = arith.select %80, %c1_i32_62, %c2_i32_60 : i32
    %82 = arith.remsi %arg1, %81 : i32
    %c0_i32_63 = arith.constant 0 : i32
    %83 = arith.cmpi ne, %82, %c0_i32_63 : i32
    %c0_i32_64 = arith.constant 0 : i32
    %84 = arith.cmpi slt, %82, %c0_i32_64 : i32
    %c0_i32_65 = arith.constant 0 : i32
    %85 = arith.cmpi slt, %81, %c0_i32_65 : i32
    %86 = arith.xori %84, %85 : i1
    %87 = arith.andi %86, %83 : i1
    %88 = arith.addi %82, %81 : i32
    %89 = arith.select %87, %88, %82 : i32
    %c0_i32_66 = arith.constant 0 : i32
    %90 = arith.cmpi eq, %89, %c0_i32_66 : i32
    %c4_i32 = arith.constant 4 : i32
    %91 = arith.cmpi slt, %arg1, %c4_i32 : i32
    %92 = arith.andi %90, %91 : i1
    %93 = arith.extui %92 : i1 to i32
    %c0_i32_67 = arith.constant 0 : i32
    %94 = arith.cmpi ne, %93, %c0_i32_67 : i32
    scf.if %94 {
      %c0_70 = arith.constant 0 : index
      %c0_71 = arith.constant 0 : index
      %98 = vector.load %arg12[%c0_70, %c0_71] : memref<200x32xf32, #tpu.memory_space<vmem>>, vector<200x32xf32>
      tpu.vector_store %arg12[%c0_70, %c0_71], %77 {strides = array<i32>} : memref<200x32xf32, #tpu.memory_space<vmem>>, vector<200x32xf32>,
    } else {
    }
    %c4_i32_68 = arith.constant 4 : i32
    %95 = arith.cmpi eq, %arg1, %c4_i32_68 : i32
    %96 = arith.extui %95 : i1 to i32
    %c0_i32_69 = arith.constant 0 : i32
    %97 = arith.cmpi ne, %96, %c0_i32_69 : i32
    scf.if %97 {
      %cst_70 = arith.constant 0.000000e+00 : f32
      %98 = vector.broadcast %cst_70 : f32 to vector<200x3xf32>
      %c5_71 = arith.constant 5 : index
      %c0_72 = arith.constant 0 : index
      %99 = vector.load %arg11[%c5_71, %c0_72] : memref<232x32xbf16, #tpu.memory_space<vmem>>, vector<200x32xbf16>
      %c0_73 = arith.constant 0 : index
      %c0_74 = arith.constant 0 : index
      %c0_75 = arith.constant 0 : index
      %100 = vector.load %arg7[%c0_73, %c0_74, %c0_75] : memref<9x32x3xbf16, #tpu.memory_space<vmem>>, vector<1x32x3xbf16>
      %101 = vector.shape_cast %100 : vector<1x32x3xbf16> to vector<32x3xbf16>
      %cst_76 = arith.constant dense<0.000000e+00> : vector<200x3xf32>
      %102 = tpu.matmul %99, %101, %cst_76 {dimension_numbers = #tpu.dot_dimension_numbers<[1], [0], [0], [1], [0, 0, 1, 1], [], []>} : vector<200x32xbf16>, vector<32x3xbf16>, vector<200x3xf32> -> vector<200x3xf32>
      %103 = arith.addf %98, %102 : vector<200x3xf32>
      %c6_77 = arith.constant 6 : index
      %c0_78 = arith.constant 0 : index
      %104 = vector.load %arg11[%c6_77, %c0_78] : memref<232x32xbf16, #tpu.memory_space<vmem>>, vector<200x32xbf16>
      %c1_79 = arith.constant 1 : index
      %c0_80 = arith.constant 0 : index
      %c0_81 = arith.constant 0 : index
      %105 = vector.load %arg7[%c1_79, %c0_80, %c0_81] : memref<9x32x3xbf16, #tpu.memory_space<vmem>>, vector<1x32x3xbf16>
      %106 = vector.shape_cast %105 : vector<1x32x3xbf16> to vector<32x3xbf16>
      %cst_82 = arith.constant dense<0.000000e+00> : vector<200x3xf32>
      %107 = tpu.matmul %104, %106, %cst_82 {dimension_numbers = #tpu.dot_dimension_numbers<[1], [0], [0], [1], [0, 0, 1, 1], [], []>} : vector<200x32xbf16>, vector<32x3xbf16>, vector<200x3xf32> -> vector<200x3xf32>
      %108 = arith.addf %103, %107 : vector<200x3xf32>
      %c7_83 = arith.constant 7 : index
      %c0_84 = arith.constant 0 : index
      %109 = vector.load %arg11[%c7_83, %c0_84] : memref<232x32xbf16, #tpu.memory_space<vmem>>, vector<200x32xbf16>
      %c2_85 = arith.constant 2 : index
      %c0_86 = arith.constant 0 : index
      %c0_87 = arith.constant 0 : index
      %110 = vector.load %arg7[%c2_85, %c0_86, %c0_87] : memref<9x32x3xbf16, #tpu.memory_space<vmem>>, vector<1x32x3xbf16>
      %111 = vector.shape_cast %110 : vector<1x32x3xbf16> to vector<32x3xbf16>
      %cst_88 = arith.constant dense<0.000000e+00> : vector<200x3xf32>
      %112 = tpu.matmul %109, %111, %cst_88 {dimension_numbers = #tpu.dot_dimension_numbers<[1], [0], [0], [1], [0, 0, 1, 1], [], []>} : vector<200x32xbf16>, vector<32x3xbf16>, vector<200x3xf32> -> vector<200x3xf32>
      %113 = arith.addf %108, %112 : vector<200x3xf32>
      %c15_89 = arith.constant 15 : index
      %c0_90 = arith.constant 0 : index
      %114 = vector.load %arg11[%c15_89, %c0_90] : memref<232x32xbf16, #tpu.memory_space<vmem>>, vector<200x32xbf16>
      %c3_91 = arith.constant 3 : index
      %c0_92 = arith.constant 0 : index
      %c0_93 = arith.constant 0 : index
      %115 = vector.load %arg7[%c3_91, %c0_92, %c0_93] : memref<9x32x3xbf16, #tpu.memory_space<vmem>>, vector<1x32x3xbf16>
      %116 = vector.shape_cast %115 : vector<1x32x3xbf16> to vector<32x3xbf16>
      %cst_94 = arith.constant dense<0.000000e+00> : vector<200x3xf32>
      %117 = tpu.matmul %114, %116, %cst_94 {dimension_numbers = #tpu.dot_dimension_numbers<[1], [0], [0], [1], [0, 0, 1, 1], [], []>} : vector<200x32xbf16>, vector<32x3xbf16>, vector<200x3xf32> -> vector<200x3xf32>
      %118 = arith.addf %113, %117 : vector<200x3xf32>
      %c16_95 = arith.constant 16 : index
      %c0_96 = arith.constant 0 : index
      %119 = vector.load %arg11[%c16_95, %c0_96] : memref<232x32xbf16, #tpu.memory_space<vmem>>, vector<200x32xbf16>
      %c4_97 = arith.constant 4 : index
      %c0_98 = arith.constant 0 : index
      %c0_99 = arith.constant 0 : index
      %120 = vector.load %arg7[%c4_97, %c0_98, %c0_99] : memref<9x32x3xbf16, #tpu.memory_space<vmem>>, vector<1x32x3xbf16>
      %121 = vector.shape_cast %120 : vector<1x32x3xbf16> to vector<32x3xbf16>
      %cst_100 = arith.constant dense<0.000000e+00> : vector<200x3xf32>
      %122 = tpu.matmul %119, %121, %cst_100 {dimension_numbers = #tpu.dot_dimension_numbers<[1], [0], [0], [1], [0, 0, 1, 1], [], []>} : vector<200x32xbf16>, vector<32x3xbf16>, vector<200x3xf32> -> vector<200x3xf32>
      %123 = arith.addf %118, %122 : vector<200x3xf32>
      %c17_101 = arith.constant 17 : index
      %c0_102 = arith.constant 0 : index
      %124 = vector.load %arg11[%c17_101, %c0_102] : memref<232x32xbf16, #tpu.memory_space<vmem>>, vector<200x32xbf16>
      %c5_103 = arith.constant 5 : index
      %c0_104 = arith.constant 0 : index
      %c0_105 = arith.constant 0 : index
      %125 = vector.load %arg7[%c5_103, %c0_104, %c0_105] : memref<9x32x3xbf16, #tpu.memory_space<vmem>>, vector<1x32x3xbf16>
      %126 = vector.shape_cast %125 : vector<1x32x3xbf16> to vector<32x3xbf16>
      %cst_106 = arith.constant dense<0.000000e+00> : vector<200x3xf32>
      %127 = tpu.matmul %124, %126, %cst_106 {dimension_numbers = #tpu.dot_dimension_numbers<[1], [0], [0], [1], [0, 0, 1, 1], [], []>} : vector<200x32xbf16>, vector<32x3xbf16>, vector<200x3xf32> -> vector<200x3xf32>
      %128 = arith.addf %123, %127 : vector<200x3xf32>
      %c25_107 = arith.constant 25 : index
      %c0_108 = arith.constant 0 : index
      %129 = vector.load %arg11[%c25_107, %c0_108] : memref<232x32xbf16, #tpu.memory_space<vmem>>, vector<200x32xbf16>
      %c6_109 = arith.constant 6 : index
      %c0_110 = arith.constant 0 : index
      %c0_111 = arith.constant 0 : index
      %130 = vector.load %arg7[%c6_109, %c0_110, %c0_111] : memref<9x32x3xbf16, #tpu.memory_space<vmem>>, vector<1x32x3xbf16>
      %131 = vector.shape_cast %130 : vector<1x32x3xbf16> to vector<32x3xbf16>
      %cst_112 = arith.constant dense<0.000000e+00> : vector<200x3xf32>
      %132 = tpu.matmul %129, %131, %cst_112 {dimension_numbers = #tpu.dot_dimension_numbers<[1], [0], [0], [1], [0, 0, 1, 1], [], []>} : vector<200x32xbf16>, vector<32x3xbf16>, vector<200x3xf32> -> vector<200x3xf32>
      %133 = arith.addf %128, %132 : vector<200x3xf32>
      %c26_113 = arith.constant 26 : index
      %c0_114 = arith.constant 0 : index
      %134 = vector.load %arg11[%c26_113, %c0_114] : memref<232x32xbf16, #tpu.memory_space<vmem>>, vector<200x32xbf16>
      %c7_115 = arith.constant 7 : index
      %c0_116 = arith.constant 0 : index
      %c0_117 = arith.constant 0 : index
      %135 = vector.load %arg7[%c7_115, %c0_116, %c0_117] : memref<9x32x3xbf16, #tpu.memory_space<vmem>>, vector<1x32x3xbf16>
      %136 = vector.shape_cast %135 : vector<1x32x3xbf16> to vector<32x3xbf16>
      %cst_118 = arith.constant dense<0.000000e+00> : vector<200x3xf32>
      %137 = tpu.matmul %134, %136, %cst_118 {dimension_numbers = #tpu.dot_dimension_numbers<[1], [0], [0], [1], [0, 0, 1, 1], [], []>} : vector<200x32xbf16>, vector<32x3xbf16>, vector<200x3xf32> -> vector<200x3xf32>
      %138 = arith.addf %133, %137 : vector<200x3xf32>
      %c27_119 = arith.constant 27 : index
      %c0_120 = arith.constant 0 : index
      %139 = vector.load %arg11[%c27_119, %c0_120] : memref<232x32xbf16, #tpu.memory_space<vmem>>, vector<200x32xbf16>
      %c8_121 = arith.constant 8 : index
      %c0_122 = arith.constant 0 : index
      %c0_123 = arith.constant 0 : index
      %140 = vector.load %arg7[%c8_121, %c0_122, %c0_123] : memref<9x32x3xbf16, #tpu.memory_space<vmem>>, vector<1x32x3xbf16>
      %141 = vector.shape_cast %140 : vector<1x32x3xbf16> to vector<32x3xbf16>
      %cst_124 = arith.constant dense<0.000000e+00> : vector<200x3xf32>
      %142 = tpu.matmul %139, %141, %cst_124 {dimension_numbers = #tpu.dot_dimension_numbers<[1], [0], [0], [1], [0, 0, 1, 1], [], []>} : vector<200x32xbf16>, vector<32x3xbf16>, vector<200x3xf32> -> vector<200x3xf32>
      %143 = arith.addf %138, %142 : vector<200x3xf32>
      %c0_125 = arith.constant 0 : index
      %c0_126 = arith.constant 0 : index
      %144 = vector.load %arg8[%c0_125, %c0_126] : memref<1x3xf32, #tpu.memory_space<vmem>>, vector<1x3xf32>
      %145 = vector.broadcast %144 : vector<1x3xf32> to vector<200x3xf32>
      %146 = arith.mulf %143, %145 : vector<200x3xf32>
      %c0_127 = arith.constant 0 : index
      %c0_128 = arith.constant 0 : index
      %147 = vector.load %arg9[%c0_127, %c0_128] : memref<1x3xf32, #tpu.memory_space<vmem>>, vector<1x3xf32>
      %148 = vector.broadcast %147 : vector<1x3xf32> to vector<200x3xf32>
      %149 = arith.addf %146, %148 : vector<200x3xf32>
      %cst_129 = arith.constant 0.000000e+00 : f32
      %150 = vector.broadcast %cst_129 : f32 to vector<200x3xf32>
      %151 = arith.maximumf %149, %150 : vector<200x3xf32>
      %c0_130 = arith.constant 0 : index
      %c0_131 = arith.constant 0 : index
      %152 = vector.load %arg10[%c0_130, %c0_131] : memref<200x3xf32, #tpu.memory_space<vmem>>, vector<200x3xf32>
      tpu.vector_store %arg10[%c0_130, %c0_131], %151 {strides = array<i32>} : memref<200x3xf32, #tpu.memory_space<vmem>>, vector<200x3xf32>,
    } else {
    }
    return
  }
  func.func @transform_0(%arg0: i32, %arg1: i32) -> (i32, i32) {
    %c0_i32 = arith.constant 0 : i32
    %c0_i32_0 = arith.constant 0 : i32
    return %arg0, %c0_i32 : i32, i32
  }
  func.func @transform_1(%arg0: i32, %arg1: i32) -> (i32, i32, i32) {
    %c0_i32 = arith.constant 0 : i32
    %c0_i32_0 = arith.constant 0 : i32
    %c0_i32_1 = arith.constant 0 : i32
    return %arg1, %c0_i32, %c0_i32_0 : i32, i32, i32
  }
  func.func @transform_2(%arg0: i32, %arg1: i32) -> (i32, i32, i32) {
    %c0_i32 = arith.constant 0 : i32
    %c0_i32_0 = arith.constant 0 : i32
    %c0_i32_1 = arith.constant 0 : i32
    return %arg1, %c0_i32, %c0_i32_0 : i32, i32, i32
  }
  func.func @transform_3(%arg0: i32, %arg1: i32) -> (i32, i32, i32) {
    %c0_i32 = arith.constant 0 : i32
    %c0_i32_0 = arith.constant 0 : i32
    %c0_i32_1 = arith.constant 0 : i32
    return %arg1, %c0_i32, %c0_i32_0 : i32, i32, i32
  }
  func.func @transform_4(%arg0: i32, %arg1: i32) -> (i32, i32) {
    %c0_i32 = arith.constant 0 : i32
    %c0_i32_0 = arith.constant 0 : i32
    %c0_i32_1 = arith.constant 0 : i32
    return %c0_i32, %c0_i32_0 : i32, i32
  }
  func.func @transform_5(%arg0: i32, %arg1: i32) -> (i32, i32, i32) {
    %c0_i32 = arith.constant 0 : i32
    %c0_i32_0 = arith.constant 0 : i32
    %c0_i32_1 = arith.constant 0 : i32
    %c0_i32_2 = arith.constant 0 : i32
    return %c0_i32, %c0_i32_0, %c0_i32_1 : i32, i32, i32
  }
  func.func @transform_6(%arg0: i32, %arg1: i32) -> (i32, i32) {
    %c0_i32 = arith.constant 0 : i32
    %c0_i32_0 = arith.constant 0 : i32
    %c0_i32_1 = arith.constant 0 : i32
    return %c0_i32, %c0_i32_0 : i32, i32
  }
  func.func @transform_7(%arg0: i32, %arg1: i32) -> (i32, i32) {
    %c0_i32 = arith.constant 0 : i32
    %c0_i32_0 = arith.constant 0 : i32
    %c0_i32_1 = arith.constant 0 : i32
    return %c0_i32, %c0_i32_0 : i32, i32
  }
  func.func @transform_8(%arg0: i32, %arg1: i32) -> (i32, i32) {
    %c0_i32 = arith.constant 0 : i32
    %c0_i32_0 = arith.constant 0 : i32
    return %arg0, %c0_i32 : i32, i32
  }
}

module attributes {stable_mosaic.version = 11 : i64} {
  func.func @_heads_fc_kernel(%arg0: i32, %arg1: memref<2x128xf32, #tpu.memory_space<vmem>>, %arg2: memref<128x65xf32, #tpu.memory_space<vmem>>, %arg3: memref<1x65xf32, #tpu.memory_space<vmem>>, %arg4: memref<2x64xf32, #tpu.memory_space<vmem>>, %arg5: memref<64x32xf32, #tpu.memory_space<vmem>>, %arg6: memref<1x32xf32, #tpu.memory_space<vmem>>, %arg7: memref<32x1xf32, #tpu.memory_space<vmem>>, %arg8: memref<1x1xf32, #tpu.memory_space<vmem>>, %arg9: memref<2x65xf32, #tpu.memory_space<vmem>>, %arg10: memref<2x1xf32, #tpu.memory_space<vmem>>) attributes {dimension_semantics = [#tpu.dimension_semantics<arbitrary>], iteration_bounds = array<i64: 1>, scalar_prefetch = 0 : i64, scratch_operands = 0 : i64, tpu.core_type = #tpu.core_type<tc>, window_params = [{pipeline_mode = #tpu.pipeline_mode<synchronous>, transform_indices = @transform_0, window_bounds = array<i64: 2, 128>}, {pipeline_mode = #tpu.pipeline_mode<synchronous>, transform_indices = @transform_1, window_bounds = array<i64: 128, 65>}, {pipeline_mode = #tpu.pipeline_mode<synchronous>, transform_indices = @transform_2, window_bounds = array<i64: 1, 65>}, {pipeline_mode = #tpu.pipeline_mode<synchronous>, transform_indices = @transform_3, window_bounds = array<i64: 2, 64>}, {pipeline_mode = #tpu.pipeline_mode<synchronous>, transform_indices = @transform_4, window_bounds = array<i64: 64, 32>}, {pipeline_mode = #tpu.pipeline_mode<synchronous>, transform_indices = @transform_5, window_bounds = array<i64: 1, 32>}, {pipeline_mode = #tpu.pipeline_mode<synchronous>, transform_indices = @transform_6, window_bounds = array<i64: 32, 1>}, {pipeline_mode = #tpu.pipeline_mode<synchronous>, transform_indices = @transform_7, window_bounds = array<i64: 1, 1>}, {pipeline_mode = #tpu.pipeline_mode<synchronous>, transform_indices = @transform_8, window_bounds = array<i64: 2, 65>}, {pipeline_mode = #tpu.pipeline_mode<synchronous>, transform_indices = @transform_9, window_bounds = array<i64: 2, 1>}]} {
    %c0 = arith.constant 0 : index
    %c0_0 = arith.constant 0 : index
    %0 = vector.load %arg1[%c0, %c0_0] : memref<2x128xf32, #tpu.memory_space<vmem>>, vector<2x128xf32>
    %c0_1 = arith.constant 0 : index
    %c0_2 = arith.constant 0 : index
    %1 = vector.load %arg2[%c0_1, %c0_2] : memref<128x65xf32, #tpu.memory_space<vmem>>, vector<128x65xf32>
    %cst = arith.constant dense<0.000000e+00> : vector<2x65xf32>
    %2 = tpu.matmul %0, %1, %cst {dimension_numbers = #tpu.dot_dimension_numbers<[1], [0], [0], [1], [0, 0, 1, 1], [], []>} : vector<2x128xf32>, vector<128x65xf32>, vector<2x65xf32> -> vector<2x65xf32>
    %c0_3 = arith.constant 0 : index
    %c0_4 = arith.constant 0 : index
    %3 = vector.load %arg3[%c0_3, %c0_4] : memref<1x65xf32, #tpu.memory_space<vmem>>, vector<1x65xf32>
    %4 = vector.broadcast %3 : vector<1x65xf32> to vector<2x65xf32>
    %5 = arith.addf %2, %4 : vector<2x65xf32>
    %cst_5 = arith.constant dense<0xFF800000> : vector<2xf32>
    %6 = vector.multi_reduction <maximumf>, %5, %cst_5 [1] : vector<2x65xf32> to vector<2xf32>
    %7 = vector.shape_cast %6 : vector<2xf32> to vector<2x1xf32>
    %8 = vector.broadcast %7 : vector<2x1xf32> to vector<2x65xf32>
    %9 = arith.subf %5, %8 : vector<2x65xf32>
    %10 = math.exp %9 : vector<2x65xf32>
    %cst_6 = arith.constant dense<0.000000e+00> : vector<2xf32>
    %11 = vector.multi_reduction <add>, %10, %cst_6 [1] : vector<2x65xf32> to vector<2xf32>
    %12 = vector.shape_cast %11 : vector<2xf32> to vector<2x1xf32>
    %13 = math.log %12 : vector<2x1xf32>
    %14 = vector.broadcast %13 : vector<2x1xf32> to vector<2x65xf32>
    %15 = arith.subf %9, %14 : vector<2x65xf32>
    %c0_7 = arith.constant 0 : index
    %c0_8 = arith.constant 0 : index
    %16 = vector.load %arg9[%c0_7, %c0_8] : memref<2x65xf32, #tpu.memory_space<vmem>>, vector<2x65xf32>
    tpu.vector_store %arg9[%c0_7, %c0_8], %15 {strides = array<i32>} : memref<2x65xf32, #tpu.memory_space<vmem>>, vector<2x65xf32>,
    %c0_9 = arith.constant 0 : index
    %c0_10 = arith.constant 0 : index
    %17 = vector.load %arg4[%c0_9, %c0_10] : memref<2x64xf32, #tpu.memory_space<vmem>>, vector<2x64xf32>
    %c0_11 = arith.constant 0 : index
    %c0_12 = arith.constant 0 : index
    %18 = vector.load %arg5[%c0_11, %c0_12] : memref<64x32xf32, #tpu.memory_space<vmem>>, vector<64x32xf32>
    %cst_13 = arith.constant dense<0.000000e+00> : vector<2x32xf32>
    %19 = tpu.matmul %17, %18, %cst_13 {dimension_numbers = #tpu.dot_dimension_numbers<[1], [0], [0], [1], [0, 0, 1, 1], [], []>} : vector<2x64xf32>, vector<64x32xf32>, vector<2x32xf32> -> vector<2x32xf32>
    %c0_14 = arith.constant 0 : index
    %c0_15 = arith.constant 0 : index
    %20 = vector.load %arg6[%c0_14, %c0_15] : memref<1x32xf32, #tpu.memory_space<vmem>>, vector<1x32xf32>
    %21 = vector.broadcast %20 : vector<1x32xf32> to vector<2x32xf32>
    %22 = arith.addf %19, %21 : vector<2x32xf32>
    %cst_16 = arith.constant 0.000000e+00 : f32
    %23 = vector.broadcast %cst_16 : f32 to vector<2x32xf32>
    %24 = arith.maximumf %22, %23 : vector<2x32xf32>
    %c0_17 = arith.constant 0 : index
    %c0_18 = arith.constant 0 : index
    %25 = vector.load %arg7[%c0_17, %c0_18] : memref<32x1xf32, #tpu.memory_space<vmem>>, vector<32x1xf32>
    %cst_19 = arith.constant dense<0.000000e+00> : vector<2x1xf32>
    %26 = tpu.matmul %24, %25, %cst_19 {dimension_numbers = #tpu.dot_dimension_numbers<[1], [0], [0], [1], [0, 0, 1, 1], [], []>} : vector<2x32xf32>, vector<32x1xf32>, vector<2x1xf32> -> vector<2x1xf32>
    %c0_20 = arith.constant 0 : index
    %c0_21 = arith.constant 0 : index
    %27 = vector.load %arg8[%c0_20, %c0_21] : memref<1x1xf32, #tpu.memory_space<vmem>>, vector<1x1xf32>
    %28 = vector.broadcast %27 : vector<1x1xf32> to vector<2x1xf32>
    %29 = arith.addf %26, %28 : vector<2x1xf32>
    %30 = math.tanh %29 : vector<2x1xf32>
    %c0_22 = arith.constant 0 : index
    %c0_23 = arith.constant 0 : index
    %31 = vector.load %arg10[%c0_22, %c0_23] : memref<2x1xf32, #tpu.memory_space<vmem>>, vector<2x1xf32>
    tpu.vector_store %arg10[%c0_22, %c0_23], %30 {strides = array<i32>} : memref<2x1xf32, #tpu.memory_space<vmem>>, vector<2x1xf32>,
    return
  }
  func.func @transform_0(%arg0: i32) -> (i32, i32) {
    %c0_i32 = arith.constant 0 : i32
    %c0_i32_0 = arith.constant 0 : i32
    %c0_i32_1 = arith.constant 0 : i32
    return %c0_i32, %c0_i32_0 : i32, i32
  }
  func.func @transform_1(%arg0: i32) -> (i32, i32) {
    %c0_i32 = arith.constant 0 : i32
    %c0_i32_0 = arith.constant 0 : i32
    %c0_i32_1 = arith.constant 0 : i32
    return %c0_i32, %c0_i32_0 : i32, i32
  }
  func.func @transform_2(%arg0: i32) -> (i32, i32) {
    %c0_i32 = arith.constant 0 : i32
    %c0_i32_0 = arith.constant 0 : i32
    %c0_i32_1 = arith.constant 0 : i32
    return %c0_i32, %c0_i32_0 : i32, i32
  }
  func.func @transform_3(%arg0: i32) -> (i32, i32) {
    %c0_i32 = arith.constant 0 : i32
    %c0_i32_0 = arith.constant 0 : i32
    %c0_i32_1 = arith.constant 0 : i32
    return %c0_i32, %c0_i32_0 : i32, i32
  }
  func.func @transform_4(%arg0: i32) -> (i32, i32) {
    %c0_i32 = arith.constant 0 : i32
    %c0_i32_0 = arith.constant 0 : i32
    %c0_i32_1 = arith.constant 0 : i32
    return %c0_i32, %c0_i32_0 : i32, i32
  }
  func.func @transform_5(%arg0: i32) -> (i32, i32) {
    %c0_i32 = arith.constant 0 : i32
    %c0_i32_0 = arith.constant 0 : i32
    %c0_i32_1 = arith.constant 0 : i32
    return %c0_i32, %c0_i32_0 : i32, i32
  }
  func.func @transform_6(%arg0: i32) -> (i32, i32) {
    %c0_i32 = arith.constant 0 : i32
    %c0_i32_0 = arith.constant 0 : i32
    %c0_i32_1 = arith.constant 0 : i32
    return %c0_i32, %c0_i32_0 : i32, i32
  }
  func.func @transform_7(%arg0: i32) -> (i32, i32) {
    %c0_i32 = arith.constant 0 : i32
    %c0_i32_0 = arith.constant 0 : i32
    %c0_i32_1 = arith.constant 0 : i32
    return %c0_i32, %c0_i32_0 : i32, i32
  }
  func.func @transform_8(%arg0: i32) -> (i32, i32) {
    %c0_i32 = arith.constant 0 : i32
    %c0_i32_0 = arith.constant 0 : i32
    %c0_i32_1 = arith.constant 0 : i32
    return %c0_i32, %c0_i32_0 : i32, i32
  }
  func.func @transform_9(%arg0: i32) -> (i32, i32) {
    %c0_i32 = arith.constant 0 : i32
    %c0_i32_0 = arith.constant 0 : i32
    %c0_i32_1 = arith.constant 0 : i32
    return %c0_i32, %c0_i32_0 : i32, i32
  }
}

</mosaic_0001>

<llo_original>
// kernel: alphago_forward.3
$region0: #{alphago_forward.3}
  #allocation0 [shape = 'u32[]', space=smem, size = 0x4, offset = 0x4, fixed_abs, tag = 'smem constant byte address 0x4 - core index']
  #allocation1 [shape = 'u32[72,128]{1,0:T(1,128)}', space=vmem, size = 0x9000, scoped, tag = 'internal scratch']
  #allocation2 [shape = 'f32[1,1]{1,0:T(1,128)S(1)}', space=vmem, size = 0x200, scoped, tag = 'scoped memory for alphago_forward.3']
  %s0 = inlined_call_operand.vmem [shape: f32[2,128], index: 0, kind: input, shape index: {}]
  %s1 = inlined_call_operand.vmem [shape: f32[128,65], index: 1, kind: input, shape index: {}]
  %s2 = inlined_call_operand.vmem [shape: f32[1,65], index: 2, kind: input, shape index: {}]
  %s3 = inlined_call_operand.vmem [shape: f32[2,64], index: 3, kind: input, shape index: {}]
  %s4 = inlined_call_operand.vmem [shape: f32[64,32], index: 4, kind: input, shape index: {}]
  %s5 = inlined_call_operand.vmem [shape: f32[1,32], index: 5, kind: input, shape index: {}]
  %s6 = inlined_call_operand.vmem [shape: f32[32,1], index: 6, kind: input, shape index: {}]
  %s7 = inlined_call_operand.<no memory space> [shape: f32[1,1], index: 7, kind: input, shape index: {}]
  %s8 = inlined_call_operand.hbm [shape: f32[2,65], index: 8, kind: output, shape index: {0}]
  %s9 = inlined_call_operand.vmem [shape: f32[2,1], index: 9, kind: output, shape index: {1}]
  %10 = xla_tuple %s8, %s9
  %s11 = sld [smem:[#allocation0]]
  $region50: #{alphago_forward.3} parent=0
    _
  %s13 = ssub.s32 1, %s11
  %s14 = scalar_select 0, %s13, %s11
  %v15 = vstv %s7
  %16 = vst [vmem:[#allocation2] sm:$0x1] %v15
  $region1: #{alphago_forward.3} parent=0
    #allocation3 [shape = 'u8[1024]{0}', space=vmem, size = 0x400, scoped, tag = 'output window, operand 0, single buffered']
    #allocation4 [shape = 's32[1]{0}', space=sflag, size = 0x4, scoped, tag = 'scoped memory for alphago_forward.3']
    %17 = vsyncpa [#allocation4], 0
    // Predicated region
    $region2: #{alphago_forward.3} parent=1 // pred_check
      _
    $region3: #{alphago_forward.3} parent=1 // pred_check_branch
      %19 = sbr.rel (0) target = $region5
    $region4: #{alphago_forward.3} parent=1 // pred_region
      _
    $region5: #{alphago_forward.3} parent=1 // pred_fallthru
      _
    // Predicated region
    $region6: #{alphago_forward.3} parent=1 // pred_check
      _
    $region7: #{alphago_forward.3} parent=1 // pred_check_branch
      %21 = sbr.rel (0) target = $region9
    $region8: #{alphago_forward.3} parent=1 // pred_region
      _
    $region9: #{alphago_forward.3} parent=1 // pred_fallthru
      _
    // Predicated region
    $region10: #{alphago_forward.3} parent=1 // pred_check
      _
    $region11: #{alphago_forward.3} parent=1 // pred_check_branch
      %23 = sbr.rel (0) target = $region13
    $region12: #{alphago_forward.3} parent=1 // pred_region
      _
    $region13: #{alphago_forward.3} parent=1 // pred_fallthru
      _
    // Predicated region
    $region14: #{alphago_forward.3} parent=1 // pred_check
      _
    $region15: #{alphago_forward.3} parent=1 // pred_check_branch
      %25 = sbr.rel (0) target = $region17
    $region16: #{alphago_forward.3} parent=1 // pred_region
      _
    $region17: #{alphago_forward.3} parent=1 // pred_fallthru
      _
    // Predicated region
    $region18: #{alphago_forward.3} parent=1 // pred_check
      _
    $region19: #{alphago_forward.3} parent=1 // pred_check_branch
      %27 = sbr.rel (0) target = $region21
    $region20: #{alphago_forward.3} parent=1 // pred_region
      _
    $region21: #{alphago_forward.3} parent=1 // pred_fallthru
      _
    // Predicated region
    $region22: #{alphago_forward.3} parent=1 // pred_check
      _
    $region23: #{alphago_forward.3} parent=1 // pred_check_branch
      %29 = sbr.rel (0) target = $region25
    $region24: #{alphago_forward.3} parent=1 // pred_region
      _
    $region25: #{alphago_forward.3} parent=1 // pred_fallthru
      _
    // Predicated region
    $region26: #{alphago_forward.3} parent=1 // pred_check
      _
    $region27: #{alphago_forward.3} parent=1 // pred_check_branch
      %31 = sbr.rel (0) target = $region29
    $region28: #{alphago_forward.3} parent=1 // pred_region
      _
    $region29: #{alphago_forward.3} parent=1 // pred_fallthru
      _
    // Predicated region
    $region30: #{alphago_forward.3} parent=1 // pred_check
      _
    $region31: #{alphago_forward.3} parent=1 // pred_check_branch
      %33 = sbr.rel (0) target = $region33
    $region32: #{alphago_forward.3} parent=1 // pred_region
      _
    $region33: #{alphago_forward.3} parent=1 // pred_fallthru
      _
    %v34 = vld [vmem:[%s0] sm:$0x3]
    %v35 = vld [vmem:[%s1] sm:$0xff]
    %v36 = vld [vmem:[%s1 + $0x8] sm:$0xff]
    %v37 = vld [vmem:[%s1 + $0x10] sm:$0xff]
    %v38 = vld [vmem:[%s1 + $0x18] sm:$0xff]
    %v39 = vld [vmem:[%s1 + $0x20] sm:$0xff]
    %v40 = vld [vmem:[%s1 + $0x28] sm:$0xff]
    %v41 = vld [vmem:[%s1 + $0x30] sm:$0xff]
    %v42 = vld [vmem:[%s1 + $0x38] sm:$0xff]
    %v43 = vld [vmem:[%s1 + $0x40] sm:$0xff]
    %v44 = vld [vmem:[%s1 + $0x48] sm:$0xff]
    %v45 = vld [vmem:[%s1 + $0x50] sm:$0xff]
    %v46 = vld [vmem:[%s1 + $0x58] sm:$0xff]
    %v47 = vld [vmem:[%s1 + $0x60] sm:$0xff]
    %v48 = vld [vmem:[%s1 + $0x68] sm:$0xff]
    %v49 = vld [vmem:[%s1 + $0x70] sm:$0xff]
    %v50 = vld [vmem:[%s1 + $0x78] sm:$0xff]
    %v51 = vld [vmem:[%s2] sm:$0x1]
    %v53 = vperm.slane %v51, 0
    %55 = vmatpush.msra.mxu0 %v50
    %56 = vmatpush.msra.mxu0 %v49
    %57 = vmatpush.msra.mxu0 %v48
    %58 = vmatpush.msra.mxu0 %v47
    %59 = vmatpush.msra.mxu0 %v46
    %60 = vmatpush.msra.mxu0 %v45
    %61 = vmatpush.msra.mxu0 %v44
    %62 = vmatpush.msra.mxu0 %v43
    %63 = vmatpush.msra.mxu0 %v42
    %64 = vmatpush.msra.mxu0 %v41
    %65 = vmatpush.msra.mxu0 %v40
    %66 = vmatpush.msra.mxu0 %v39
    %67 = vmatpush.msra.mxu0 %v38
    %68 = vmatpush.msra.mxu0 %v37
    %69 = vmatpush.msra.mxu0 %v36
    %70 = vmatpush.msra.mxu0 %v35
    %71 = vmatmul.f32.gmra.mxu0 %v34
    %v72 = vpop.f32.mrf.mxu0
    %v73 = vadd.f32 %v53, %v72
    %74 = vdwg.mxu0
    %vm75 = vcmask 525312
    %v76 = vsel %vm75, %v73, -inf
    %77 = vmax.xlane.f32.xlu0 %v76
    %v78 = vpop.xlane.xlu0 %77
    %v79 = vsub.f32 %v73, %v78
    %v80 = vmul.f32 %v79, 1.442695
    %v81 = vpow.pop %v80
    %v82 = vsel %vm75, %v81, 0.0
    %83 = vadd.xlane.f32.xlu0 %v82
    %v84 = vpop.xlane.xlu0 %83
    %v85 = vlog2.pop %v84
    %v86 = vmul.f32 %v85, 0.6931472
    %v87 = vsub.f32 %v79, %v86
    %88 = vst.msk [vmem:[#allocation3] sm:$0x3] %vm75, %v87
    %v89 = vld [vmem:[%s3] sm:$0x3]
    %v90 = vld [vmem:[%s4] sm:$0xff]
    %v91 = vld [vmem:[%s4 + $0x8] sm:$0xff]
    %v92 = vld [vmem:[%s4 + $0x10] sm:$0xff]
    %v93 = vld [vmem:[%s4 + $0x18] sm:$0xff]
    %v94 = vld [vmem:[%s4 + $0x20] sm:$0xff]
    %v95 = vld [vmem:[%s4 + $0x28] sm:$0xff]
    %v96 = vld [vmem:[%s4 + $0x30] sm:$0xff]
    %v97 = vld [vmem:[%s4 + $0x38] sm:$0xff]
    %v98 = vld [vmem:[%s5] sm:$0x1]
    %v100 = vperm.slane %v98, 0
    %vm102 = vcmask 523264
    %v104 = vsel %vm102, %v89, 0
    %106 = vmatpush.msra.mxu0 0.0
    %107 = vmatpush.msra.mxu0 0.0
    %108 = vmatpush.msra.mxu0 0.0
    %109 = vmatpush.msra.mxu0 0.0
    %110 = vmatpush.msra.mxu0 0.0
    %111 = vmatpush.msra.mxu0 0.0
    %112 = vmatpush.msra.mxu0 0.0
    %113 = vmatpush.msra.mxu0 0.0
    %114 = vmatpush.msra.mxu0 %v97
    %115 = vmatpush.msra.mxu0 %v96
    %116 = vmatpush.msra.mxu0 %v95
    %117 = vmatpush.msra.mxu0 %v94
    %118 = vmatpush.msra.mxu0 %v93
    %119 = vmatpush.msra.mxu0 %v92
    %120 = vmatpush.msra.mxu0 %v91
    %121 = vmatpush.msra.mxu0 %v90
    %122 = vmatmul.f32.gmra.mxu0 %v104
    %v123 = vpop.f32.mrf.mxu0
    %v124 = vadd.f32 %v100, %v123
    %125 = vdwg.mxu0
    %v126 = vmax.f32 %v124, 0.0
    %v127 = vld [vmem:[%s6] sm:$0xff]
    %v128 = vld [vmem:[%s6 + $0x8] sm:$0xff]
    %v129 = vld [vmem:[%s6 + $0x10] sm:$0xff]
    %v130 = vld [vmem:[%s6 + $0x18] sm:$0xff]
    %v131 = vld [vmem:[#allocation2] sm:$0x1]
    %v133 = vperm.slane %v131, 0
    %vm135 = vcmask 261120
    %v137 = vsel %vm135, %v126, 0
    %139 = vmatpush.msra.mxu0 0.0
    %140 = vmatpush.msra.mxu0 0.0
    %141 = vmatpush.msra.mxu0 0.0
    %142 = vmatpush.msra.mxu0 0.0
    %143 = vmatpush.msra.mxu0 0.0
    %144 = vmatpush.msra.mxu0 0.0
    %145 = vmatpush.msra.mxu0 0.0
    %146 = vmatpush.msra.mxu0 0.0
    %147 = vmatpush.msra.mxu0 0.0
    %148 = vmatpush.msra.mxu0 0.0
    %149 = vmatpush.msra.mxu0 0.0
    %150 = vmatpush.msra.mxu0 0.0
    %151 = vmatpush.msra.mxu0 %v130
    %152 = vmatpush.msra.mxu0 %v129
    %153 = vmatpush.msra.mxu0 %v128
    %154 = vmatpush.msra.mxu0 %v127
    %155 = vmatmul.f32.gmra.mxu0 %v137
    %v156 = vpop.f32.mrf.mxu0
    %v157 = vadd.f32 %v133, %v156
    %158 = vdwg.mxu0
    %v159 = vtanh.pop %v157
    %vm160 = vcmask 1024
    %161 = vst.msk [vmem:[%s9] sm:$0x3] %vm160, %v159
    // Predicated region
    $region34: #{alphago_forward.3} parent=1 // pred_check
      _
    $region35: #{alphago_forward.3} parent=1 // pred_check_branch
      %163 = sbr.rel (0) target = $region37
    $region36: #{alphago_forward.3} parent=1 // pred_region
      %165 = vsyncadd [#allocation4], 0
      %s167 = sshll.u32 [#allocation3], 4
      %s168 = int_to_ptr.vmem [resolvable:$true] %s167
      %s169 = sshll.u32 %s8, 4
      %s170 = int_to_ptr.hbm [resolvable:$true] %s169
      %172 = dma.vmem_to_hbm [thread:$0]  %s168, 32, %s170, [#allocation4]
    $region37: #{alphago_forward.3} parent=1 // pred_fallthru
      _
    // Predicated region
    $region38: #{alphago_forward.3} parent=1 // pred_check
      _
    $region39: #{alphago_forward.3} parent=1 // pred_check_branch
      %174 = sbr.rel (0) target = $region41
    $region40: #{alphago_forward.3} parent=1 // pred_region
      _
    $region41: #{alphago_forward.3} parent=1 // pred_fallthru
      _
    // Predicated region
    $region42: #{alphago_forward.3} parent=1 // pred_check
      _
    $region43: #{alphago_forward.3} parent=1 // pred_check_branch
      %176 = sbr.rel (0) target = $region45
    $region44: #{alphago_forward.3} parent=1 // pred_region
      %178 = dma.done [#allocation4], 32
    $region45: #{alphago_forward.3} parent=1 // pred_fallthru
      _
    // Predicated region
    $region46: #{alphago_forward.3} parent=1 // pred_check
      _
    $region47: #{alphago_forward.3} parent=1 // pred_check_branch
      %180 = sbr.rel (0) target = $region49
    $region48: #{alphago_forward.3} parent=1 // pred_region
      _
    $region49: #{alphago_forward.3} parent=1 // pred_fallthru
      _
    %181 = vsyncpa [#allocation4], 1

// kernel: alphago_forward.2
$region0: #{alphago_forward.2}
  #allocation0 [shape = 'u32[]', space=smem, size = 0x4, offset = 0x4, fixed_abs, tag = 'smem constant byte address 0x4 - core index']
  #allocation1 [shape = 'u32[72,128]{1,0:T(1,128)}', space=vmem, size = 0x9000, scoped, tag = 'internal scratch']
  #allocation2 [shape = 'bf16[232,32]{1,0:T(8,128)(2,1)}', space=vmem, size = 0xe800, scoped, tag = 'scratch operand']
  #allocation3 [shape = 'f32[200,32]{1,0:T(8,128)}', space=vmem, size = 0x19000, scoped, tag = 'scratch operand']
  %s0 = inlined_call_operand.vmem [shape: bf16[200,32], index: 0, kind: input, shape index: {}]
  %s1 = inlined_call_operand.vmem [shape: bf16[45,32,32], index: 1, kind: input, shape index: {}]
  %s2 = inlined_call_operand.vmem [shape: f32[5,1,32], index: 2, kind: input, shape index: {}]
  %s3 = inlined_call_operand.vmem [shape: f32[5,1,32], index: 3, kind: input, shape index: {}]
  %s4 = inlined_call_operand.vmem [shape: f32[200,32], index: 4, kind: input, shape index: {}]
  %s5 = inlined_call_operand.vmem [shape: bf16[9,32,3], index: 5, kind: input, shape index: {}]
  %s6 = inlined_call_operand.vmem [shape: f32[1,3], index: 6, kind: input, shape index: {}]
  %s7 = inlined_call_operand.vmem [shape: f32[1,3], index: 7, kind: input, shape index: {}]
  %s8 = inlined_call_operand.vmem [shape: f32[200,3], index: 8, kind: output, shape index: {}]
  %s9 = sld [smem:[#allocation0]]
  $region77: #{alphago_forward.2} parent=0
    _
  %s11 = ssub.s32 1, %s9
  %s12 = scalar_select 0, %s11, %s9
  loop: start=0, step=1, limit=7
  $region2: #{alphago_forward.2} parent=0 // loop_pre_header
    _
  $region3: #{alphago_forward.2} parent=0 // loop_header
    %s14 = sphi 0, %s18
    %p15 = scmp.ge.s32.totalorder %s14, 7
    %s21 = sphi 0, %s33
    %s22 = sphi 0, %s29
    %s23 = sphi 0, %s21
    %s24 = sphi 0, %s22
    %s25 = sphi 0, %s23
    %s26 = sphi 0, %s24
    %s36 = sphi 0, %s38
    %s39 = sphi 0, %s36
    %s40 = sphi 0, %s39
    %s56 = sphi 0, %s40
    %s62 = sphi 0, %s64
    %s65 = sphi 0, %s62
    %s66 = sphi 0, %s65
    %s82 = sphi 0, %s66
    %s88 = sphi 0, %s90
    %s91 = sphi 0, %s88
    %s92 = sphi 0, %s91
    %s108 = sphi 0, %s92
    %s114 = sphi 0, %s116
    %s117 = sphi 0, %s114
    %s118 = sphi 0, %s117
    %s134 = sphi 0, %s118
    %s138 = sphi 0, %s138
    %s140 = sphi 0, %s138
    %s141 = sphi 0, %s140
    %s155 = sphi 0, %s141
    %s159 = sphi 0, %s159
    %s161 = sphi 0, %s159
    %s162 = sphi 0, %s161
    %s176 = sphi 0, %s162
    %s180 = sphi 0, %s180
    %s182 = sphi 0, %s180
    %s183 = sphi 0, %s182
    %s197 = sphi 0, %s183
    %s201 = sphi 0, %s201
    %s203 = sphi 0, %s201
    %s204 = sphi 0, %s203
    %s218 = sphi 0, %s204
    %s224 = sphi 0, %s226
    %s227 = sphi 0, %s224
    %s228 = sphi 0, %s227
    %s244 = sphi 0, %s228
  $region4: #{alphago_forward.2} parent=0 // loop_header_branch
    %17 = sbr.rel (%p15) target = $region8
  $region5: #{alphago_forward.2} parent=0 // loop_body
    %s19 = ssub.s32 %s14, 1
    %s20 = ssub.s32 %s14, 2
    %s27 = sadd.s32 1, %s22
    %p28 = scmp.ge.s32.totalorder %s27, 5
    %s29 = scalar_select %p28, 0, %s27
    %s30 = sadd.s32 1, %s21
    %s31 = scalar_select %p28, %s30, %s21
    %p32 = scmp.ge.s32.totalorder %s31, 1
    %s33 = scalar_select %p32, 0, %s31
    %s34 = ssub.s32 %s21, %s33
    %p35 = scmp.eq.s32.totalorder %s34, 0
    %s37 = sadd.s32 %s36, 1
    %s38 = scalar_select %p35, %s36, %s37
    %p41 = pneg %p35
    %p42 = scmp.eq.s32.totalorder %s14, 4
    %p43 = por %p41, %p42
    %p44 = scmp.ne.s32.totalorder %s36, %s39
    %p45 = scmp.eq.s32.totalorder %s14, 0
    %p46 = por %p44, %p45
    %p47 = scmp.ne.s32.totalorder %s36, %s39
    %p48 = scmp.eq.s32.totalorder %s19, 4
    %p49 = por %p47, %p48
    %p50 = scmp.ne.s32.totalorder %s39, %s40
    %p51 = scmp.eq.s32.totalorder %s19, 0
    %p52 = por %p50, %p51
    %p53 = scmp.ne.s32.totalorder %s39, %s40
    %p54 = scmp.eq.s32.totalorder %s20, 4
    %p55 = por %p53, %p54
    %p57 = scmp.ne.s32.totalorder %s40, %s56
    %p58 = scmp.eq.s32.totalorder %s20, 0
    %p59 = por %p57, %p58
    %s60 = ssub.s32 %s22, %s29
    %p61 = scmp.eq.s32.totalorder %s60, 0
    %s63 = sadd.s32 %s62, 1
    %s64 = scalar_select %p61, %s62, %s63
    %p67 = pneg %p61
    %p68 = scmp.eq.s32.totalorder %s14, 4
    %p69 = por %p67, %p68
    %p70 = scmp.ne.s32.totalorder %s62, %s65
    %p71 = scmp.eq.s32.totalorder %s14, 0
    %p72 = por %p70, %p71
    %p73 = scmp.ne.s32.totalorder %s62, %s65
    %p74 = scmp.eq.s32.totalorder %s19, 4
    %p75 = por %p73, %p74
    %p76 = scmp.ne.s32.totalorder %s65, %s66
    %p77 = scmp.eq.s32.totalorder %s19, 0
    %p78 = por %p76, %p77
    %p79 = scmp.ne.s32.totalorder %s65, %s66
    %p80 = scmp.eq.s32.totalorder %s20, 4
    %p81 = por %p79, %p80
    %p83 = scmp.ne.s32.totalorder %s66, %s82
    %p84 = scmp.eq.s32.totalorder %s20, 0
    %p85 = por %p83, %p84
    %s86 = ssub.s32 %s22, %s29
    %p87 = scmp.eq.s32.totalorder %s86, 0
    %s89 = sadd.s32 %s88, 1
    %s90 = scalar_select %p87, %s88, %s89
    %p93 = pneg %p87
    %p94 = scmp.eq.s32.totalorder %s14, 4
    %p95 = por %p93, %p94
    %p96 = scmp.ne.s32.totalorder %s88, %s91
    %p97 = scmp.eq.s32.totalorder %s14, 0
    %p98 = por %p96, %p97
    %p99 = scmp.ne.s32.totalorder %s88, %s91
    %p100 = scmp.eq.s32.totalorder %s19, 4
    %p101 = por %p99, %p100
    %p102 = scmp.ne.s32.totalorder %s91, %s92
    %p103 = scmp.eq.s32.totalorder %s19, 0
    %p104 = por %p102, %p103
    %p105 = scmp.ne.s32.totalorder %s91, %s92
    %p106 = scmp.eq.s32.totalorder %s20, 4
    %p107 = por %p105, %p106
    %p109 = scmp.ne.s32.totalorder %s92, %s108
    %p110 = scmp.eq.s32.totalorder %s20, 0
    %p111 = por %p109, %p110
    %s112 = ssub.s32 %s22, %s29
    %p113 = scmp.eq.s32.totalorder %s112, 0
    %s115 = sadd.s32 %s114, 1
    %s116 = scalar_select %p113, %s114, %s115
    %p119 = pneg %p113
    %p120 = scmp.eq.s32.totalorder %s14, 4
    %p121 = por %p119, %p120
    %p122 = scmp.ne.s32.totalorder %s114, %s117
    %p123 = scmp.eq.s32.totalorder %s14, 0
    %p124 = por %p122, %p123
    %p125 = scmp.ne.s32.totalorder %s114, %s117
    %p126 = scmp.eq.s32.totalorder %s19, 4
    %p127 = por %p125, %p126
    %p128 = scmp.ne.s32.totalorder %s117, %s118
    %p129 = scmp.eq.s32.totalorder %s19, 0
    %p130 = por %p128, %p129
    %p131 = scmp.ne.s32.totalorder %s117, %s118
    %p132 = scmp.eq.s32.totalorder %s20, 4
    %p133 = por %p131, %p132
    %p135 = scmp.ne.s32.totalorder %s118, %s134
    %p136 = scmp.eq.s32.totalorder %s20, 0
    %p137 = por %p135, %p136
    %s139 = sadd.s32 %s138, 1
    %p142 = scmp.eq.s32.totalorder %s14, 4
    %p143 = scmp.ne.s32.totalorder %s138, %s140
    %p144 = scmp.eq.s32.totalorder %s14, 0
    %p145 = por %p143, %p144
    %p146 = scmp.ne.s32.totalorder %s138, %s140
    %p147 = scmp.eq.s32.totalorder %s19, 4
    %p148 = por %p146, %p147
    %p149 = scmp.ne.s32.totalorder %s140, %s141
    %p150 = scmp.eq.s32.totalorder %s19, 0
    %p151 = por %p149, %p150
    %p152 = scmp.ne.s32.totalorder %s140, %s141
    %p153 = scmp.eq.s32.totalorder %s20, 4
    %p154 = por %p152, %p153
    %p156 = scmp.ne.s32.totalorder %s141, %s155
    %p157 = scmp.eq.s32.totalorder %s20, 0
    %p158 = por %p156, %p157
    %s160 = sadd.s32 %s159, 1
    %p163 = scmp.eq.s32.totalorder %s14, 4
    %p164 = scmp.ne.s32.totalorder %s159, %s161
    %p165 = scmp.eq.s32.totalorder %s14, 0
    %p166 = por %p164, %p165
    %p167 = scmp.ne.s32.totalorder %s159, %s161
    %p168 = scmp.eq.s32.totalorder %s19, 4
    %p169 = por %p167, %p168
    %p170 = scmp.ne.s32.totalorder %s161, %s162
    %p171 = scmp.eq.s32.totalorder %s19, 0
    %p172 = por %p170, %p171
    %p173 = scmp.ne.s32.totalorder %s161, %s162
    %p174 = scmp.eq.s32.totalorder %s20, 4
    %p175 = por %p173, %p174
    %p177 = scmp.ne.s32.totalorder %s162, %s176
    %p178 = scmp.eq.s32.totalorder %s20, 0
    %p179 = por %p177, %p178
    %s181 = sadd.s32 %s180, 1
    %p184 = scmp.eq.s32.totalorder %s14, 4
    %p185 = scmp.ne.s32.totalorder %s180, %s182
    %p186 = scmp.eq.s32.totalorder %s14, 0
    %p187 = por %p185, %p186
    %p188 = scmp.ne.s32.totalorder %s180, %s182
    %p189 = scmp.eq.s32.totalorder %s19, 4
    %p190 = por %p188, %p189
    %p191 = scmp.ne.s32.totalorder %s182, %s183
    %p192 = scmp.eq.s32.totalorder %s19, 0
    %p193 = por %p191, %p192
    %p194 = scmp.ne.s32.totalorder %s182, %s183
    %p195 = scmp.eq.s32.totalorder %s20, 4
    %p196 = por %p194, %p195
    %p198 = scmp.ne.s32.totalorder %s183, %s197
    %p199 = scmp.eq.s32.totalorder %s20, 0
    %p200 = por %p198, %p199
    %s202 = sadd.s32 %s201, 1
    %p205 = scmp.eq.s32.totalorder %s14, 4
    %p206 = scmp.ne.s32.totalorder %s201, %s203
    %p207 = scmp.eq.s32.totalorder %s14, 0
    %p208 = por %p206, %p207
    %p209 = scmp.ne.s32.totalorder %s201, %s203
    %p210 = scmp.eq.s32.totalorder %s19, 4
    %p211 = por %p209, %p210
    %p212 = scmp.ne.s32.totalorder %s203, %s204
    %p213 = scmp.eq.s32.totalorder %s19, 0
    %p214 = por %p212, %p213
    %p215 = scmp.ne.s32.totalorder %s203, %s204
    %p216 = scmp.eq.s32.totalorder %s20, 4
    %p217 = por %p215, %p216
    %p219 = scmp.ne.s32.totalorder %s204, %s218
    %p220 = scmp.eq.s32.totalorder %s20, 0
    %p221 = por %p219, %p220
    %s222 = ssub.s32 %s21, %s33
    %p223 = scmp.eq.s32.totalorder %s222, 0
    %s225 = sadd.s32 %s224, 1
    %s226 = scalar_select %p223, %s224, %s225
    %p229 = pneg %p223
    %p230 = scmp.eq.s32.totalorder %s14, 4
    %p231 = por %p229, %p230
    %p232 = scmp.ne.s32.totalorder %s224, %s227
    %p233 = scmp.eq.s32.totalorder %s14, 0
    %p234 = por %p232, %p233
    %p235 = scmp.ne.s32.totalorder %s224, %s227
    %p236 = scmp.eq.s32.totalorder %s19, 4
    %p237 = por %p235, %p236
    %p238 = scmp.ne.s32.totalorder %s227, %s228
    %p239 = scmp.eq.s32.totalorder %s19, 0
    %p240 = por %p238, %p239
    %p241 = scmp.ne.s32.totalorder %s227, %s228
    %p242 = scmp.eq.s32.totalorder %s20, 4
    %p243 = por %p241, %p242
    %p245 = scmp.ne.s32.totalorder %s228, %s244
    %p246 = scmp.eq.s32.totalorder %s20, 0
    %p247 = por %p245, %p246
    %p248 = scmp.le.s32.totalorder 1, %s14
    %p249 = scmp.lt.s32.totalorder %s14, 6
    %p250 = pnand %p248, %p249
    %p251 = pneg %p250
    // Predicated region
    $region9: #{alphago_forward.2} parent=5 // pred_check
      _
    $region10: #{alphago_forward.2} parent=5 // pred_check_branch
      %253 = sbr.rel (%p250) target = $region12
    $region11: #{alphago_forward.2} parent=5 // pred_region
      %s254 = ssub.s32 %s14, 1
      // Predicated region
      $region13: #{alphago_forward.2} parent=11 // pred_check
        %p255 = pneg %p52
      $region14: #{alphago_forward.2} parent=11 // pred_check_branch
        %257 = sbr.rel (%p255) target = $region16
      $region15: #{alphago_forward.2} parent=11 // pred_region
        %s258 = smul.u32 25, %s23
        %p259 = scmp.lt.s32.totalorder %s258, 24
        %s260 = scalar_select %p259, %s258, 24
        %s261 = smul.addr %s260, 4
        %s262 = scalar_lea.vmem %s0, %s261
        %s263 = smul.u32 25, %s23
      $region16: #{alphago_forward.2} parent=11 // pred_fallthru
        _
      // Predicated region
      $region17: #{alphago_forward.2} parent=11 // pred_check
        %p264 = pneg %p151
      $region18: #{alphago_forward.2} parent=11 // pred_check_branch
        %266 = sbr.rel (%p264) target = $region20
      $region19: #{alphago_forward.2} parent=11 // pred_region
        _
      $region20: #{alphago_forward.2} parent=11 // pred_fallthru
        _
      // Predicated region
      $region21: #{alphago_forward.2} parent=11 // pred_check
        %p267 = pneg %p172
      $region22: #{alphago_forward.2} parent=11 // pred_check_branch
        %269 = sbr.rel (%p267) target = $region24
      $region23: #{alphago_forward.2} parent=11 // pred_region
        _
      $region24: #{alphago_forward.2} parent=11 // pred_fallthru
        _
      // Predicated region
      $region25: #{alphago_forward.2} parent=11 // pred_check
        %p270 = pneg %p193
      $region26: #{alphago_forward.2} parent=11 // pred_check_branch
        %272 = sbr.rel (%p270) target = $region28
      $region27: #{alphago_forward.2} parent=11 // pred_region
        _
      $region28: #{alphago_forward.2} parent=11 // pred_fallthru
        _
      // Predicated region
      $region29: #{alphago_forward.2} parent=11 // pred_check
        %p273 = pneg %p214
      $region30: #{alphago_forward.2} parent=11 // pred_check_branch
        %275 = sbr.rel (%p273) target = $region32
      $region31: #{alphago_forward.2} parent=11 // pred_region
        _
      $region32: #{alphago_forward.2} parent=11 // pred_fallthru
        _
    $region12: #{alphago_forward.2} parent=5 // pred_fallthru
      _
    %p276 = scmp.lt.s32.totalorder %s14, 5
    // Predicated region
    $region33: #{alphago_forward.2} parent=5 // pred_check
      %p277 = pneg %p276
    $region34: #{alphago_forward.2} parent=5 // pred_check_branch
      %279 = sbr.rel (%p277) target = $region36
    $region35: #{alphago_forward.2} parent=5 // pred_region
      // Predicated region
      $region37: #{alphago_forward.2} parent=35 // pred_check
        %p280 = pneg %p72
      $region38: #{alphago_forward.2} parent=35 // pred_check_branch
        %282 = sbr.rel (%p280) target = $region40
      $region39: #{alphago_forward.2} parent=35 // pred_region
        %s283 = smul.u32 9, %s22
        %p284 = scmp.lt.s32.totalorder %s283, 44
        %s285 = scalar_select %p284, %s283, 44
        %s286 = smul.addr %s285, 4
        %s287 = smul.addr %s286, 4
        %s288 = scalar_lea.vmem %s1, %s287
        %s289 = smul.u32 9, %s22
      $region40: #{alphago_forward.2} parent=35 // pred_fallthru
        _
      // Predicated region
      $region41: #{alphago_forward.2} parent=35 // pred_check
        %p290 = pneg %p98
      $region42: #{alphago_forward.2} parent=35 // pred_check_branch
        %292 = sbr.rel (%p290) target = $region44
      $region43: #{alphago_forward.2} parent=35 // pred_region
        %p293 = scmp.lt.s32.totalorder %s22, 4
        %s294 = scalar_select %p293, %s22, 4
        %s295 = scalar_lea.vmem %s2, %s294
      $region44: #{alphago_forward.2} parent=35 // pred_fallthru
        _
      // Predicated region
      $region45: #{alphago_forward.2} parent=35 // pred_check
        %p296 = pneg %p124
      $region46: #{alphago_forward.2} parent=35 // pred_check_branch
        %298 = sbr.rel (%p296) target = $region48
      $region47: #{alphago_forward.2} parent=35 // pred_region
        %p299 = scmp.lt.s32.totalorder %s22, 4
        %s300 = scalar_select %p299, %s22, 4
        %s301 = scalar_lea.vmem %s3, %s300
      $region48: #{alphago_forward.2} parent=35 // pred_fallthru
        _
    $region36: #{alphago_forward.2} parent=5 // pred_fallthru
      _
    %p302 = scmp.le.s32.totalorder 1, %s14
    %p303 = scmp.lt.s32.totalorder %s14, 6
    %p304 = pnand %p302, %p303
    %p305 = pneg %p304
    // Predicated region
    $region49: #{alphago_forward.2} parent=5 // pred_check
      _
    $region50: #{alphago_forward.2} parent=5 // pred_check_branch
      %307 = sbr.rel (%p304) target = $region52
    $region51: #{alphago_forward.2} parent=5 // pred_region
      %s308 = ssub.s32 %s14, 1
      %s309 = smul.u32 25, %s23
      %p310 = scmp.lt.s32.totalorder %s309, 24
      %s311 = scalar_select %p310, %s309, 24
      %s312 = smul.addr %s311, 4
      %s313 = scalar_lea.vmem %s0, %s312
      %p314 = pneg %p52
      %p315 = pneg %p49
      %s316 = smul.u32 9, %s24
      %p317 = scmp.lt.s32.totalorder %s316, 44
      %s318 = scalar_select %p317, %s316, 44
      %s319 = smul.addr %s318, 4
      %s320 = smul.addr %s319, 4
      %s321 = scalar_lea.vmem %s1, %s320
      %p322 = pneg %p78
      %p323 = pneg %p75
      %p324 = scmp.lt.s32.totalorder %s24, 4
      %s325 = scalar_select %p324, %s24, 4
      %s326 = scalar_lea.vmem %s2, %s325
      %p327 = pneg %p104
      %p328 = pneg %p101
      %p329 = scmp.lt.s32.totalorder %s24, 4
      %s330 = scalar_select %p329, %s24, 4
      %s331 = scalar_lea.vmem %s3, %s330
      %p332 = pneg %p130
      %p333 = pneg %p127
      %p334 = pneg %p151
      %p335 = pneg %p148
      %p336 = pneg %p172
      %p337 = pneg %p169
      %p338 = pneg %p193
      %p339 = pneg %p190
      %p340 = pneg %p214
      %p341 = pneg %p211
      %p342 = pneg %p240
      %p343 = pneg %p237
      %s344 = smul.u32 25, %s23
      %p345 = scmp.lt.s32.totalorder %s344, 24
      %s346 = scalar_select %p345, %s344, 24
      %s347 = smul.addr %s346, 8
      %s348 = scalar_lea.vmem %s8, %s347
      %s349 = smul.u32 25, %s23
      %p350 = scmp.lt.s32.totalorder %s349, 24
      %s351 = scalar_select %p350, %s349, 24
      %s352 = smul.addr %s351, 4
      %s353 = scalar_lea.vmem %s0, %s352
      %s354 = smul.u32 25, %s23
      %s355 = smul.u32 9, %s24
      %p356 = scmp.lt.s32.totalorder %s355, 44
      %s357 = scalar_select %p356, %s355, 44
      %s358 = smul.addr %s357, 4
      %s359 = smul.addr %s358, 4
      %s360 = scalar_lea.vmem %s1, %s359
      %s361 = smul.u32 9, %s24
      %p362 = scmp.lt.s32.totalorder %s24, 4
      %s363 = scalar_select %p362, %s24, 4
      %s364 = scalar_lea.vmem %s2, %s363
      %p365 = scmp.lt.s32.totalorder %s24, 4
      %s366 = scalar_select %p365, %s24, 4
      %s367 = scalar_lea.vmem %s3, %s366
      %s368 = smul.u32 25, %s23
      %p369 = scmp.lt.s32.totalorder %s368, 24
      %s370 = scalar_select %p369, %s368, 24
      %s371 = smul.addr %s370, 8
      %s372 = scalar_lea.vmem %s8, %s371
      %s373 = smul.u32 25, %s23
      %p375 = scmp.eq.s32.totalorder %s24, 0
      // Predicated region
      $region53: #{alphago_forward.2} parent=51 // pred_check
        %p376 = pneg %p375
      $region54: #{alphago_forward.2} parent=51 // pred_check_branch
        %378 = sbr.rel (%p376) target = $region56
      $region55: #{alphago_forward.2} parent=51 // pred_region
        %vm379 = vcmask 257024
        %380 = vst.msk [vmem:[#allocation2] sm:$0xf] %vm379, 0
        %381 = vst.msk [vmem:[#allocation2 + $0x4] sm:$0xf] %vm379, 0
        %382 = vst.msk [vmem:[#allocation2 + $0x8] sm:$0xf] %vm379, 0
        %383 = vst.msk [vmem:[#allocation2 + $0xc] sm:$0xf] %vm379, 0
        %384 = vst.msk [vmem:[#allocation2 + $0x10] sm:$0xf] %vm379, 0
        %385 = vst.msk [vmem:[#allocation2 + $0x14] sm:$0xf] %vm379, 0
        %386 = vst.msk [vmem:[#allocation2 + $0x18] sm:$0xf] %vm379, 0
        %387 = vst.msk [vmem:[#allocation2 + $0x1c] sm:$0xf] %vm379, 0
        %388 = vst.msk [vmem:[#allocation2 + $0x20] sm:$0xf] %vm379, 0
        %389 = vst.msk [vmem:[#allocation2 + $0x24] sm:$0xf] %vm379, 0
        %390 = vst.msk [vmem:[#allocation2 + $0x28] sm:$0xf] %vm379, 0
        %391 = vst.msk [vmem:[#allocation2 + $0x2c] sm:$0xf] %vm379, 0
        %392 = vst.msk [vmem:[#allocation2 + $0x30] sm:$0xf] %vm379, 0
        %393 = vst.msk [vmem:[#allocation2 + $0x34] sm:$0xf] %vm379, 0
        %394 = vst.msk [vmem:[#allocation2 + $0x38] sm:$0xf] %vm379, 0
        %395 = vst.msk [vmem:[#allocation2 + $0x3c] sm:$0xf] %vm379, 0
        %396 = vst.msk [vmem:[#allocation2 + $0x40] sm:$0xf] %vm379, 0
        %397 = vst.msk [vmem:[#allocation2 + $0x44] sm:$0xf] %vm379, 0
        %398 = vst.msk [vmem:[#allocation2 + $0x48] sm:$0xf] %vm379, 0
        %399 = vst.msk [vmem:[#allocation2 + $0x4c] sm:$0xf] %vm379, 0
        %400 = vst.msk [vmem:[#allocation2 + $0x50] sm:$0xf] %vm379, 0
        %401 = vst.msk [vmem:[#allocation2 + $0x54] sm:$0xf] %vm379, 0
        %402 = vst.msk [vmem:[#allocation2 + $0x58] sm:$0xf] %vm379, 0
        %403 = vst.msk [vmem:[#allocation2 + $0x5c] sm:$0xf] %vm379, 0
        %404 = vst.msk [vmem:[#allocation2 + $0x60] sm:$0xf] %vm379, 0
        %405 = vst.msk [vmem:[#allocation2 + $0x64] sm:$0xf] %vm379, 0
        %406 = vst.msk [vmem:[#allocation2 + $0x68] sm:$0xf] %vm379, 0
        %407 = vst.msk [vmem:[#allocation2 + $0x6c] sm:$0xf] %vm379, 0
        %408 = vst.msk [vmem:[#allocation2 + $0x70] sm:$0xf] %vm379, 0
        %v409 = vld [vmem:[%s353] sm:$0xf]
        %v410 = vld [vmem:[%s353 + $0x4] sm:$0xf]
        %v411 = vld [vmem:[%s353 + $0x8] sm:$0xf]
        %v412 = vld [vmem:[%s353 + $0xc] sm:$0xf]
        %v413 = vld [vmem:[%s353 + $0x10] sm:$0xf]
        %v414 = vld [vmem:[%s353 + $0x14] sm:$0xf]
        %v415 = vld [vmem:[%s353 + $0x18] sm:$0xf]
        %v416 = vld [vmem:[%s353 + $0x1c] sm:$0xf]
        %v417 = vld [vmem:[%s353 + $0x20] sm:$0xf]
        %v418 = vld [vmem:[%s353 + $0x24] sm:$0xf]
        %v419 = vld [vmem:[%s353 + $0x28] sm:$0xf]
        %v420 = vld [vmem:[%s353 + $0x2c] sm:$0xf]
        %v421 = vld [vmem:[%s353 + $0x30] sm:$0xf]
        %v422 = vld [vmem:[%s353 + $0x34] sm:$0xf]
        %v423 = vld [vmem:[%s353 + $0x38] sm:$0xf]
        %v424 = vld [vmem:[%s353 + $0x3c] sm:$0xf]
        %v425 = vld [vmem:[%s353 + $0x40] sm:$0xf]
        %v426 = vld [vmem:[%s353 + $0x44] sm:$0xf]
        %v427 = vld [vmem:[%s353 + $0x48] sm:$0xf]
        %v428 = vld [vmem:[%s353 + $0x4c] sm:$0xf]
        %v429 = vld [vmem:[%s353 + $0x50] sm:$0xf]
        %v430 = vld [vmem:[%s353 + $0x54] sm:$0xf]
        %v431 = vld [vmem:[%s353 + $0x58] sm:$0xf]
        %v432 = vld [vmem:[%s353 + $0x5c] sm:$0xf]
        %v433 = vld [vmem:[%s353 + $0x60] sm:$0xf]
        %434 = vst.msk [vmem:[#allocation2 + $0x8] sm:$0xf] %vm379, %v409
        %435 = vst.msk [vmem:[#allocation2 + $0xc] sm:$0xf] %vm379, %v410
        %436 = vst.msk [vmem:[#allocation2 + $0x10] sm:$0xf] %vm379, %v411
        %437 = vst.msk [vmem:[#allocation2 + $0x14] sm:$0xf] %vm379, %v412
        %438 = vst.msk [vmem:[#allocation2 + $0x18] sm:$0xf] %vm379, %v413
        %439 = vst.msk [vmem:[#allocation2 + $0x1c] sm:$0xf] %vm379, %v414
        %440 = vst.msk [vmem:[#allocation2 + $0x20] sm:$0xf] %vm379, %v415
        %441 = vst.msk [vmem:[#allocation2 + $0x24] sm:$0xf] %vm379, %v416
        %442 = vst.msk [vmem:[#allocation2 + $0x28] sm:$0xf] %vm379, %v417
        %443 = vst.msk [vmem:[#allocation2 + $0x2c] sm:$0xf] %vm379, %v418
        %444 = vst.msk [vmem:[#allocation2 + $0x30] sm:$0xf] %vm379, %v419
        %445 = vst.msk [vmem:[#allocation2 + $0x34] sm:$0xf] %vm379, %v420
        %446 = vst.msk [vmem:[#allocation2 + $0x38] sm:$0xf] %vm379, %v421
        %447 = vst.msk [vmem:[#allocation2 + $0x3c] sm:$0xf] %vm379, %v422
        %448 = vst.msk [vmem:[#allocation2 + $0x40] sm:$0xf] %vm379, %v423
        %449 = vst.msk [vmem:[#allocation2 + $0x44] sm:$0xf] %vm379, %v424
        %450 = vst.msk [vmem:[#allocation2 + $0x48] sm:$0xf] %vm379, %v425
        %451 = vst.msk [vmem:[#allocation2 + $0x4c] sm:$0xf] %vm379, %v426
        %452 = vst.msk [vmem:[#allocation2 + $0x50] sm:$0xf] %vm379, %v427
        %453 = vst.msk [vmem:[#allocation2 + $0x54] sm:$0xf] %vm379, %v428
        %454 = vst.msk [vmem:[#allocation2 + $0x58] sm:$0xf] %vm379, %v429
        %455 = vst.msk [vmem:[#allocation2 + $0x5c] sm:$0xf] %vm379, %v430
        %456 = vst.msk [vmem:[#allocation2 + $0x60] sm:$0xf] %vm379, %v431
        %457 = vst.msk [vmem:[#allocation2 + $0x64] sm:$0xf] %vm379, %v432
        %458 = vst.msk [vmem:[#allocation2 + $0x68] sm:$0xf] %vm379, %v433
      $region56: #{alphago_forward.2} parent=51 // pred_fallthru
        _
      %v459 = vld [vmem:[#allocation2] sm:$0xc]
      %v460 = vld [vmem:[#allocation2 + $0x4] sm:$0xf]
      %v461 = vld [vmem:[#allocation2 + $0x8] sm:$0xf]
      %v462 = vld [vmem:[#allocation2 + $0xc] sm:$0xf]
      %v463 = vld [vmem:[#allocation2 + $0x10] sm:$0xf]
      %v464 = vld [vmem:[#allocation2 + $0x14] sm:$0xf]
      %v465 = vld [vmem:[#allocation2 + $0x18] sm:$0xf]
      %v466 = vld [vmem:[#allocation2 + $0x1c] sm:$0xf]
      %v467 = vld [vmem:[#allocation2 + $0x20] sm:$0xf]
      %v468 = vld [vmem:[#allocation2 + $0x24] sm:$0xf]
      %v469 = vld [vmem:[#allocation2 + $0x28] sm:$0xf]
      %v470 = vld [vmem:[#allocation2 + $0x2c] sm:$0xf]
      %v471 = vld [vmem:[#allocation2 + $0x30] sm:$0xf]
      %v472 = vld [vmem:[#allocation2 + $0x34] sm:$0xf]
      %v473 = vld [vmem:[#allocation2 + $0x38] sm:$0xf]
      %v474 = vld [vmem:[#allocation2 + $0x3c] sm:$0xf]
      %v475 = vld [vmem:[#allocation2 + $0x40] sm:$0xf]
      %v476 = vld [vmem:[#allocation2 + $0x44] sm:$0xf]
      %v477 = vld [vmem:[#allocation2 + $0x48] sm:$0xf]
      %v478 = vld [vmem:[#allocation2 + $0x4c] sm:$0xf]
      %v479 = vld [vmem:[#allocation2 + $0x50] sm:$0xf]
      %v480 = vld [vmem:[#allocation2 + $0x54] sm:$0xf]
      %v481 = vld [vmem:[#allocation2 + $0x58] sm:$0xf]
      %v482 = vld [vmem:[#allocation2 + $0x5c] sm:$0xf]
      %v483 = vld [vmem:[#allocation2 + $0x60] sm:$0xf]
      %v484 = vld [vmem:[#allocation2 + $0x64] sm:$0x7]
      %v485 = vld [vmem:[%s360] sm:$0xf]
      %v486 = vld [vmem:[%s360 + $0x4] sm:$0xf]
      %v487 = vld [vmem:[%s360 + $0x8] sm:$0xf]
      %v488 = vld [vmem:[%s360 + $0xc] sm:$0xf]
      %v489 = vld [vmem:[#allocation2] sm:$0x8]
      %s490 = scalar_lea.vmem %s360, 16
      %v491 = vld [vmem:[%s490] sm:$0xf]
      %v492 = vld [vmem:[%s490 + $0x4] sm:$0xf]
      %v493 = vld [vmem:[%s490 + $0x8] sm:$0xf]
      %v494 = vld [vmem:[%s490 + $0xc] sm:$0xf]
      %v521 = vunpack.c.l.b16 %v489
      %v522 = vunpack.c.l.b16 %v460
      %v523 = vunpack.c.l.b16 %v461
      %v524 = vunpack.c.l.b16 %v462
      %v525 = vunpack.c.l.b16 %v463
      %v526 = vunpack.c.l.b16 %v464
      %v527 = vunpack.c.l.b16 %v465
      %v528 = vunpack.c.l.b16 %v466
      %v529 = vunpack.c.l.b16 %v467
      %v530 = vunpack.c.l.b16 %v468
      %v531 = vunpack.c.l.b16 %v469
      %v532 = vunpack.c.l.b16 %v470
      %v533 = vunpack.c.l.b16 %v471
      %v534 = vunpack.c.l.b16 %v472
      %v535 = vunpack.c.l.b16 %v473
      %v536 = vunpack.c.l.b16 %v474
      %v537 = vunpack.c.l.b16 %v475
      %v538 = vunpack.c.l.b16 %v476
      %v539 = vunpack.c.l.b16 %v477
      %v540 = vunpack.c.l.b16 %v478
      %v541 = vunpack.c.l.b16 %v479
      %v542 = vunpack.c.l.b16 %v480
      %v543 = vunpack.c.l.b16 %v481
      %v544 = vunpack.c.l.b16 %v482
      %v545 = vunpack.c.l.b16 %v483
      %v546 = vunpack.c.l.b16 %v484
      %v547 = vpack.c.b16 %v522, %v521
      %v548 = vpack.c.b16 %v524, %v523
      %v549 = vpack.c.b16 %v526, %v525
      %v550 = vpack.c.b16 %v528, %v527
      %v551 = vpack.c.b16 %v530, %v529
      %v552 = vpack.c.b16 %v532, %v531
      %v553 = vpack.c.b16 %v534, %v533
      %v554 = vpack.c.b16 %v536, %v535
      %v555 = vpack.c.b16 %v538, %v537
      %v556 = vpack.c.b16 %v540, %v539
      %v557 = vpack.c.b16 %v542, %v541
      %v558 = vpack.c.b16 %v544, %v543
      %v559 = vpack.c.b16 %v546, %v545
      %vm560 = vcmask 1044480
      %v561 = vrot.slane %v547, 3
      %v562 = vrot.slane %v548, 3
      %v563 = vsel %vm560, %v561, %v562
      %v564 = vrot.slane %v549, 3
      %v565 = vsel %vm560, %v562, %v564
      %v566 = vrot.slane %v550, 3
      %v567 = vsel %vm560, %v564, %v566
      %v568 = vrot.slane %v551, 3
      %v569 = vsel %vm560, %v566, %v568
      %v570 = vrot.slane %v552, 3
      %v571 = vsel %vm560, %v568, %v570
      %v572 = vrot.slane %v553, 3
      %v573 = vsel %vm560, %v570, %v572
      %v574 = vrot.slane %v554, 3
      %v575 = vsel %vm560, %v572, %v574
      %v576 = vrot.slane %v555, 3
      %v577 = vsel %vm560, %v574, %v576
      %v578 = vrot.slane %v556, 3
      %v579 = vsel %vm560, %v576, %v578
      %v580 = vrot.slane %v557, 3
      %v581 = vsel %vm560, %v578, %v580
      %v582 = vrot.slane %v558, 3
      %v583 = vsel %vm560, %v580, %v582
      %v584 = vrot.slane %v559, 3
      %v585 = vsel %vm560, %v582, %v584
      %v590 = vunpack.c.l.b16 %v491
      %v591 = vunpack.c.l.b16 %v492
      %v592 = vunpack.c.l.b16 %v493
      %v593 = vunpack.c.l.b16 %v494
      %v594 = vpack.c.b16 %v591, %v590
      %v595 = vpack.c.b16 %v593, %v592
      %vm598 = vcmask 261120
      %v600 = vsel %vm598, %v563, 0
      %v603 = vsel %vm598, %v565, 0
      %v606 = vsel %vm598, %v567, 0
      %v609 = vsel %vm598, %v569, 0
      %v612 = vsel %vm598, %v571, 0
      %v615 = vsel %vm598, %v573, 0
      %v618 = vsel %vm598, %v575, 0
      %v621 = vsel %vm598, %v577, 0
      %v624 = vsel %vm598, %v579, 0
      %v627 = vsel %vm598, %v581, 0
      %v630 = vsel %vm598, %v583, 0
      %v633 = vsel %vm598, %v585, 0
      %v636 = vsel %vm598, %v584, 0
      %638 = vmatpush.bf16.msra.mxu0 0
      %639 = vmatpush.bf16.msra.mxu0 0
      %640 = vmatpush.bf16.msra.mxu0 0
      %641 = vmatpush.bf16.msra.mxu0 0
      %642 = vmatpush.bf16.msra.mxu0 0
      %643 = vmatpush.bf16.msra.mxu0 0
      %644 = vmatpush.bf16.msra.mxu0 %v595
      %645 = vmatpush.bf16.msra.mxu0 %v594
      %646 = vmatmul.bf16.gmra.mxu0 %v600
      %v647 = vpop.f32.mrf.mxu0
      %v648 = vadd.f32 0.0, %v647
      %v649 = vpop.f32.mrf.mxu0
      %v650 = vadd.f32 0.0, %v649
      %651 = vmatmul.bf16.gmra.mxu0 %v603
      %v652 = vpop.f32.mrf.mxu0
      %v653 = vadd.f32 0.0, %v652
      %v654 = vpop.f32.mrf.mxu0
      %v655 = vadd.f32 0.0, %v654
      %656 = vmatmul.bf16.gmra.mxu0 %v606
      %v657 = vpop.f32.mrf.mxu0
      %v658 = vadd.f32 0.0, %v657
      %v659 = vpop.f32.mrf.mxu0
      %v660 = vadd.f32 0.0, %v659
      %661 = vmatmul.bf16.gmra.mxu0 %v609
      %v662 = vpop.f32.mrf.mxu0
      %v663 = vadd.f32 0.0, %v662
      %v664 = vpop.f32.mrf.mxu0
      %v665 = vadd.f32 0.0, %v664
      %666 = vmatmul.bf16.gmra.mxu0 %v612
      %v667 = vpop.f32.mrf.mxu0
      %v668 = vadd.f32 0.0, %v667
      %v669 = vpop.f32.mrf.mxu0
      %v670 = vadd.f32 0.0, %v669
      %671 = vmatmul.bf16.gmra.mxu0 %v615
      %v672 = vpop.f32.mrf.mxu0
      %v673 = vadd.f32 0.0, %v672
      %v674 = vpop.f32.mrf.mxu0
      %v675 = vadd.f32 0.0, %v674
      %676 = vmatmul.bf16.gmra.mxu0 %v618
      %v677 = vpop.f32.mrf.mxu0
      %v678 = vadd.f32 0.0, %v677
      %v679 = vpop.f32.mrf.mxu0
      %v680 = vadd.f32 0.0, %v679
      %681 = vmatmul.bf16.gmra.mxu0 %v621
      %v682 = vpop.f32.mrf.mxu0
      %v683 = vadd.f32 0.0, %v682
      %v684 = vpop.f32.mrf.mxu0
      %v685 = vadd.f32 0.0, %v684
      %686 = vmatmul.bf16.gmra.mxu0 %v624
      %v687 = vpop.f32.mrf.mxu0
      %v688 = vadd.f32 0.0, %v687
      %v689 = vpop.f32.mrf.mxu0
      %v690 = vadd.f32 0.0, %v689
      %691 = vmatmul.bf16.gmra.mxu0 %v627
      %v692 = vpop.f32.mrf.mxu0
      %v693 = vadd.f32 0.0, %v692
      %v694 = vpop.f32.mrf.mxu0
      %v695 = vadd.f32 0.0, %v694
      %696 = vmatmul.bf16.gmra.mxu0 %v630
      %v697 = vpop.f32.mrf.mxu0
      %v698 = vadd.f32 0.0, %v697
      %v699 = vpop.f32.mrf.mxu0
      %v700 = vadd.f32 0.0, %v699
      %701 = vmatmul.bf16.gmra.mxu0 %v633
      %v702 = vpop.f32.mrf.mxu0
      %v703 = vadd.f32 0.0, %v702
      %v704 = vpop.f32.mrf.mxu0
      %v705 = vadd.f32 0.0, %v704
      %706 = vmatmul.bf16.gmra.mxu0 %v636
      %v707 = vpop.f32.mrf.mxu0
      %v708 = vadd.f32 0.0, %v707
      %v709 = vpop.f32.mrf.mxu0
      %710 = vdwg.mxu0
      %v712 = vunpack.c.l.b16 %v459
      %v713 = vpack.c.b16 %v522, %v712
      %vm714 = vsmask.f32 5376
      %v716 = vshrl.u32 %v713, 16
      %v718 = vrot.slane %v716, 2
      %v719 = vshll.u32 %v713, 16
      %v721 = vrot.slane %v719, 3
      %v722 = vor.u32 %v718, %v721
      %v724 = vshrl.u32 %v548, 16
      %v726 = vrot.slane %v724, 2
      %v727 = vshll.u32 %v548, 16
      %v729 = vrot.slane %v727, 3
      %v730 = vor.u32 %v726, %v729
      %v731 = vsel %vm714, %v722, %v730
      %v733 = vshrl.u32 %v549, 16
      %v735 = vrot.slane %v733, 2
      %v736 = vshll.u32 %v549, 16
      %v738 = vrot.slane %v736, 3
      %v739 = vor.u32 %v735, %v738
      %v740 = vsel %vm714, %v730, %v739
      %v742 = vshrl.u32 %v550, 16
      %v744 = vrot.slane %v742, 2
      %v745 = vshll.u32 %v550, 16
      %v747 = vrot.slane %v745, 3
      %v748 = vor.u32 %v744, %v747
      %v749 = vsel %vm714, %v739, %v748
      %v751 = vshrl.u32 %v551, 16
      %v753 = vrot.slane %v751, 2
      %v754 = vshll.u32 %v551, 16
      %v756 = vrot.slane %v754, 3
      %v757 = vor.u32 %v753, %v756
      %v758 = vsel %vm714, %v748, %v757
      %v760 = vshrl.u32 %v552, 16
      %v762 = vrot.slane %v760, 2
      %v763 = vshll.u32 %v552, 16
      %v765 = vrot.slane %v763, 3
      %v766 = vor.u32 %v762, %v765
      %v767 = vsel %vm714, %v757, %v766
      %v769 = vshrl.u32 %v553, 16
      %v771 = vrot.slane %v769, 2
      %v772 = vshll.u32 %v553, 16
      %v774 = vrot.slane %v772, 3
      %v775 = vor.u32 %v771, %v774
      %v776 = vsel %vm714, %v766, %v775
      %v778 = vshrl.u32 %v554, 16
      %v780 = vrot.slane %v778, 2
      %v781 = vshll.u32 %v554, 16
      %v783 = vrot.slane %v781, 3
      %v784 = vor.u32 %v780, %v783
      %v785 = vsel %vm714, %v775, %v784
      %v787 = vshrl.u32 %v555, 16
      %v789 = vrot.slane %v787, 2
      %v790 = vshll.u32 %v555, 16
      %v792 = vrot.slane %v790, 3
      %v793 = vor.u32 %v789, %v792
      %v794 = vsel %vm714, %v784, %v793
      %v796 = vshrl.u32 %v556, 16
      %v798 = vrot.slane %v796, 2
      %v799 = vshll.u32 %v556, 16
      %v801 = vrot.slane %v799, 3
      %v802 = vor.u32 %v798, %v801
      %v803 = vsel %vm714, %v793, %v802
      %v805 = vshrl.u32 %v557, 16
      %v807 = vrot.slane %v805, 2
      %v808 = vshll.u32 %v557, 16
      %v810 = vrot.slane %v808, 3
      %v811 = vor.u32 %v807, %v810
      %v812 = vsel %vm714, %v802, %v811
      %v814 = vshrl.u32 %v558, 16
      %v816 = vrot.slane %v814, 2
      %v817 = vshll.u32 %v558, 16
      %v819 = vrot.slane %v817, 3
      %v820 = vor.u32 %v816, %v819
      %v821 = vsel %vm714, %v811, %v820
      %v823 = vshrl.u32 %v559, 16
      %v825 = vrot.slane %v823, 2
      %v826 = vshll.u32 %v559, 16
      %v828 = vrot.slane %v826, 3
      %v829 = vor.u32 %v825, %v828
      %v830 = vsel %vm714, %v820, %v829
      %v835 = vunpack.c.l.b16 %v485
      %v836 = vunpack.c.l.b16 %v486
      %v837 = vunpack.c.l.b16 %v487
      %v838 = vunpack.c.l.b16 %v488
      %v839 = vpack.c.b16 %v836, %v835
      %v840 = vpack.c.b16 %v838, %v837
      %v844 = vsel %vm598, %v731, 0
      %v847 = vsel %vm598, %v740, 0
      %v850 = vsel %vm598, %v749, 0
      %v853 = vsel %vm598, %v758, 0
      %v856 = vsel %vm598, %v767, 0
      %v859 = vsel %vm598, %v776, 0
      %v862 = vsel %vm598, %v785, 0
      %v865 = vsel %vm598, %v794, 0
      %v868 = vsel %vm598, %v803, 0
      %v871 = vsel %vm598, %v812, 0
      %v874 = vsel %vm598, %v821, 0
      %v877 = vsel %vm598, %v830, 0
      %v880 = vsel %vm598, %v829, 0
      %882 = vmatpush.bf16.msra.mxu0 0
      %883 = vmatpush.bf16.msra.mxu0 0
      %884 = vmatpush.bf16.msra.mxu0 0
      %885 = vmatpush.bf16.msra.mxu0 0
      %886 = vmatpush.bf16.msra.mxu0 0
      %887 = vmatpush.bf16.msra.mxu0 0
      %888 = vmatpush.bf16.msra.mxu0 %v840
      %889 = vmatpush.bf16.msra.mxu0 %v839
      %890 = vmatmul.bf16.gmra.mxu0 %v844
      %v891 = vpop.f32.mrf.mxu0
      %v892 = vadd.f32 %v648, %v891
      %v893 = vpop.f32.mrf.mxu0
      %v894 = vadd.f32 %v650, %v893
      %895 = vmatmul.bf16.gmra.mxu0 %v847
      %v896 = vpop.f32.mrf.mxu0
      %v897 = vadd.f32 %v653, %v896
      %v898 = vpop.f32.mrf.mxu0
      %v899 = vadd.f32 %v655, %v898
      %900 = vmatmul.bf16.gmra.mxu0 %v850
      %v901 = vpop.f32.mrf.mxu0
      %v902 = vadd.f32 %v658, %v901
      %v903 = vpop.f32.mrf.mxu0
      %v904 = vadd.f32 %v660, %v903
      %905 = vmatmul.bf16.gmra.mxu0 %v853
      %v906 = vpop.f32.mrf.mxu0
      %v907 = vadd.f32 %v663, %v906
      %v908 = vpop.f32.mrf.mxu0
      %v909 = vadd.f32 %v665, %v908
      %910 = vmatmul.bf16.gmra.mxu0 %v856
      %v911 = vpop.f32.mrf.mxu0
      %v912 = vadd.f32 %v668, %v911
      %v913 = vpop.f32.mrf.mxu0
      %v914 = vadd.f32 %v670, %v913
      %915 = vmatmul.bf16.gmra.mxu0 %v859
      %v916 = vpop.f32.mrf.mxu0
      %v917 = vadd.f32 %v673, %v916
      %v918 = vpop.f32.mrf.mxu0
      %v919 = vadd.f32 %v675, %v918
      %920 = vmatmul.bf16.gmra.mxu0 %v862
      %v921 = vpop.f32.mrf.mxu0
      %v922 = vadd.f32 %v678, %v921
      %v923 = vpop.f32.mrf.mxu0
      %v924 = vadd.f32 %v680, %v923
      %925 = vmatmul.bf16.gmra.mxu0 %v865
      %v926 = vpop.f32.mrf.mxu0
      %v927 = vadd.f32 %v683, %v926
      %v928 = vpop.f32.mrf.mxu0
      %v929 = vadd.f32 %v685, %v928
      %930 = vmatmul.bf16.gmra.mxu0 %v868
      %v931 = vpop.f32.mrf.mxu0
      %v932 = vadd.f32 %v688, %v931
      %v933 = vpop.f32.mrf.mxu0
      %v934 = vadd.f32 %v690, %v933
      %935 = vmatmul.bf16.gmra.mxu0 %v871
      %v936 = vpop.f32.mrf.mxu0
      %v937 = vadd.f32 %v693, %v936
      %v938 = vpop.f32.mrf.mxu0
      %v939 = vadd.f32 %v695, %v938
      %940 = vmatmul.bf16.gmra.mxu0 %v874
      %v941 = vpop.f32.mrf.mxu0
      %v942 = vadd.f32 %v698, %v941
      %v943 = vpop.f32.mrf.mxu0
      %v944 = vadd.f32 %v700, %v943
      %945 = vmatmul.bf16.gmra.mxu0 %v877
      %v946 = vpop.f32.mrf.mxu0
      %v947 = vadd.f32 %v703, %v946
      %v948 = vpop.f32.mrf.mxu0
      %v949 = vadd.f32 %v705, %v948
      %950 = vmatmul.bf16.gmra.mxu0 %v880
      %v951 = vpop.f32.mrf.mxu0
      %v952 = vadd.f32 %v708, %v951
      %v953 = vpop.f32.mrf.mxu0
      %954 = vdwg.mxu0
      %v955 = vld [vmem:[#allocation2 + $0x64] sm:$0xf]
      %s956 = scalar_lea.vmem %s360, 32
      %v957 = vld [vmem:[%s956] sm:$0xf]
      %v958 = vld [vmem:[%s956 + $0x4] sm:$0xf]
      %v959 = vld [vmem:[%s956 + $0x8] sm:$0xf]
      %v960 = vld [vmem:[%s956 + $0xc] sm:$0xf]
      %v962 = vunpack.c.l.b16 %v955
      %v963 = vpack.c.b16 %v962, %v545
      %vm964 = vsmask.f32 4352
      %v966 = vshrl.u32 %v547, 16
      %v968 = vrot.slane %v966, 3
      %v969 = vshll.u32 %v547, 16
      %v971 = vrot.slane %v969, 4
      %v972 = vor.u32 %v968, %v971
      %v973 = vrot.slane %v724, 3
      %v974 = vrot.slane %v727, 4
      %v975 = vor.u32 %v973, %v974
      %v976 = vsel %vm964, %v972, %v975
      %v977 = vrot.slane %v733, 3
      %v978 = vrot.slane %v736, 4
      %v979 = vor.u32 %v977, %v978
      %v980 = vsel %vm964, %v975, %v979
      %v981 = vrot.slane %v742, 3
      %v982 = vrot.slane %v745, 4
      %v983 = vor.u32 %v981, %v982
      %v984 = vsel %vm964, %v979, %v983
      %v985 = vrot.slane %v751, 3
      %v986 = vrot.slane %v754, 4
      %v987 = vor.u32 %v985, %v986
      %v988 = vsel %vm964, %v983, %v987
      %v989 = vrot.slane %v760, 3
      %v990 = vrot.slane %v763, 4
      %v991 = vor.u32 %v989, %v990
      %v992 = vsel %vm964, %v987, %v991
      %v993 = vrot.slane %v769, 3
      %v994 = vrot.slane %v772, 4
      %v995 = vor.u32 %v993, %v994
      %v996 = vsel %vm964, %v991, %v995
      %v997 = vrot.slane %v778, 3
      %v998 = vrot.slane %v781, 4
      %v999 = vor.u32 %v997, %v998
      %v1000 = vsel %vm964, %v995, %v999
      %v1001 = vrot.slane %v787, 3
      %v1002 = vrot.slane %v790, 4
      %v1003 = vor.u32 %v1001, %v1002
      %v1004 = vsel %vm964, %v999, %v1003
      %v1005 = vrot.slane %v796, 3
      %v1006 = vrot.slane %v799, 4
      %v1007 = vor.u32 %v1005, %v1006
      %v1008 = vsel %vm964, %v1003, %v1007
      %v1009 = vrot.slane %v805, 3
      %v1010 = vrot.slane %v808, 4
      %v1011 = vor.u32 %v1009, %v1010
      %v1012 = vsel %vm964, %v1007, %v1011
      %v1013 = vrot.slane %v814, 3
      %v1014 = vrot.slane %v817, 4
      %v1015 = vor.u32 %v1013, %v1014
      %v1016 = vsel %vm964, %v1011, %v1015
      %v1018 = vshrl.u32 %v963, 16
      %v1020 = vrot.slane %v1018, 3
      %v1021 = vshll.u32 %v963, 16
      %v1023 = vrot.slane %v1021, 4
      %v1024 = vor.u32 %v1020, %v1023
      %v1025 = vsel %vm964, %v1015, %v1024
      %v1030 = vunpack.c.l.b16 %v957
      %v1031 = vunpack.c.l.b16 %v958
      %v1032 = vunpack.c.l.b16 %v959
      %v1033 = vunpack.c.l.b16 %v960
      %v1034 = vpack.c.b16 %v1031, %v1030
      %v1035 = vpack.c.b16 %v1033, %v1032
      %v1039 = vsel %vm598, %v976, 0
      %v1042 = vsel %vm598, %v980, 0
      %v1045 = vsel %vm598, %v984, 0
      %v1048 = vsel %vm598, %v988, 0
      %v1051 = vsel %vm598, %v992, 0
      %v1054 = vsel %vm598, %v996, 0
      %v1057 = vsel %vm598, %v1000, 0
      %v1060 = vsel %vm598, %v1004, 0
      %v1063 = vsel %vm598, %v1008, 0
      %v1066 = vsel %vm598, %v1012, 0
      %v1069 = vsel %vm598, %v1016, 0
      %v1072 = vsel %vm598, %v1025, 0
      %v1075 = vsel %vm598, %v1024, 0
      %1077 = vmatpush.bf16.msra.mxu0 0
      %1078 = vmatpush.bf16.msra.mxu0 0
      %1079 = vmatpush.bf16.msra.mxu0 0
      %1080 = vmatpush.bf16.msra.mxu0 0
      %1081 = vmatpush.bf16.msra.mxu0 0
      %1082 = vmatpush.bf16.msra.mxu0 0
      %1083 = vmatpush.bf16.msra.mxu0 %v1035
      %1084 = vmatpush.bf16.msra.mxu0 %v1034
      %1085 = vmatmul.bf16.gmra.mxu0 %v1039
      %v1086 = vpop.f32.mrf.mxu0
      %v1087 = vadd.f32 0.0, %v1086
      %v1088 = vpop.f32.mrf.mxu0
      %v1089 = vadd.f32 0.0, %v1088
      %1090 = vmatmul.bf16.gmra.mxu0 %v1042
      %v1091 = vpop.f32.mrf.mxu0
      %v1092 = vadd.f32 0.0, %v1091
      %v1093 = vpop.f32.mrf.mxu0
      %v1094 = vadd.f32 0.0, %v1093
      %1095 = vmatmul.bf16.gmra.mxu0 %v1045
      %v1096 = vpop.f32.mrf.mxu0
      %v1097 = vadd.f32 0.0, %v1096
      %v1098 = vpop.f32.mrf.mxu0
      %v1099 = vadd.f32 0.0, %v1098
      %1100 = vmatmul.bf16.gmra.mxu0 %v1048
      %v1101 = vpop.f32.mrf.mxu0
      %v1102 = vadd.f32 0.0, %v1101
      %v1103 = vpop.f32.mrf.mxu0
      %v1104 = vadd.f32 0.0, %v1103
      %1105 = vmatmul.bf16.gmra.mxu0 %v1051
      %v1106 = vpop.f32.mrf.mxu0
      %v1107 = vadd.f32 0.0, %v1106
      %v1108 = vpop.f32.mrf.mxu0
      %v1109 = vadd.f32 0.0, %v1108
      %1110 = vmatmul.bf16.gmra.mxu0 %v1054
      %v1111 = vpop.f32.mrf.mxu0
      %v1112 = vadd.f32 0.0, %v1111
      %v1113 = vpop.f32.mrf.mxu0
      %v1114 = vadd.f32 0.0, %v1113
      %1115 = vmatmul.bf16.gmra.mxu0 %v1057
      %v1116 = vpop.f32.mrf.mxu0
      %v1117 = vadd.f32 0.0, %v1116
      %v1118 = vpop.f32.mrf.mxu0
      %v1119 = vadd.f32 0.0, %v1118
      %1120 = vmatmul.bf16.gmra.mxu0 %v1060
      %v1121 = vpop.f32.mrf.mxu0
      %v1122 = vadd.f32 0.0, %v1121
      %v1123 = vpop.f32.mrf.mxu0
      %v1124 = vadd.f32 0.0, %v1123
      %1125 = vmatmul.bf16.gmra.mxu0 %v1063
      %v1126 = vpop.f32.mrf.mxu0
      %v1127 = vadd.f32 0.0, %v1126
      %v1128 = vpop.f32.mrf.mxu0
      %v1129 = vadd.f32 0.0, %v1128
      %1130 = vmatmul.bf16.gmra.mxu0 %v1066
      %v1131 = vpop.f32.mrf.mxu0
      %v1132 = vadd.f32 0.0, %v1131
      %v1133 = vpop.f32.mrf.mxu0
      %v1134 = vadd.f32 0.0, %v1133
      %1135 = vmatmul.bf16.gmra.mxu0 %v1069
      %v1136 = vpop.f32.mrf.mxu0
      %v1137 = vadd.f32 0.0, %v1136
      %v1138 = vpop.f32.mrf.mxu0
      %v1139 = vadd.f32 0.0, %v1138
      %1140 = vmatmul.bf16.gmra.mxu0 %v1072
      %v1141 = vpop.f32.mrf.mxu0
      %v1142 = vadd.f32 0.0, %v1141
      %v1143 = vpop.f32.mrf.mxu0
      %v1144 = vadd.f32 0.0, %v1143
      %1145 = vmatmul.bf16.gmra.mxu0 %v1075
      %v1146 = vpop.f32.mrf.mxu0
      %v1147 = vadd.f32 0.0, %v1146
      %v1148 = vpop.f32.mrf.mxu0
      %1149 = vdwg.mxu0
      %v1150 = vadd.f32 %v892, %v1087
      %v1151 = vadd.f32 %v894, %v1089
      %v1152 = vadd.f32 %v897, %v1092
      %v1153 = vadd.f32 %v899, %v1094
      %v1154 = vadd.f32 %v902, %v1097
      %v1155 = vadd.f32 %v904, %v1099
      %v1156 = vadd.f32 %v907, %v1102
      %v1157 = vadd.f32 %v909, %v1104
      %v1158 = vadd.f32 %v912, %v1107
      %v1159 = vadd.f32 %v914, %v1109
      %v1160 = vadd.f32 %v917, %v1112
      %v1161 = vadd.f32 %v919, %v1114
      %v1162 = vadd.f32 %v922, %v1117
      %v1163 = vadd.f32 %v924, %v1119
      %v1164 = vadd.f32 %v927, %v1122
      %v1165 = vadd.f32 %v929, %v1124
      %v1166 = vadd.f32 %v932, %v1127
      %v1167 = vadd.f32 %v934, %v1129
      %v1168 = vadd.f32 %v937, %v1132
      %v1169 = vadd.f32 %v939, %v1134
      %v1170 = vadd.f32 %v942, %v1137
      %v1171 = vadd.f32 %v944, %v1139
      %v1172 = vadd.f32 %v947, %v1142
      %v1173 = vadd.f32 %v949, %v1144
      %v1174 = vadd.f32 %v952, %v1147
      %v1175 = vld [vmem:[#allocation2 + $0x4] sm:$0x8]
      %v1176 = vld [vmem:[#allocation2 + $0x8] sm:$0xf]
      %v1177 = vld [vmem:[#allocation2 + $0xc] sm:$0xf]
      %v1178 = vld [vmem:[#allocation2 + $0x10] sm:$0xf]
      %v1179 = vld [vmem:[#allocation2 + $0x14] sm:$0xf]
      %v1180 = vld [vmem:[#allocation2 + $0x18] sm:$0xf]
      %v1181 = vld [vmem:[#allocation2 + $0x1c] sm:$0xf]
      %v1182 = vld [vmem:[#allocation2 + $0x20] sm:$0xf]
      %v1183 = vld [vmem:[#allocation2 + $0x24] sm:$0xf]
      %v1184 = vld [vmem:[#allocation2 + $0x28] sm:$0xf]
      %v1185 = vld [vmem:[#allocation2 + $0x2c] sm:$0xf]
      %v1186 = vld [vmem:[#allocation2 + $0x30] sm:$0xf]
      %v1187 = vld [vmem:[#allocation2 + $0x34] sm:$0xf]
      %v1188 = vld [vmem:[#allocation2 + $0x38] sm:$0xf]
      %v1189 = vld [vmem:[#allocation2 + $0x3c] sm:$0xf]
      %v1190 = vld [vmem:[#allocation2 + $0x40] sm:$0xf]
      %v1191 = vld [vmem:[#allocation2 + $0x44] sm:$0xf]
      %v1192 = vld [vmem:[#allocation2 + $0x48] sm:$0xf]
      %v1193 = vld [vmem:[#allocation2 + $0x4c] sm:$0xf]
      %v1194 = vld [vmem:[#allocation2 + $0x50] sm:$0xf]
      %v1195 = vld [vmem:[#allocation2 + $0x54] sm:$0xf]
      %v1196 = vld [vmem:[#allocation2 + $0x58] sm:$0xf]
      %v1197 = vld [vmem:[#allocation2 + $0x5c] sm:$0xf]
      %v1198 = vld [vmem:[#allocation2 + $0x60] sm:$0xf]
      %v1199 = vld [vmem:[#allocation2 + $0x64] sm:$0xf]
      %v1200 = vld [vmem:[#allocation2 + $0x68] sm:$0xf]
      %s1201 = scalar_lea.vmem %s360, 48
      %v1202 = vld [vmem:[%s1201] sm:$0xf]
      %v1203 = vld [vmem:[%s1201 + $0x4] sm:$0xf]
      %v1204 = vld [vmem:[%s1201 + $0x8] sm:$0xf]
      %v1205 = vld [vmem:[%s1201 + $0xc] sm:$0xf]
      %v1232 = vunpack.c.l.b16 %v1175
      %v1233 = vunpack.c.l.b16 %v1176
      %v1234 = vunpack.c.l.b16 %v1177
      %v1235 = vunpack.c.l.b16 %v1178
      %v1236 = vunpack.c.l.b16 %v1179
      %v1237 = vunpack.c.l.b16 %v1180
      %v1238 = vunpack.c.l.b16 %v1181
      %v1239 = vunpack.c.l.b16 %v1182
      %v1240 = vunpack.c.l.b16 %v1183
      %v1241 = vunpack.c.l.b16 %v1184
      %v1242 = vunpack.c.l.b16 %v1185
      %v1243 = vunpack.c.l.b16 %v1186
      %v1244 = vunpack.c.l.b16 %v1187
      %v1245 = vunpack.c.l.b16 %v1188
      %v1246 = vunpack.c.l.b16 %v1189
      %v1247 = vunpack.c.l.b16 %v1190
      %v1248 = vunpack.c.l.b16 %v1191
      %v1249 = vunpack.c.l.b16 %v1192
      %v1250 = vunpack.c.l.b16 %v1193
      %v1251 = vunpack.c.l.b16 %v1194
      %v1252 = vunpack.c.l.b16 %v1195
      %v1253 = vunpack.c.l.b16 %v1196
      %v1254 = vunpack.c.l.b16 %v1197
      %v1255 = vunpack.c.l.b16 %v1198
      %v1256 = vunpack.c.l.b16 %v1199
      %v1257 = vunpack.c.l.b16 %v1200
      %v1258 = vpack.c.b16 %v1233, %v1232
      %v1259 = vpack.c.b16 %v1235, %v1234
      %v1260 = vpack.c.b16 %v1237, %v1236
      %v1261 = vpack.c.b16 %v1239, %v1238
      %v1262 = vpack.c.b16 %v1241, %v1240
      %v1263 = vpack.c.b16 %v1243, %v1242
      %v1264 = vpack.c.b16 %v1245, %v1244
      %v1265 = vpack.c.b16 %v1247, %v1246
      %v1266 = vpack.c.b16 %v1249, %v1248
      %v1267 = vpack.c.b16 %v1251, %v1250
      %v1268 = vpack.c.b16 %v1253, %v1252
      %v1269 = vpack.c.b16 %v1255, %v1254
      %v1270 = vpack.c.b16 %v1257, %v1256
      %v1272 = vshrl.u32 %v1258, 16
      %v1274 = vrot.slane %v1272, 3
      %v1275 = vshll.u32 %v1258, 16
      %v1277 = vrot.slane %v1275, 4
      %v1278 = vor.u32 %v1274, %v1277
      %v1280 = vshrl.u32 %v1259, 16
      %v1282 = vrot.slane %v1280, 3
      %v1283 = vshll.u32 %v1259, 16
      %v1285 = vrot.slane %v1283, 4
      %v1286 = vor.u32 %v1282, %v1285
      %v1287 = vsel %vm964, %v1278, %v1286
      %v1289 = vshrl.u32 %v1260, 16
      %v1291 = vrot.slane %v1289, 3
      %v1292 = vshll.u32 %v1260, 16
      %v1294 = vrot.slane %v1292, 4
      %v1295 = vor.u32 %v1291, %v1294
      %v1296 = vsel %vm964, %v1286, %v1295
      %v1298 = vshrl.u32 %v1261, 16
      %v1300 = vrot.slane %v1298, 3
      %v1301 = vshll.u32 %v1261, 16
      %v1303 = vrot.slane %v1301, 4
      %v1304 = vor.u32 %v1300, %v1303
      %v1305 = vsel %vm964, %v1295, %v1304
      %v1307 = vshrl.u32 %v1262, 16
      %v1309 = vrot.slane %v1307, 3
      %v1310 = vshll.u32 %v1262, 16
      %v1312 = vrot.slane %v1310, 4
      %v1313 = vor.u32 %v1309, %v1312
      %v1314 = vsel %vm964, %v1304, %v1313
      %v1316 = vshrl.u32 %v1263, 16
      %v1318 = vrot.slane %v1316, 3
      %v1319 = vshll.u32 %v1263, 16
      %v1321 = vrot.slane %v1319, 4
      %v1322 = vor.u32 %v1318, %v1321
      %v1323 = vsel %vm964, %v1313, %v1322
      %v1325 = vshrl.u32 %v1264, 16
      %v1327 = vrot.slane %v1325, 3
      %v1328 = vshll.u32 %v1264, 16
      %v1330 = vrot.slane %v1328, 4
      %v1331 = vor.u32 %v1327, %v1330
      %v1332 = vsel %vm964, %v1322, %v1331
      %v1334 = vshrl.u32 %v1265, 16
      %v1336 = vrot.slane %v1334, 3
      %v1337 = vshll.u32 %v1265, 16
      %v1339 = vrot.slane %v1337, 4
      %v1340 = vor.u32 %v1336, %v1339
      %v1341 = vsel %vm964, %v1331, %v1340
      %v1343 = vshrl.u32 %v1266, 16
      %v1345 = vrot.slane %v1343, 3
      %v1346 = vshll.u32 %v1266, 16
      %v1348 = vrot.slane %v1346, 4
      %v1349 = vor.u32 %v1345, %v1348
      %v1350 = vsel %vm964, %v1340, %v1349
      %v1352 = vshrl.u32 %v1267, 16
      %v1354 = vrot.slane %v1352, 3
      %v1355 = vshll.u32 %v1267, 16
      %v1357 = vrot.slane %v1355, 4
      %v1358 = vor.u32 %v1354, %v1357
      %v1359 = vsel %vm964, %v1349, %v1358
      %v1361 = vshrl.u32 %v1268, 16
      %v1363 = vrot.slane %v1361, 3
      %v1364 = vshll.u32 %v1268, 16
      %v1366 = vrot.slane %v1364, 4
      %v1367 = vor.u32 %v1363, %v1366
      %v1368 = vsel %vm964, %v1358, %v1367
      %v1370 = vshrl.u32 %v1269, 16
      %v1372 = vrot.slane %v1370, 3
      %v1373 = vshll.u32 %v1269, 16
      %v1375 = vrot.slane %v1373, 4
      %v1376 = vor.u32 %v1372, %v1375
      %v1377 = vsel %vm964, %v1367, %v1376
      %v1379 = vshrl.u32 %v1270, 16
      %v1381 = vrot.slane %v1379, 3
      %v1382 = vshll.u32 %v1270, 16
      %v1384 = vrot.slane %v1382, 4
      %v1385 = vor.u32 %v1381, %v1384
      %v1386 = vsel %vm964, %v1376, %v1385
      %v1391 = vunpack.c.l.b16 %v1202
      %v1392 = vunpack.c.l.b16 %v1203
      %v1393 = vunpack.c.l.b16 %v1204
      %v1394 = vunpack.c.l.b16 %v1205
      %v1395 = vpack.c.b16 %v1392, %v1391
      %v1396 = vpack.c.b16 %v1394, %v1393
      %v1400 = vsel %vm598, %v1287, 0
      %v1403 = vsel %vm598, %v1296, 0
      %v1406 = vsel %vm598, %v1305, 0
      %v1409 = vsel %vm598, %v1314, 0
      %v1412 = vsel %vm598, %v1323, 0
      %v1415 = vsel %vm598, %v1332, 0
      %v1418 = vsel %vm598, %v1341, 0
      %v1421 = vsel %vm598, %v1350, 0
      %v1424 = vsel %vm598, %v1359, 0
      %v1427 = vsel %vm598, %v1368, 0
      %v1430 = vsel %vm598, %v1377, 0
      %v1433 = vsel %vm598, %v1386, 0
      %v1436 = vsel %vm598, %v1385, 0
      %1438 = vmatpush.bf16.msra.mxu0 0
      %1439 = vmatpush.bf16.msra.mxu0 0
      %1440 = vmatpush.bf16.msra.mxu0 0
      %1441 = vmatpush.bf16.msra.mxu0 0
      %1442 = vmatpush.bf16.msra.mxu0 0
      %1443 = vmatpush.bf16.msra.mxu0 0
      %1444 = vmatpush.bf16.msra.mxu0 %v1396
      %1445 = vmatpush.bf16.msra.mxu0 %v1395
      %1446 = vmatmul.bf16.gmra.mxu0 %v1400
      %v1447 = vpop.f32.mrf.mxu0
      %v1448 = vadd.f32 0.0, %v1447
      %v1449 = vpop.f32.mrf.mxu0
      %v1450 = vadd.f32 0.0, %v1449
      %1451 = vmatmul.bf16.gmra.mxu0 %v1403
      %v1452 = vpop.f32.mrf.mxu0
      %v1453 = vadd.f32 0.0, %v1452
      %v1454 = vpop.f32.mrf.mxu0
      %v1455 = vadd.f32 0.0, %v1454
      %1456 = vmatmul.bf16.gmra.mxu0 %v1406
      %v1457 = vpop.f32.mrf.mxu0
      %v1458 = vadd.f32 0.0, %v1457
      %v1459 = vpop.f32.mrf.mxu0
      %v1460 = vadd.f32 0.0, %v1459
      %1461 = vmatmul.bf16.gmra.mxu0 %v1409
      %v1462 = vpop.f32.mrf.mxu0
      %v1463 = vadd.f32 0.0, %v1462
      %v1464 = vpop.f32.mrf.mxu0
      %v1465 = vadd.f32 0.0, %v1464
      %1466 = vmatmul.bf16.gmra.mxu0 %v1412
      %v1467 = vpop.f32.mrf.mxu0
      %v1468 = vadd.f32 0.0, %v1467
      %v1469 = vpop.f32.mrf.mxu0
      %v1470 = vadd.f32 0.0, %v1469
      %1471 = vmatmul.bf16.gmra.mxu0 %v1415
      %v1472 = vpop.f32.mrf.mxu0
      %v1473 = vadd.f32 0.0, %v1472
      %v1474 = vpop.f32.mrf.mxu0
      %v1475 = vadd.f32 0.0, %v1474
      %1476 = vmatmul.bf16.gmra.mxu0 %v1418
      %v1477 = vpop.f32.mrf.mxu0
      %v1478 = vadd.f32 0.0, %v1477
      %v1479 = vpop.f32.mrf.mxu0
      %v1480 = vadd.f32 0.0, %v1479
      %1481 = vmatmul.bf16.gmra.mxu0 %v1421
      %v1482 = vpop.f32.mrf.mxu0
      %v1483 = vadd.f32 0.0, %v1482
      %v1484 = vpop.f32.mrf.mxu0
      %v1485 = vadd.f32 0.0, %v1484
      %1486 = vmatmul.bf16.gmra.mxu0 %v1424
      %v1487 = vpop.f32.mrf.mxu0
      %v1488 = vadd.f32 0.0, %v1487
      %v1489 = vpop.f32.mrf.mxu0
      %v1490 = vadd.f32 0.0, %v1489
      %1491 = vmatmul.bf16.gmra.mxu0 %v1427
      %v1492 = vpop.f32.mrf.mxu0
      %v1493 = vadd.f32 0.0, %v1492
      %v1494 = vpop.f32.mrf.mxu0
      %v1495 = vadd.f32 0.0, %v1494
      %1496 = vmatmul.bf16.gmra.mxu0 %v1430
      %v1497 = vpop.f32.mrf.mxu0
      %v1498 = vadd.f32 0.0, %v1497
      %v1499 = vpop.f32.mrf.mxu0
      %v1500 = vadd.f32 0.0, %v1499
      %1501 = vmatmul.bf16.gmra.mxu0 %v1433
      %v1502 = vpop.f32.mrf.mxu0
      %v1503 = vadd.f32 0.0, %v1502
      %v1504 = vpop.f32.mrf.mxu0
      %v1505 = vadd.f32 0.0, %v1504
      %1506 = vmatmul.bf16.gmra.mxu0 %v1436
      %v1507 = vpop.f32.mrf.mxu0
      %v1508 = vadd.f32 0.0, %v1507
      %v1509 = vpop.f32.mrf.mxu0
      %1510 = vdwg.mxu0
      %v1511 = vadd.f32 %v1150, %v1448
      %v1512 = vadd.f32 %v1151, %v1450
      %v1513 = vadd.f32 %v1152, %v1453
      %v1514 = vadd.f32 %v1153, %v1455
      %v1515 = vadd.f32 %v1154, %v1458
      %v1516 = vadd.f32 %v1155, %v1460
      %v1517 = vadd.f32 %v1156, %v1463
      %v1518 = vadd.f32 %v1157, %v1465
      %v1519 = vadd.f32 %v1158, %v1468
      %v1520 = vadd.f32 %v1159, %v1470
      %v1521 = vadd.f32 %v1160, %v1473
      %v1522 = vadd.f32 %v1161, %v1475
      %v1523 = vadd.f32 %v1162, %v1478
      %v1524 = vadd.f32 %v1163, %v1480
      %v1525 = vadd.f32 %v1164, %v1483
      %v1526 = vadd.f32 %v1165, %v1485
      %v1527 = vadd.f32 %v1166, %v1488
      %v1528 = vadd.f32 %v1167, %v1490
      %v1529 = vadd.f32 %v1168, %v1493
      %v1530 = vadd.f32 %v1169, %v1495
      %v1531 = vadd.f32 %v1170, %v1498
      %v1532 = vadd.f32 %v1171, %v1500
      %v1533 = vadd.f32 %v1172, %v1503
      %v1534 = vadd.f32 %v1173, %v1505
      %v1535 = vadd.f32 %v1174, %v1508
      %s1536 = scalar_lea.vmem %s360, 64
      %v1537 = vld [vmem:[%s1536] sm:$0xf]
      %v1538 = vld [vmem:[%s1536 + $0x4] sm:$0xf]
      %v1539 = vld [vmem:[%s1536 + $0x8] sm:$0xf]
      %v1540 = vld [vmem:[%s1536 + $0xc] sm:$0xf]
      %v1541 = vpack.c.b16 %v1234, %v1233
      %v1542 = vpack.c.b16 %v1236, %v1235
      %v1543 = vpack.c.b16 %v1238, %v1237
      %v1544 = vpack.c.b16 %v1240, %v1239
      %v1545 = vpack.c.b16 %v1242, %v1241
      %v1546 = vpack.c.b16 %v1244, %v1243
      %v1547 = vpack.c.b16 %v1246, %v1245
      %v1548 = vpack.c.b16 %v1248, %v1247
      %v1549 = vpack.c.b16 %v1250, %v1249
      %v1550 = vpack.c.b16 %v1252, %v1251
      %v1551 = vpack.c.b16 %v1254, %v1253
      %v1552 = vpack.c.b16 %v1256, %v1255
      %v1553 = vpack.c.b16 %v1257, %v1257
      %v1558 = vunpack.c.l.b16 %v1537
      %v1559 = vunpack.c.l.b16 %v1538
      %v1560 = vunpack.c.l.b16 %v1539
      %v1561 = vunpack.c.l.b16 %v1540
      %v1562 = vpack.c.b16 %v1559, %v1558
      %v1563 = vpack.c.b16 %v1561, %v1560
      %v1567 = vsel %vm598, %v1541, 0
      %v1570 = vsel %vm598, %v1542, 0
      %v1573 = vsel %vm598, %v1543, 0
      %v1576 = vsel %vm598, %v1544, 0
      %v1579 = vsel %vm598, %v1545, 0
      %v1582 = vsel %vm598, %v1546, 0
      %v1585 = vsel %vm598, %v1547, 0
      %v1588 = vsel %vm598, %v1548, 0
      %v1591 = vsel %vm598, %v1549, 0
      %v1594 = vsel %vm598, %v1550, 0
      %v1597 = vsel %vm598, %v1551, 0
      %v1600 = vsel %vm598, %v1552, 0
      %v1603 = vsel %vm598, %v1553, 0
      %1605 = vmatpush.bf16.msra.mxu0 0
      %1606 = vmatpush.bf16.msra.mxu0 0
      %1607 = vmatpush.bf16.msra.mxu0 0
      %1608 = vmatpush.bf16.msra.mxu0 0
      %1609 = vmatpush.bf16.msra.mxu0 0
      %1610 = vmatpush.bf16.msra.mxu0 0
      %1611 = vmatpush.bf16.msra.mxu0 %v1563
      %1612 = vmatpush.bf16.msra.mxu0 %v1562
      %1613 = vmatmul.bf16.gmra.mxu0 %v1567
      %v1614 = vpop.f32.mrf.mxu0
      %v1615 = vadd.f32 0.0, %v1614
      %v1616 = vpop.f32.mrf.mxu0
      %v1617 = vadd.f32 0.0, %v1616
      %1618 = vmatmul.bf16.gmra.mxu0 %v1570
      %v1619 = vpop.f32.mrf.mxu0
      %v1620 = vadd.f32 0.0, %v1619
      %v1621 = vpop.f32.mrf.mxu0
      %v1622 = vadd.f32 0.0, %v1621
      %1623 = vmatmul.bf16.gmra.mxu0 %v1573
      %v1624 = vpop.f32.mrf.mxu0
      %v1625 = vadd.f32 0.0, %v1624
      %v1626 = vpop.f32.mrf.mxu0
      %v1627 = vadd.f32 0.0, %v1626
      %1628 = vmatmul.bf16.gmra.mxu0 %v1576
      %v1629 = vpop.f32.mrf.mxu0
      %v1630 = vadd.f32 0.0, %v1629
      %v1631 = vpop.f32.mrf.mxu0
      %v1632 = vadd.f32 0.0, %v1631
      %1633 = vmatmul.bf16.gmra.mxu0 %v1579
      %v1634 = vpop.f32.mrf.mxu0
      %v1635 = vadd.f32 0.0, %v1634
      %v1636 = vpop.f32.mrf.mxu0
      %v1637 = vadd.f32 0.0, %v1636
      %1638 = vmatmul.bf16.gmra.mxu0 %v1582
      %v1639 = vpop.f32.mrf.mxu0
      %v1640 = vadd.f32 0.0, %v1639
      %v1641 = vpop.f32.mrf.mxu0
      %v1642 = vadd.f32 0.0, %v1641
      %1643 = vmatmul.bf16.gmra.mxu0 %v1585
      %v1644 = vpop.f32.mrf.mxu0
      %v1645 = vadd.f32 0.0, %v1644
      %v1646 = vpop.f32.mrf.mxu0
      %v1647 = vadd.f32 0.0, %v1646
      %1648 = vmatmul.bf16.gmra.mxu0 %v1588
      %v1649 = vpop.f32.mrf.mxu0
      %v1650 = vadd.f32 0.0, %v1649
      %v1651 = vpop.f32.mrf.mxu0
      %v1652 = vadd.f32 0.0, %v1651
      %1653 = vmatmul.bf16.gmra.mxu0 %v1591
      %v1654 = vpop.f32.mrf.mxu0
      %v1655 = vadd.f32 0.0, %v1654
      %v1656 = vpop.f32.mrf.mxu0
      %v1657 = vadd.f32 0.0, %v1656
      %1658 = vmatmul.bf16.gmra.mxu0 %v1594
      %v1659 = vpop.f32.mrf.mxu0
      %v1660 = vadd.f32 0.0, %v1659
      %v1661 = vpop.f32.mrf.mxu0
      %v1662 = vadd.f32 0.0, %v1661
      %1663 = vmatmul.bf16.gmra.mxu0 %v1597
      %v1664 = vpop.f32.mrf.mxu0
      %v1665 = vadd.f32 0.0, %v1664
      %v1666 = vpop.f32.mrf.mxu0
      %v1667 = vadd.f32 0.0, %v1666
      %1668 = vmatmul.bf16.gmra.mxu0 %v1600
      %v1669 = vpop.f32.mrf.mxu0
      %v1670 = vadd.f32 0.0, %v1669
      %v1671 = vpop.f32.mrf.mxu0
      %v1672 = vadd.f32 0.0, %v1671
      %1673 = vmatmul.bf16.gmra.mxu0 %v1603
      %v1674 = vpop.f32.mrf.mxu0
      %v1675 = vadd.f32 0.0, %v1674
      %v1676 = vpop.f32.mrf.mxu0
      %1677 = vdwg.mxu0
      %v1678 = vadd.f32 %v1511, %v1615
      %v1679 = vadd.f32 %v1512, %v1617
      %v1680 = vadd.f32 %v1513, %v1620
      %v1681 = vadd.f32 %v1514, %v1622
      %v1682 = vadd.f32 %v1515, %v1625
      %v1683 = vadd.f32 %v1516, %v1627
      %v1684 = vadd.f32 %v1517, %v1630
      %v1685 = vadd.f32 %v1518, %v1632
      %v1686 = vadd.f32 %v1519, %v1635
      %v1687 = vadd.f32 %v1520, %v1637
      %v1688 = vadd.f32 %v1521, %v1640
      %v1689 = vadd.f32 %v1522, %v1642
      %v1690 = vadd.f32 %v1523, %v1645
      %v1691 = vadd.f32 %v1524, %v1647
      %v1692 = vadd.f32 %v1525, %v1650
      %v1693 = vadd.f32 %v1526, %v1652
      %v1694 = vadd.f32 %v1527, %v1655
      %v1695 = vadd.f32 %v1528, %v1657
      %v1696 = vadd.f32 %v1529, %v1660
      %v1697 = vadd.f32 %v1530, %v1662
      %v1698 = vadd.f32 %v1531, %v1665
      %v1699 = vadd.f32 %v1532, %v1667
      %v1700 = vadd.f32 %v1533, %v1670
      %v1701 = vadd.f32 %v1534, %v1672
      %v1702 = vadd.f32 %v1535, %v1675
      %v1703 = vld [vmem:[#allocation2 + $0x8] sm:$0xf]
      %v1704 = vld [vmem:[#allocation2 + $0xc] sm:$0xf]
      %v1705 = vld [vmem:[#allocation2 + $0x10] sm:$0xf]
      %v1706 = vld [vmem:[#allocation2 + $0x14] sm:$0xf]
      %v1707 = vld [vmem:[#allocation2 + $0x18] sm:$0xf]
      %v1708 = vld [vmem:[#allocation2 + $0x1c] sm:$0xf]
      %v1709 = vld [vmem:[#allocation2 + $0x20] sm:$0xf]
      %v1710 = vld [vmem:[#allocation2 + $0x24] sm:$0xf]
      %v1711 = vld [vmem:[#allocation2 + $0x28] sm:$0xf]
      %v1712 = vld [vmem:[#allocation2 + $0x2c] sm:$0xf]
      %v1713 = vld [vmem:[#allocation2 + $0x30] sm:$0xf]
      %v1714 = vld [vmem:[#allocation2 + $0x34] sm:$0xf]
      %v1715 = vld [vmem:[#allocation2 + $0x38] sm:$0xf]
      %v1716 = vld [vmem:[#allocation2 + $0x3c] sm:$0xf]
      %v1717 = vld [vmem:[#allocation2 + $0x40] sm:$0xf]
      %v1718 = vld [vmem:[#allocation2 + $0x44] sm:$0xf]
      %v1719 = vld [vmem:[#allocation2 + $0x48] sm:$0xf]
      %v1720 = vld [vmem:[#allocation2 + $0x4c] sm:$0xf]
      %v1721 = vld [vmem:[#allocation2 + $0x50] sm:$0xf]
      %v1722 = vld [vmem:[#allocation2 + $0x54] sm:$0xf]
      %v1723 = vld [vmem:[#allocation2 + $0x58] sm:$0xf]
      %v1724 = vld [vmem:[#allocation2 + $0x5c] sm:$0xf]
      %v1725 = vld [vmem:[#allocation2 + $0x60] sm:$0xf]
      %v1726 = vld [vmem:[#allocation2 + $0x64] sm:$0xf]
      %v1727 = vld [vmem:[#allocation2 + $0x68] sm:$0xf]
      %v1728 = vld [vmem:[#allocation2 + $0x6c] sm:$0x1]
      %s1729 = scalar_lea.vmem %s360, 80
      %v1730 = vld [vmem:[%s1729] sm:$0xf]
      %v1731 = vld [vmem:[%s1729 + $0x4] sm:$0xf]
      %v1732 = vld [vmem:[%s1729 + $0x8] sm:$0xf]
      %v1733 = vld [vmem:[%s1729 + $0xc] sm:$0xf]
      %v1760 = vunpack.c.l.b16 %v1703
      %v1761 = vunpack.c.l.b16 %v1704
      %v1762 = vunpack.c.l.b16 %v1705
      %v1763 = vunpack.c.l.b16 %v1706
      %v1764 = vunpack.c.l.b16 %v1707
      %v1765 = vunpack.c.l.b16 %v1708
      %v1766 = vunpack.c.l.b16 %v1709
      %v1767 = vunpack.c.l.b16 %v1710
      %v1768 = vunpack.c.l.b16 %v1711
      %v1769 = vunpack.c.l.b16 %v1712
      %v1770 = vunpack.c.l.b16 %v1713
      %v1771 = vunpack.c.l.b16 %v1714
      %v1772 = vunpack.c.l.b16 %v1715
      %v1773 = vunpack.c.l.b16 %v1716
      %v1774 = vunpack.c.l.b16 %v1717
      %v1775 = vunpack.c.l.b16 %v1718
      %v1776 = vunpack.c.l.b16 %v1719
      %v1777 = vunpack.c.l.b16 %v1720
      %v1778 = vunpack.c.l.b16 %v1721
      %v1779 = vunpack.c.l.b16 %v1722
      %v1780 = vunpack.c.l.b16 %v1723
      %v1781 = vunpack.c.l.b16 %v1724
      %v1782 = vunpack.c.l.b16 %v1725
      %v1783 = vunpack.c.l.b16 %v1726
      %v1784 = vunpack.c.l.b16 %v1727
      %v1785 = vunpack.c.l.b16 %v1728
      %v1786 = vpack.c.b16 %v1761, %v1760
      %v1787 = vpack.c.b16 %v1763, %v1762
      %v1788 = vpack.c.b16 %v1765, %v1764
      %v1789 = vpack.c.b16 %v1767, %v1766
      %v1790 = vpack.c.b16 %v1769, %v1768
      %v1791 = vpack.c.b16 %v1771, %v1770
      %v1792 = vpack.c.b16 %v1773, %v1772
      %v1793 = vpack.c.b16 %v1775, %v1774
      %v1794 = vpack.c.b16 %v1777, %v1776
      %v1795 = vpack.c.b16 %v1779, %v1778
      %v1796 = vpack.c.b16 %v1781, %v1780
      %v1797 = vpack.c.b16 %v1783, %v1782
      %v1798 = vpack.c.b16 %v1785, %v1784
      %vm1799 = vsmask.f32 7424
      %v1801 = vshrl.u32 %v1786, 16
      %v1803 = vshll.u32 %v1786, 16
      %v1805 = vrot.slane %v1803, 1
      %v1806 = vor.u32 %v1801, %v1805
      %v1808 = vshll.u32 %v1787, 16
      %v1810 = vrot.slane %v1808, 1
      %v1811 = vsel %vm1799, %v1806, %v1810
      %v1812 = vshrl.u32 %v1787, 16
      %v1814 = vor.u32 %v1812, %v1810
      %v1816 = vshll.u32 %v1788, 16
      %v1818 = vrot.slane %v1816, 1
      %v1819 = vsel %vm1799, %v1814, %v1818
      %v1820 = vshrl.u32 %v1788, 16
      %v1822 = vor.u32 %v1820, %v1818
      %v1824 = vshll.u32 %v1789, 16
      %v1826 = vrot.slane %v1824, 1
      %v1827 = vsel %vm1799, %v1822, %v1826
      %v1828 = vshrl.u32 %v1789, 16
      %v1830 = vor.u32 %v1828, %v1826
      %v1832 = vshll.u32 %v1790, 16
      %v1834 = vrot.slane %v1832, 1
      %v1835 = vsel %vm1799, %v1830, %v1834
      %v1836 = vshrl.u32 %v1790, 16
      %v1838 = vor.u32 %v1836, %v1834
      %v1840 = vshll.u32 %v1791, 16
      %v1842 = vrot.slane %v1840, 1
      %v1843 = vsel %vm1799, %v1838, %v1842
      %v1844 = vshrl.u32 %v1791, 16
      %v1846 = vor.u32 %v1844, %v1842
      %v1848 = vshll.u32 %v1792, 16
      %v1850 = vrot.slane %v1848, 1
      %v1851 = vsel %vm1799, %v1846, %v1850
      %v1852 = vshrl.u32 %v1792, 16
      %v1854 = vor.u32 %v1852, %v1850
      %v1856 = vshll.u32 %v1793, 16
      %v1858 = vrot.slane %v1856, 1
      %v1859 = vsel %vm1799, %v1854, %v1858
      %v1860 = vshrl.u32 %v1793, 16
      %v1862 = vor.u32 %v1860, %v1858
      %v1864 = vshll.u32 %v1794, 16
      %v1866 = vrot.slane %v1864, 1
      %v1867 = vsel %vm1799, %v1862, %v1866
      %v1868 = vshrl.u32 %v1794, 16
      %v1870 = vor.u32 %v1868, %v1866
      %v1872 = vshll.u32 %v1795, 16
      %v1874 = vrot.slane %v1872, 1
      %v1875 = vsel %vm1799, %v1870, %v1874
      %v1876 = vshrl.u32 %v1795, 16
      %v1878 = vor.u32 %v1876, %v1874
      %v1880 = vshll.u32 %v1796, 16
      %v1882 = vrot.slane %v1880, 1
      %v1883 = vsel %vm1799, %v1878, %v1882
      %v1884 = vshrl.u32 %v1796, 16
      %v1886 = vor.u32 %v1884, %v1882
      %v1888 = vshll.u32 %v1797, 16
      %v1890 = vrot.slane %v1888, 1
      %v1891 = vsel %vm1799, %v1886, %v1890
      %v1892 = vshrl.u32 %v1797, 16
      %v1894 = vor.u32 %v1892, %v1890
      %v1896 = vshll.u32 %v1798, 16
      %v1898 = vrot.slane %v1896, 1
      %v1899 = vsel %vm1799, %v1894, %v1898
      %v1900 = vshrl.u32 %v1798, 16
      %v1902 = vor.u32 %v1900, %v1898
      %v1907 = vunpack.c.l.b16 %v1730
      %v1908 = vunpack.c.l.b16 %v1731
      %v1909 = vunpack.c.l.b16 %v1732
      %v1910 = vunpack.c.l.b16 %v1733
      %v1911 = vpack.c.b16 %v1908, %v1907
      %v1912 = vpack.c.b16 %v1910, %v1909
      %v1916 = vsel %vm598, %v1811, 0
      %v1919 = vsel %vm598, %v1819, 0
      %v1922 = vsel %vm598, %v1827, 0
      %v1925 = vsel %vm598, %v1835, 0
      %v1928 = vsel %vm598, %v1843, 0
      %v1931 = vsel %vm598, %v1851, 0
      %v1934 = vsel %vm598, %v1859, 0
      %v1937 = vsel %vm598, %v1867, 0
      %v1940 = vsel %vm598, %v1875, 0
      %v1943 = vsel %vm598, %v1883, 0
      %v1946 = vsel %vm598, %v1891, 0
      %v1949 = vsel %vm598, %v1899, 0
      %v1952 = vsel %vm598, %v1902, 0
      %1954 = vmatpush.bf16.msra.mxu0 0
      %1955 = vmatpush.bf16.msra.mxu0 0
      %1956 = vmatpush.bf16.msra.mxu0 0
      %1957 = vmatpush.bf16.msra.mxu0 0
      %1958 = vmatpush.bf16.msra.mxu0 0
      %1959 = vmatpush.bf16.msra.mxu0 0
      %1960 = vmatpush.bf16.msra.mxu0 %v1912
      %1961 = vmatpush.bf16.msra.mxu0 %v1911
      %1962 = vmatmul.bf16.gmra.mxu0 %v1916
      %v1963 = vpop.f32.mrf.mxu0
      %v1964 = vadd.f32 0.0, %v1963
      %v1965 = vpop.f32.mrf.mxu0
      %v1966 = vadd.f32 0.0, %v1965
      %1967 = vmatmul.bf16.gmra.mxu0 %v1919
      %v1968 = vpop.f32.mrf.mxu0
      %v1969 = vadd.f32 0.0, %v1968
      %v1970 = vpop.f32.mrf.mxu0
      %v1971 = vadd.f32 0.0, %v1970
      %1972 = vmatmul.bf16.gmra.mxu0 %v1922
      %v1973 = vpop.f32.mrf.mxu0
      %v1974 = vadd.f32 0.0, %v1973
      %v1975 = vpop.f32.mrf.mxu0
      %v1976 = vadd.f32 0.0, %v1975
      %1977 = vmatmul.bf16.gmra.mxu0 %v1925
      %v1978 = vpop.f32.mrf.mxu0
      %v1979 = vadd.f32 0.0, %v1978
      %v1980 = vpop.f32.mrf.mxu0
      %v1981 = vadd.f32 0.0, %v1980
      %1982 = vmatmul.bf16.gmra.mxu0 %v1928
      %v1983 = vpop.f32.mrf.mxu0
      %v1984 = vadd.f32 0.0, %v1983
      %v1985 = vpop.f32.mrf.mxu0
      %v1986 = vadd.f32 0.0, %v1985
      %1987 = vmatmul.bf16.gmra.mxu0 %v1931
      %v1988 = vpop.f32.mrf.mxu0
      %v1989 = vadd.f32 0.0, %v1988
      %v1990 = vpop.f32.mrf.mxu0
      %v1991 = vadd.f32 0.0, %v1990
      %1992 = vmatmul.bf16.gmra.mxu0 %v1934
      %v1993 = vpop.f32.mrf.mxu0
      %v1994 = vadd.f32 0.0, %v1993
      %v1995 = vpop.f32.mrf.mxu0
      %v1996 = vadd.f32 0.0, %v1995
      %1997 = vmatmul.bf16.gmra.mxu0 %v1937
      %v1998 = vpop.f32.mrf.mxu0
      %v1999 = vadd.f32 0.0, %v1998
      %v2000 = vpop.f32.mrf.mxu0
      %v2001 = vadd.f32 0.0, %v2000
      %2002 = vmatmul.bf16.gmra.mxu0 %v1940
      %v2003 = vpop.f32.mrf.mxu0
      %v2004 = vadd.f32 0.0, %v2003
      %v2005 = vpop.f32.mrf.mxu0
      %v2006 = vadd.f32 0.0, %v2005
      %2007 = vmatmul.bf16.gmra.mxu0 %v1943
      %v2008 = vpop.f32.mrf.mxu0
      %v2009 = vadd.f32 0.0, %v2008
      %v2010 = vpop.f32.mrf.mxu0
      %v2011 = vadd.f32 0.0, %v2010
      %2012 = vmatmul.bf16.gmra.mxu0 %v1946
      %v2013 = vpop.f32.mrf.mxu0
      %v2014 = vadd.f32 0.0, %v2013
      %v2015 = vpop.f32.mrf.mxu0
      %v2016 = vadd.f32 0.0, %v2015
      %2017 = vmatmul.bf16.gmra.mxu0 %v1949
      %v2018 = vpop.f32.mrf.mxu0
      %v2019 = vadd.f32 0.0, %v2018
      %v2020 = vpop.f32.mrf.mxu0
      %v2021 = vadd.f32 0.0, %v2020
      %2022 = vmatmul.bf16.gmra.mxu0 %v1952
      %v2023 = vpop.f32.mrf.mxu0
      %v2024 = vadd.f32 0.0, %v2023
      %v2025 = vpop.f32.mrf.mxu0
      %2026 = vdwg.mxu0
      %v2027 = vadd.f32 %v1678, %v1964
      %v2028 = vadd.f32 %v1679, %v1966
      %v2029 = vadd.f32 %v1680, %v1969
      %v2030 = vadd.f32 %v1681, %v1971
      %v2031 = vadd.f32 %v1682, %v1974
      %v2032 = vadd.f32 %v1683, %v1976
      %v2033 = vadd.f32 %v1684, %v1979
      %v2034 = vadd.f32 %v1685, %v1981
      %v2035 = vadd.f32 %v1686, %v1984
      %v2036 = vadd.f32 %v1687, %v1986
      %v2037 = vadd.f32 %v1688, %v1989
      %v2038 = vadd.f32 %v1689, %v1991
      %v2039 = vadd.f32 %v1690, %v1994
      %v2040 = vadd.f32 %v1691, %v1996
      %v2041 = vadd.f32 %v1692, %v1999
      %v2042 = vadd.f32 %v1693, %v2001
      %v2043 = vadd.f32 %v1694, %v2004
      %v2044 = vadd.f32 %v1695, %v2006
      %v2045 = vadd.f32 %v1696, %v2009
      %v2046 = vadd.f32 %v1697, %v2011
      %v2047 = vadd.f32 %v1698, %v2014
      %v2048 = vadd.f32 %v1699, %v2016
      %v2049 = vadd.f32 %v1700, %v2019
      %v2050 = vadd.f32 %v1701, %v2021
      %v2051 = vadd.f32 %v1702, %v2024
      %v2052 = vld [vmem:[#allocation2 + $0xc] sm:$0xf]
      %v2053 = vld [vmem:[#allocation2 + $0x10] sm:$0xf]
      %v2054 = vld [vmem:[#allocation2 + $0x14] sm:$0xf]
      %v2055 = vld [vmem:[#allocation2 + $0x18] sm:$0xf]
      %v2056 = vld [vmem:[#allocation2 + $0x1c] sm:$0xf]
      %v2057 = vld [vmem:[#allocation2 + $0x20] sm:$0xf]
      %v2058 = vld [vmem:[#allocation2 + $0x24] sm:$0xf]
      %v2059 = vld [vmem:[#allocation2 + $0x28] sm:$0xf]
      %v2060 = vld [vmem:[#allocation2 + $0x2c] sm:$0xf]
      %v2061 = vld [vmem:[#allocation2 + $0x30] sm:$0xf]
      %v2062 = vld [vmem:[#allocation2 + $0x34] sm:$0xf]
      %v2063 = vld [vmem:[#allocation2 + $0x38] sm:$0xf]
      %v2064 = vld [vmem:[#allocation2 + $0x3c] sm:$0xf]
      %v2065 = vld [vmem:[#allocation2 + $0x40] sm:$0xf]
      %v2066 = vld [vmem:[#allocation2 + $0x44] sm:$0xf]
      %v2067 = vld [vmem:[#allocation2 + $0x48] sm:$0xf]
      %v2068 = vld [vmem:[#allocation2 + $0x4c] sm:$0xf]
      %v2069 = vld [vmem:[#allocation2 + $0x50] sm:$0xf]
      %v2070 = vld [vmem:[#allocation2 + $0x54] sm:$0xf]
      %v2071 = vld [vmem:[#allocation2 + $0x58] sm:$0xf]
      %v2072 = vld [vmem:[#allocation2 + $0x5c] sm:$0xf]
      %v2073 = vld [vmem:[#allocation2 + $0x60] sm:$0xf]
      %v2074 = vld [vmem:[#allocation2 + $0x64] sm:$0xf]
      %v2075 = vld [vmem:[#allocation2 + $0x68] sm:$0xf]
      %v2076 = vld [vmem:[#allocation2 + $0x6c] sm:$0xf]
      %v2077 = vld [vmem:[#allocation2 + $0x70] sm:$0x1]
      %s2078 = scalar_lea.vmem %s360, 96
      %v2079 = vld [vmem:[%s2078] sm:$0xf]
      %v2080 = vld [vmem:[%s2078 + $0x4] sm:$0xf]
      %v2081 = vld [vmem:[%s2078 + $0x8] sm:$0xf]
      %v2082 = vld [vmem:[%s2078 + $0xc] sm:$0xf]
      %v2109 = vunpack.c.l.b16 %v2052
      %v2110 = vunpack.c.l.b16 %v2053
      %v2111 = vunpack.c.l.b16 %v2054
      %v2112 = vunpack.c.l.b16 %v2055
      %v2113 = vunpack.c.l.b16 %v2056
      %v2114 = vunpack.c.l.b16 %v2057
      %v2115 = vunpack.c.l.b16 %v2058
      %v2116 = vunpack.c.l.b16 %v2059
      %v2117 = vunpack.c.l.b16 %v2060
      %v2118 = vunpack.c.l.b16 %v2061
      %v2119 = vunpack.c.l.b16 %v2062
      %v2120 = vunpack.c.l.b16 %v2063
      %v2121 = vunpack.c.l.b16 %v2064
      %v2122 = vunpack.c.l.b16 %v2065
      %v2123 = vunpack.c.l.b16 %v2066
      %v2124 = vunpack.c.l.b16 %v2067
      %v2125 = vunpack.c.l.b16 %v2068
      %v2126 = vunpack.c.l.b16 %v2069
      %v2127 = vunpack.c.l.b16 %v2070
      %v2128 = vunpack.c.l.b16 %v2071
      %v2129 = vunpack.c.l.b16 %v2072
      %v2130 = vunpack.c.l.b16 %v2073
      %v2131 = vunpack.c.l.b16 %v2074
      %v2132 = vunpack.c.l.b16 %v2075
      %v2133 = vunpack.c.l.b16 %v2076
      %v2134 = vunpack.c.l.b16 %v2077
      %v2135 = vpack.c.b16 %v2110, %v2109
      %v2136 = vpack.c.b16 %v2112, %v2111
      %v2137 = vpack.c.b16 %v2114, %v2113
      %v2138 = vpack.c.b16 %v2116, %v2115
      %v2139 = vpack.c.b16 %v2118, %v2117
      %v2140 = vpack.c.b16 %v2120, %v2119
      %v2141 = vpack.c.b16 %v2122, %v2121
      %v2142 = vpack.c.b16 %v2124, %v2123
      %v2143 = vpack.c.b16 %v2126, %v2125
      %v2144 = vpack.c.b16 %v2128, %v2127
      %v2145 = vpack.c.b16 %v2130, %v2129
      %v2146 = vpack.c.b16 %v2132, %v2131
      %v2147 = vpack.c.b16 %v2134, %v2133
      %v2149 = vshrl.u32 %v2135, 16
      %v2151 = vshll.u32 %v2135, 16
      %v2153 = vrot.slane %v2151, 1
      %v2154 = vor.u32 %v2149, %v2153
      %v2156 = vshll.u32 %v2136, 16
      %v2158 = vrot.slane %v2156, 1
      %v2159 = vsel %vm1799, %v2154, %v2158
      %v2160 = vshrl.u32 %v2136, 16
      %v2162 = vor.u32 %v2160, %v2158
      %v2164 = vshll.u32 %v2137, 16
      %v2166 = vrot.slane %v2164, 1
      %v2167 = vsel %vm1799, %v2162, %v2166
      %v2168 = vshrl.u32 %v2137, 16
      %v2170 = vor.u32 %v2168, %v2166
      %v2172 = vshll.u32 %v2138, 16
      %v2174 = vrot.slane %v2172, 1
      %v2175 = vsel %vm1799, %v2170, %v2174
      %v2176 = vshrl.u32 %v2138, 16
      %v2178 = vor.u32 %v2176, %v2174
      %v2180 = vshll.u32 %v2139, 16
      %v2182 = vrot.slane %v2180, 1
      %v2183 = vsel %vm1799, %v2178, %v2182
      %v2184 = vshrl.u32 %v2139, 16
      %v2186 = vor.u32 %v2184, %v2182
      %v2188 = vshll.u32 %v2140, 16
      %v2190 = vrot.slane %v2188, 1
      %v2191 = vsel %vm1799, %v2186, %v2190
      %v2192 = vshrl.u32 %v2140, 16
      %v2194 = vor.u32 %v2192, %v2190
      %v2196 = vshll.u32 %v2141, 16
      %v2198 = vrot.slane %v2196, 1
      %v2199 = vsel %vm1799, %v2194, %v2198
      %v2200 = vshrl.u32 %v2141, 16
      %v2202 = vor.u32 %v2200, %v2198
      %v2204 = vshll.u32 %v2142, 16
      %v2206 = vrot.slane %v2204, 1
      %v2207 = vsel %vm1799, %v2202, %v2206
      %v2208 = vshrl.u32 %v2142, 16
      %v2210 = vor.u32 %v2208, %v2206
      %v2212 = vshll.u32 %v2143, 16
      %v2214 = vrot.slane %v2212, 1
      %v2215 = vsel %vm1799, %v2210, %v2214
      %v2216 = vshrl.u32 %v2143, 16
      %v2218 = vor.u32 %v2216, %v2214
      %v2220 = vshll.u32 %v2144, 16
      %v2222 = vrot.slane %v2220, 1
      %v2223 = vsel %vm1799, %v2218, %v2222
      %v2224 = vshrl.u32 %v2144, 16
      %v2226 = vor.u32 %v2224, %v2222
      %v2228 = vshll.u32 %v2145, 16
      %v2230 = vrot.slane %v2228, 1
      %v2231 = vsel %vm1799, %v2226, %v2230
      %v2232 = vshrl.u32 %v2145, 16
      %v2234 = vor.u32 %v2232, %v2230
      %v2236 = vshll.u32 %v2146, 16
      %v2238 = vrot.slane %v2236, 1
      %v2239 = vsel %vm1799, %v2234, %v2238
      %v2240 = vshrl.u32 %v2146, 16
      %v2242 = vor.u32 %v2240, %v2238
      %v2244 = vshll.u32 %v2147, 16
      %v2246 = vrot.slane %v2244, 1
      %v2247 = vsel %vm1799, %v2242, %v2246
      %v2248 = vshrl.u32 %v2147, 16
      %v2250 = vor.u32 %v2248, %v2246
      %v2255 = vunpack.c.l.b16 %v2079
      %v2256 = vunpack.c.l.b16 %v2080
      %v2257 = vunpack.c.l.b16 %v2081
      %v2258 = vunpack.c.l.b16 %v2082
      %v2259 = vpack.c.b16 %v2256, %v2255
      %v2260 = vpack.c.b16 %v2258, %v2257
      %v2264 = vsel %vm598, %v2159, 0
      %v2267 = vsel %vm598, %v2167, 0
      %v2270 = vsel %vm598, %v2175, 0
      %v2273 = vsel %vm598, %v2183, 0
      %v2276 = vsel %vm598, %v2191, 0
      %v2279 = vsel %vm598, %v2199, 0
      %v2282 = vsel %vm598, %v2207, 0
      %v2285 = vsel %vm598, %v2215, 0
      %v2288 = vsel %vm598, %v2223, 0
      %v2291 = vsel %vm598, %v2231, 0
      %v2294 = vsel %vm598, %v2239, 0
      %v2297 = vsel %vm598, %v2247, 0
      %v2300 = vsel %vm598, %v2250, 0
      %2302 = vmatpush.bf16.msra.mxu0 0
      %2303 = vmatpush.bf16.msra.mxu0 0
      %2304 = vmatpush.bf16.msra.mxu0 0
      %2305 = vmatpush.bf16.msra.mxu0 0
      %2306 = vmatpush.bf16.msra.mxu0 0
      %2307 = vmatpush.bf16.msra.mxu0 0
      %2308 = vmatpush.bf16.msra.mxu0 %v2260
      %2309 = vmatpush.bf16.msra.mxu0 %v2259
      %2310 = vmatmul.bf16.gmra.mxu0 %v2264
      %v2311 = vpop.f32.mrf.mxu0
      %v2312 = vadd.f32 0.0, %v2311
      %v2313 = vpop.f32.mrf.mxu0
      %v2314 = vadd.f32 0.0, %v2313
      %2315 = vmatmul.bf16.gmra.mxu0 %v2267
      %v2316 = vpop.f32.mrf.mxu0
      %v2317 = vadd.f32 0.0, %v2316
      %v2318 = vpop.f32.mrf.mxu0
      %v2319 = vadd.f32 0.0, %v2318
      %2320 = vmatmul.bf16.gmra.mxu0 %v2270
      %v2321 = vpop.f32.mrf.mxu0
      %v2322 = vadd.f32 0.0, %v2321
      %v2323 = vpop.f32.mrf.mxu0
      %v2324 = vadd.f32 0.0, %v2323
      %2325 = vmatmul.bf16.gmra.mxu0 %v2273
      %v2326 = vpop.f32.mrf.mxu0
      %v2327 = vadd.f32 0.0, %v2326
      %v2328 = vpop.f32.mrf.mxu0
      %v2329 = vadd.f32 0.0, %v2328
      %2330 = vmatmul.bf16.gmra.mxu0 %v2276
      %v2331 = vpop.f32.mrf.mxu0
      %v2332 = vadd.f32 0.0, %v2331
      %v2333 = vpop.f32.mrf.mxu0
      %v2334 = vadd.f32 0.0, %v2333
      %2335 = vmatmul.bf16.gmra.mxu0 %v2279
      %v2336 = vpop.f32.mrf.mxu0
      %v2337 = vadd.f32 0.0, %v2336
      %v2338 = vpop.f32.mrf.mxu0
      %v2339 = vadd.f32 0.0, %v2338
      %2340 = vmatmul.bf16.gmra.mxu0 %v2282
      %v2341 = vpop.f32.mrf.mxu0
      %v2342 = vadd.f32 0.0, %v2341
      %v2343 = vpop.f32.mrf.mxu0
      %v2344 = vadd.f32 0.0, %v2343
      %2345 = vmatmul.bf16.gmra.mxu0 %v2285
      %v2346 = vpop.f32.mrf.mxu0
      %v2347 = vadd.f32 0.0, %v2346
      %v2348 = vpop.f32.mrf.mxu0
      %v2349 = vadd.f32 0.0, %v2348
      %2350 = vmatmul.bf16.gmra.mxu0 %v2288
      %v2351 = vpop.f32.mrf.mxu0
      %v2352 = vadd.f32 0.0, %v2351
      %v2353 = vpop.f32.mrf.mxu0
      %v2354 = vadd.f32 0.0, %v2353
      %2355 = vmatmul.bf16.gmra.mxu0 %v2291
      %v2356 = vpop.f32.mrf.mxu0
      %v2357 = vadd.f32 0.0, %v2356
      %v2358 = vpop.f32.mrf.mxu0
      %v2359 = vadd.f32 0.0, %v2358
      %2360 = vmatmul.bf16.gmra.mxu0 %v2294
      %v2361 = vpop.f32.mrf.mxu0
      %v2362 = vadd.f32 0.0, %v2361
      %v2363 = vpop.f32.mrf.mxu0
      %v2364 = vadd.f32 0.0, %v2363
      %2365 = vmatmul.bf16.gmra.mxu0 %v2297
      %v2366 = vpop.f32.mrf.mxu0
      %v2367 = vadd.f32 0.0, %v2366
      %v2368 = vpop.f32.mrf.mxu0
      %v2369 = vadd.f32 0.0, %v2368
      %2370 = vmatmul.bf16.gmra.mxu0 %v2300
      %v2371 = vpop.f32.mrf.mxu0
      %v2372 = vadd.f32 0.0, %v2371
      %v2373 = vpop.f32.mrf.mxu0
      %2374 = vdwg.mxu0
      %v2375 = vadd.f32 %v2027, %v2312
      %v2376 = vadd.f32 %v2028, %v2314
      %v2377 = vadd.f32 %v2029, %v2317
      %v2378 = vadd.f32 %v2030, %v2319
      %v2379 = vadd.f32 %v2031, %v2322
      %v2380 = vadd.f32 %v2032, %v2324
      %v2381 = vadd.f32 %v2033, %v2327
      %v2382 = vadd.f32 %v2034, %v2329
      %v2383 = vadd.f32 %v2035, %v2332
      %v2384 = vadd.f32 %v2036, %v2334
      %v2385 = vadd.f32 %v2037, %v2337
      %v2386 = vadd.f32 %v2038, %v2339
      %v2387 = vadd.f32 %v2039, %v2342
      %v2388 = vadd.f32 %v2040, %v2344
      %v2389 = vadd.f32 %v2041, %v2347
      %v2390 = vadd.f32 %v2042, %v2349
      %v2391 = vadd.f32 %v2043, %v2352
      %v2392 = vadd.f32 %v2044, %v2354
      %v2393 = vadd.f32 %v2045, %v2357
      %v2394 = vadd.f32 %v2046, %v2359
      %v2395 = vadd.f32 %v2047, %v2362
      %v2396 = vadd.f32 %v2048, %v2364
      %v2397 = vadd.f32 %v2049, %v2367
      %v2398 = vadd.f32 %v2050, %v2369
      %v2399 = vadd.f32 %v2051, %v2372
      %v2400 = vld [vmem:[#allocation2 + $0xc] sm:$0xe]
      %s2401 = scalar_lea.vmem %s360, 112
      %v2402 = vld [vmem:[%s2401] sm:$0xf]
      %v2403 = vld [vmem:[%s2401 + $0x4] sm:$0xf]
      %v2404 = vld [vmem:[%s2401 + $0x8] sm:$0xf]
      %v2405 = vld [vmem:[%s2401 + $0xc] sm:$0xf]
      %v2407 = vunpack.c.l.b16 %v2400
      %v2408 = vpack.c.b16 %v2110, %v2407
      %vm2409 = vcmask 1046528
      %v2410 = vrot.slane %v2408, 1
      %v2411 = vrot.slane %v2136, 1
      %v2412 = vsel %vm2409, %v2410, %v2411
      %v2413 = vrot.slane %v2137, 1
      %v2414 = vsel %vm2409, %v2411, %v2413
      %v2415 = vrot.slane %v2138, 1
      %v2416 = vsel %vm2409, %v2413, %v2415
      %v2417 = vrot.slane %v2139, 1
      %v2418 = vsel %vm2409, %v2415, %v2417
      %v2419 = vrot.slane %v2140, 1
      %v2420 = vsel %vm2409, %v2417, %v2419
      %v2421 = vrot.slane %v2141, 1
      %v2422 = vsel %vm2409, %v2419, %v2421
      %v2423 = vrot.slane %v2142, 1
      %v2424 = vsel %vm2409, %v2421, %v2423
      %v2425 = vrot.slane %v2143, 1
      %v2426 = vsel %vm2409, %v2423, %v2425
      %v2427 = vrot.slane %v2144, 1
      %v2428 = vsel %vm2409, %v2425, %v2427
      %v2429 = vrot.slane %v2145, 1
      %v2430 = vsel %vm2409, %v2427, %v2429
      %v2431 = vrot.slane %v2146, 1
      %v2432 = vsel %vm2409, %v2429, %v2431
      %v2433 = vrot.slane %v2147, 1
      %v2434 = vsel %vm2409, %v2431, %v2433
      %v2439 = vunpack.c.l.b16 %v2402
      %v2440 = vunpack.c.l.b16 %v2403
      %v2441 = vunpack.c.l.b16 %v2404
      %v2442 = vunpack.c.l.b16 %v2405
      %v2443 = vpack.c.b16 %v2440, %v2439
      %v2444 = vpack.c.b16 %v2442, %v2441
      %v2448 = vsel %vm598, %v2412, 0
      %v2451 = vsel %vm598, %v2414, 0
      %v2454 = vsel %vm598, %v2416, 0
      %v2457 = vsel %vm598, %v2418, 0
      %v2460 = vsel %vm598, %v2420, 0
      %v2463 = vsel %vm598, %v2422, 0
      %v2466 = vsel %vm598, %v2424, 0
      %v2469 = vsel %vm598, %v2426, 0
      %v2472 = vsel %vm598, %v2428, 0
      %v2475 = vsel %vm598, %v2430, 0
      %v2478 = vsel %vm598, %v2432, 0
      %v2481 = vsel %vm598, %v2434, 0
      %v2484 = vsel %vm598, %v2433, 0
      %2486 = vmatpush.bf16.msra.mxu0 0
      %2487 = vmatpush.bf16.msra.mxu0 0
      %2488 = vmatpush.bf16.msra.mxu0 0
      %2489 = vmatpush.bf16.msra.mxu0 0
      %2490 = vmatpush.bf16.msra.mxu0 0
      %2491 = vmatpush.bf16.msra.mxu0 0
      %2492 = vmatpush.bf16.msra.mxu0 %v2444
      %2493 = vmatpush.bf16.msra.mxu0 %v2443
      %2494 = vmatmul.bf16.gmra.mxu0 %v2448
      %v2495 = vpop.f32.mrf.mxu0
      %v2496 = vadd.f32 0.0, %v2495
      %v2497 = vpop.f32.mrf.mxu0
      %v2498 = vadd.f32 0.0, %v2497
      %2499 = vmatmul.bf16.gmra.mxu0 %v2451
      %v2500 = vpop.f32.mrf.mxu0
      %v2501 = vadd.f32 0.0, %v2500
      %v2502 = vpop.f32.mrf.mxu0
      %v2503 = vadd.f32 0.0, %v2502
      %2504 = vmatmul.bf16.gmra.mxu0 %v2454
      %v2505 = vpop.f32.mrf.mxu0
      %v2506 = vadd.f32 0.0, %v2505
      %v2507 = vpop.f32.mrf.mxu0
      %v2508 = vadd.f32 0.0, %v2507
      %2509 = vmatmul.bf16.gmra.mxu0 %v2457
      %v2510 = vpop.f32.mrf.mxu0
      %v2511 = vadd.f32 0.0, %v2510
      %v2512 = vpop.f32.mrf.mxu0
      %v2513 = vadd.f32 0.0, %v2512
      %2514 = vmatmul.bf16.gmra.mxu0 %v2460
      %v2515 = vpop.f32.mrf.mxu0
      %v2516 = vadd.f32 0.0, %v2515
      %v2517 = vpop.f32.mrf.mxu0
      %v2518 = vadd.f32 0.0, %v2517
      %2519 = vmatmul.bf16.gmra.mxu0 %v2463
      %v2520 = vpop.f32.mrf.mxu0
      %v2521 = vadd.f32 0.0, %v2520
      %v2522 = vpop.f32.mrf.mxu0
      %v2523 = vadd.f32 0.0, %v2522
      %2524 = vmatmul.bf16.gmra.mxu0 %v2466
      %v2525 = vpop.f32.mrf.mxu0
      %v2526 = vadd.f32 0.0, %v2525
      %v2527 = vpop.f32.mrf.mxu0
      %v2528 = vadd.f32 0.0, %v2527
      %2529 = vmatmul.bf16.gmra.mxu0 %v2469
      %v2530 = vpop.f32.mrf.mxu0
      %v2531 = vadd.f32 0.0, %v2530
      %v2532 = vpop.f32.mrf.mxu0
      %v2533 = vadd.f32 0.0, %v2532
      %2534 = vmatmul.bf16.gmra.mxu0 %v2472
      %v2535 = vpop.f32.mrf.mxu0
      %v2536 = vadd.f32 0.0, %v2535
      %v2537 = vpop.f32.mrf.mxu0
      %v2538 = vadd.f32 0.0, %v2537
      %2539 = vmatmul.bf16.gmra.mxu0 %v2475
      %v2540 = vpop.f32.mrf.mxu0
      %v2541 = vadd.f32 0.0, %v2540
      %v2542 = vpop.f32.mrf.mxu0
      %v2543 = vadd.f32 0.0, %v2542
      %2544 = vmatmul.bf16.gmra.mxu0 %v2478
      %v2545 = vpop.f32.mrf.mxu0
      %v2546 = vadd.f32 0.0, %v2545
      %v2547 = vpop.f32.mrf.mxu0
      %v2548 = vadd.f32 0.0, %v2547
      %2549 = vmatmul.bf16.gmra.mxu0 %v2481
      %v2550 = vpop.f32.mrf.mxu0
      %v2551 = vadd.f32 0.0, %v2550
      %v2552 = vpop.f32.mrf.mxu0
      %v2553 = vadd.f32 0.0, %v2552
      %2554 = vmatmul.bf16.gmra.mxu0 %v2484
      %v2555 = vpop.f32.mrf.mxu0
      %v2556 = vadd.f32 0.0, %v2555
      %v2557 = vpop.f32.mrf.mxu0
      %2558 = vdwg.mxu0
      %v2559 = vadd.f32 %v2375, %v2496
      %v2560 = vadd.f32 %v2376, %v2498
      %v2561 = vadd.f32 %v2377, %v2501
      %v2562 = vadd.f32 %v2378, %v2503
      %v2563 = vadd.f32 %v2379, %v2506
      %v2564 = vadd.f32 %v2380, %v2508
      %v2565 = vadd.f32 %v2381, %v2511
      %v2566 = vadd.f32 %v2382, %v2513
      %v2567 = vadd.f32 %v2383, %v2516
      %v2568 = vadd.f32 %v2384, %v2518
      %v2569 = vadd.f32 %v2385, %v2521
      %v2570 = vadd.f32 %v2386, %v2523
      %v2571 = vadd.f32 %v2387, %v2526
      %v2572 = vadd.f32 %v2388, %v2528
      %v2573 = vadd.f32 %v2389, %v2531
      %v2574 = vadd.f32 %v2390, %v2533
      %v2575 = vadd.f32 %v2391, %v2536
      %v2576 = vadd.f32 %v2392, %v2538
      %v2577 = vadd.f32 %v2393, %v2541
      %v2578 = vadd.f32 %v2394, %v2543
      %v2579 = vadd.f32 %v2395, %v2546
      %v2580 = vadd.f32 %v2396, %v2548
      %v2581 = vadd.f32 %v2397, %v2551
      %v2582 = vadd.f32 %v2398, %v2553
      %v2583 = vadd.f32 %v2399, %v2556
      %v2584 = vld [vmem:[#allocation2 + $0x70] sm:$0x3]
      %s2585 = scalar_lea.vmem %s360, 128
      %v2586 = vld [vmem:[%s2585] sm:$0xf]
      %v2587 = vld [vmem:[%s2585 + $0x4] sm:$0xf]
      %v2588 = vld [vmem:[%s2585 + $0x8] sm:$0xf]
      %v2589 = vld [vmem:[%s2585 + $0xc] sm:$0xf]
      %v2591 = vunpack.c.l.b16 %v2584
      %v2592 = vpack.c.b16 %v2591, %v2133
      %vm2593 = vsmask.f32 6400
      %v2595 = vshrl.u32 %v2408, 16
      %v2597 = vrot.slane %v2595, 1
      %v2598 = vshll.u32 %v2408, 16
      %v2600 = vrot.slane %v2598, 2
      %v2601 = vor.u32 %v2597, %v2600
      %v2602 = vrot.slane %v2160, 1
      %v2603 = vrot.slane %v2156, 2
      %v2604 = vor.u32 %v2602, %v2603
      %v2605 = vsel %vm2593, %v2601, %v2604
      %v2606 = vrot.slane %v2168, 1
      %v2607 = vrot.slane %v2164, 2
      %v2608 = vor.u32 %v2606, %v2607
      %v2609 = vsel %vm2593, %v2604, %v2608
      %v2610 = vrot.slane %v2176, 1
      %v2611 = vrot.slane %v2172, 2
      %v2612 = vor.u32 %v2610, %v2611
      %v2613 = vsel %vm2593, %v2608, %v2612
      %v2614 = vrot.slane %v2184, 1
      %v2615 = vrot.slane %v2180, 2
      %v2616 = vor.u32 %v2614, %v2615
      %v2617 = vsel %vm2593, %v2612, %v2616
      %v2618 = vrot.slane %v2192, 1
      %v2619 = vrot.slane %v2188, 2
      %v2620 = vor.u32 %v2618, %v2619
      %v2621 = vsel %vm2593, %v2616, %v2620
      %v2622 = vrot.slane %v2200, 1
      %v2623 = vrot.slane %v2196, 2
      %v2624 = vor.u32 %v2622, %v2623
      %v2625 = vsel %vm2593, %v2620, %v2624
      %v2626 = vrot.slane %v2208, 1
      %v2627 = vrot.slane %v2204, 2
      %v2628 = vor.u32 %v2626, %v2627
      %v2629 = vsel %vm2593, %v2624, %v2628
      %v2630 = vrot.slane %v2216, 1
      %v2631 = vrot.slane %v2212, 2
      %v2632 = vor.u32 %v2630, %v2631
      %v2633 = vsel %vm2593, %v2628, %v2632
      %v2634 = vrot.slane %v2224, 1
      %v2635 = vrot.slane %v2220, 2
      %v2636 = vor.u32 %v2634, %v2635
      %v2637 = vsel %vm2593, %v2632, %v2636
      %v2638 = vrot.slane %v2232, 1
      %v2639 = vrot.slane %v2228, 2
      %v2640 = vor.u32 %v2638, %v2639
      %v2641 = vsel %vm2593, %v2636, %v2640
      %v2642 = vrot.slane %v2240, 1
      %v2643 = vrot.slane %v2236, 2
      %v2644 = vor.u32 %v2642, %v2643
      %v2645 = vsel %vm2593, %v2640, %v2644
      %v2647 = vshrl.u32 %v2592, 16
      %v2649 = vrot.slane %v2647, 1
      %v2650 = vshll.u32 %v2592, 16
      %v2652 = vrot.slane %v2650, 2
      %v2653 = vor.u32 %v2649, %v2652
      %v2654 = vsel %vm2593, %v2644, %v2653
      %v2659 = vunpack.c.l.b16 %v2586
      %v2660 = vunpack.c.l.b16 %v2587
      %v2661 = vunpack.c.l.b16 %v2588
      %v2662 = vunpack.c.l.b16 %v2589
      %v2663 = vpack.c.b16 %v2660, %v2659
      %v2664 = vpack.c.b16 %v2662, %v2661
      %v2668 = vsel %vm598, %v2605, 0
      %v2671 = vsel %vm598, %v2609, 0
      %v2674 = vsel %vm598, %v2613, 0
      %v2677 = vsel %vm598, %v2617, 0
      %v2680 = vsel %vm598, %v2621, 0
      %v2683 = vsel %vm598, %v2625, 0
      %v2686 = vsel %vm598, %v2629, 0
      %v2689 = vsel %vm598, %v2633, 0
      %v2692 = vsel %vm598, %v2637, 0
      %v2695 = vsel %vm598, %v2641, 0
      %v2698 = vsel %vm598, %v2645, 0
      %v2701 = vsel %vm598, %v2654, 0
      %v2704 = vsel %vm598, %v2653, 0
      %2706 = vmatpush.bf16.msra.mxu0 0
      %2707 = vmatpush.bf16.msra.mxu0 0
      %2708 = vmatpush.bf16.msra.mxu0 0
      %2709 = vmatpush.bf16.msra.mxu0 0
      %2710 = vmatpush.bf16.msra.mxu0 0
      %2711 = vmatpush.bf16.msra.mxu0 0
      %2712 = vmatpush.bf16.msra.mxu0 %v2664
      %2713 = vmatpush.bf16.msra.mxu0 %v2663
      %2714 = vmatmul.bf16.gmra.mxu0 %v2668
      %v2715 = vpop.f32.mrf.mxu0
      %v2716 = vadd.f32 0.0, %v2715
      %v2717 = vpop.f32.mrf.mxu0
      %v2718 = vadd.f32 0.0, %v2717
      %2719 = vmatmul.bf16.gmra.mxu0 %v2671
      %v2720 = vpop.f32.mrf.mxu0
      %v2721 = vadd.f32 0.0, %v2720
      %v2722 = vpop.f32.mrf.mxu0
      %v2723 = vadd.f32 0.0, %v2722
      %2724 = vmatmul.bf16.gmra.mxu0 %v2674
      %v2725 = vpop.f32.mrf.mxu0
      %v2726 = vadd.f32 0.0, %v2725
      %v2727 = vpop.f32.mrf.mxu0
      %v2728 = vadd.f32 0.0, %v2727
      %2729 = vmatmul.bf16.gmra.mxu0 %v2677
      %v2730 = vpop.f32.mrf.mxu0
      %v2731 = vadd.f32 0.0, %v2730
      %v2732 = vpop.f32.mrf.mxu0
      %v2733 = vadd.f32 0.0, %v2732
      %2734 = vmatmul.bf16.gmra.mxu0 %v2680
      %v2735 = vpop.f32.mrf.mxu0
      %v2736 = vadd.f32 0.0, %v2735
      %v2737 = vpop.f32.mrf.mxu0
      %v2738 = vadd.f32 0.0, %v2737
      %2739 = vmatmul.bf16.gmra.mxu0 %v2683
      %v2740 = vpop.f32.mrf.mxu0
      %v2741 = vadd.f32 0.0, %v2740
      %v2742 = vpop.f32.mrf.mxu0
      %v2743 = vadd.f32 0.0, %v2742
      %2744 = vmatmul.bf16.gmra.mxu0 %v2686
      %v2745 = vpop.f32.mrf.mxu0
      %v2746 = vadd.f32 0.0, %v2745
      %v2747 = vpop.f32.mrf.mxu0
      %v2748 = vadd.f32 0.0, %v2747
      %2749 = vmatmul.bf16.gmra.mxu0 %v2689
      %v2750 = vpop.f32.mrf.mxu0
      %v2751 = vadd.f32 0.0, %v2750
      %v2752 = vpop.f32.mrf.mxu0
      %v2753 = vadd.f32 0.0, %v2752
      %2754 = vmatmul.bf16.gmra.mxu0 %v2692
      %v2755 = vpop.f32.mrf.mxu0
      %v2756 = vadd.f32 0.0, %v2755
      %v2757 = vpop.f32.mrf.mxu0
      %v2758 = vadd.f32 0.0, %v2757
      %2759 = vmatmul.bf16.gmra.mxu0 %v2695
      %v2760 = vpop.f32.mrf.mxu0
      %v2761 = vadd.f32 0.0, %v2760
      %v2762 = vpop.f32.mrf.mxu0
      %v2763 = vadd.f32 0.0, %v2762
      %2764 = vmatmul.bf16.gmra.mxu0 %v2698
      %v2765 = vpop.f32.mrf.mxu0
      %v2766 = vadd.f32 0.0, %v2765
      %v2767 = vpop.f32.mrf.mxu0
      %v2768 = vadd.f32 0.0, %v2767
      %2769 = vmatmul.bf16.gmra.mxu0 %v2701
      %v2770 = vpop.f32.mrf.mxu0
      %v2771 = vadd.f32 0.0, %v2770
      %v2772 = vpop.f32.mrf.mxu0
      %v2773 = vadd.f32 0.0, %v2772
      %2774 = vmatmul.bf16.gmra.mxu0 %v2704
      %v2775 = vpop.f32.mrf.mxu0
      %v2776 = vadd.f32 0.0, %v2775
      %v2777 = vpop.f32.mrf.mxu0
      %2778 = vdwg.mxu0
      %v2779 = vadd.f32 %v2559, %v2716
      %v2780 = vadd.f32 %v2560, %v2718
      %v2781 = vadd.f32 %v2561, %v2721
      %v2782 = vadd.f32 %v2562, %v2723
      %v2783 = vadd.f32 %v2563, %v2726
      %v2784 = vadd.f32 %v2564, %v2728
      %v2785 = vadd.f32 %v2565, %v2731
      %v2786 = vadd.f32 %v2566, %v2733
      %v2787 = vadd.f32 %v2567, %v2736
      %v2788 = vadd.f32 %v2568, %v2738
      %v2789 = vadd.f32 %v2569, %v2741
      %v2790 = vadd.f32 %v2570, %v2743
      %v2791 = vadd.f32 %v2571, %v2746
      %v2792 = vadd.f32 %v2572, %v2748
      %v2793 = vadd.f32 %v2573, %v2751
      %v2794 = vadd.f32 %v2574, %v2753
      %v2795 = vadd.f32 %v2575, %v2756
      %v2796 = vadd.f32 %v2576, %v2758
      %v2797 = vadd.f32 %v2577, %v2761
      %v2798 = vadd.f32 %v2578, %v2763
      %v2799 = vadd.f32 %v2579, %v2766
      %v2800 = vadd.f32 %v2580, %v2768
      %v2801 = vadd.f32 %v2581, %v2771
      %v2802 = vadd.f32 %v2582, %v2773
      %v2803 = vadd.f32 %v2583, %v2776
      %v2804 = vld [vmem:[%s364] sm:$0x1]
      %v2806 = vperm.slane %v2804, 0
      %v2808 = vmul.f32 %v2779, %v2806
      %v2809 = vmul.f32 %v2780, %v2806
      %v2810 = vmul.f32 %v2781, %v2806
      %v2811 = vmul.f32 %v2782, %v2806
      %v2812 = vmul.f32 %v2783, %v2806
      %v2813 = vmul.f32 %v2784, %v2806
      %v2814 = vmul.f32 %v2785, %v2806
      %v2815 = vmul.f32 %v2786, %v2806
      %v2816 = vmul.f32 %v2787, %v2806
      %v2817 = vmul.f32 %v2788, %v2806
      %v2818 = vmul.f32 %v2789, %v2806
      %v2819 = vmul.f32 %v2790, %v2806
      %v2820 = vmul.f32 %v2791, %v2806
      %v2821 = vmul.f32 %v2792, %v2806
      %v2822 = vmul.f32 %v2793, %v2806
      %v2823 = vmul.f32 %v2794, %v2806
      %v2824 = vmul.f32 %v2795, %v2806
      %v2825 = vmul.f32 %v2796, %v2806
      %v2826 = vmul.f32 %v2797, %v2806
      %v2827 = vmul.f32 %v2798, %v2806
      %v2828 = vmul.f32 %v2799, %v2806
      %v2829 = vmul.f32 %v2800, %v2806
      %v2830 = vmul.f32 %v2801, %v2806
      %v2831 = vmul.f32 %v2802, %v2806
      %v2832 = vmul.f32 %v2803, %v2806
      %v2833 = vld [vmem:[%s367] sm:$0x1]
      %v2835 = vperm.slane %v2833, 0
      %v2837 = vadd.f32 %v2808, %v2835
      %v2838 = vadd.f32 %v2809, %v2835
      %v2839 = vadd.f32 %v2810, %v2835
      %v2840 = vadd.f32 %v2811, %v2835
      %v2841 = vadd.f32 %v2812, %v2835
      %v2842 = vadd.f32 %v2813, %v2835
      %v2843 = vadd.f32 %v2814, %v2835
      %v2844 = vadd.f32 %v2815, %v2835
      %v2845 = vadd.f32 %v2816, %v2835
      %v2846 = vadd.f32 %v2817, %v2835
      %v2847 = vadd.f32 %v2818, %v2835
      %v2848 = vadd.f32 %v2819, %v2835
      %v2849 = vadd.f32 %v2820, %v2835
      %v2850 = vadd.f32 %v2821, %v2835
      %v2851 = vadd.f32 %v2822, %v2835
      %v2852 = vadd.f32 %v2823, %v2835
      %v2853 = vadd.f32 %v2824, %v2835
      %v2854 = vadd.f32 %v2825, %v2835
      %v2855 = vadd.f32 %v2826, %v2835
      %v2856 = vadd.f32 %v2827, %v2835
      %v2857 = vadd.f32 %v2828, %v2835
      %v2858 = vadd.f32 %v2829, %v2835
      %v2859 = vadd.f32 %v2830, %v2835
      %v2860 = vadd.f32 %v2831, %v2835
      %v2861 = vadd.f32 %v2832, %v2835
      %p2862 = scmp.gt.s32.totalorder %s24, 0
      %p2863 = scmp.lt.s32.totalorder %s24, 0
      %s2864 = ssub.s32 0, %s24
      %s2865 = scalar_select %p2863, %s2864, %s24
      %s2866 = sand.u32 %s2865, 1
      %s2867 = ssub.s32 0, %s2866
      %s2868 = scalar_select %p2863, %s2867, %s2866
      %p2869 = scmp.ne.s32.totalorder %s2868, 0
      %p2870 = scmp.lt.s32.totalorder %s2868, 0
      %p2871 = pnand %p2870, %p2869
      %p2872 = pneg %p2871
      %s2873 = sadd.s32 %s2868, 2
      %s2874 = scalar_select %p2872, %s2873, %s2868
      %p2875 = scmp.eq.s32.totalorder %s2874, 0
      %p2876 = pnand %p2862, %p2875
      %p2877 = pneg %p2876
      %v2878 = vld [vmem:[#allocation3] sm:$0xff]
      %v2879 = vld [vmem:[#allocation3 + $0x8] sm:$0xff]
      %v2880 = vld [vmem:[#allocation3 + $0x10] sm:$0xff]
      %v2881 = vld [vmem:[#allocation3 + $0x18] sm:$0xff]
      %v2882 = vld [vmem:[#allocation3 + $0x20] sm:$0xff]
      %v2883 = vld [vmem:[#allocation3 + $0x28] sm:$0xff]
      %v2884 = vld [vmem:[#allocation3 + $0x30] sm:$0xff]
      %v2885 = vld [vmem:[#allocation3 + $0x38] sm:$0xff]
      %v2886 = vld [vmem:[#allocation3 + $0x40] sm:$0xff]
      %v2887 = vld [vmem:[#allocation3 + $0x48] sm:$0xff]
      %v2888 = vld [vmem:[#allocation3 + $0x50] sm:$0xff]
      %v2889 = vld [vmem:[#allocation3 + $0x58] sm:$0xff]
      %v2890 = vld [vmem:[#allocation3 + $0x60] sm:$0xff]
      %v2891 = vld [vmem:[#allocation3 + $0x68] sm:$0xff]
      %v2892 = vld [vmem:[#allocation3 + $0x70] sm:$0xff]
      %v2893 = vld [vmem:[#allocation3 + $0x78] sm:$0xff]
      %v2894 = vld [vmem:[#allocation3 + $0x80] sm:$0xff]
      %v2895 = vld [vmem:[#allocation3 + $0x88] sm:$0xff]
      %v2896 = vld [vmem:[#allocation3 + $0x90] sm:$0xff]
      %v2897 = vld [vmem:[#allocation3 + $0x98] sm:$0xff]
      %v2898 = vld [vmem:[#allocation3 + $0xa0] sm:$0xff]
      %v2899 = vld [vmem:[#allocation3 + $0xa8] sm:$0xff]
      %v2900 = vld [vmem:[#allocation3 + $0xb0] sm:$0xff]
      %v2901 = vld [vmem:[#allocation3 + $0xb8] sm:$0xff]
      %v2902 = vld [vmem:[#allocation3 + $0xc0] sm:$0xff]
      %s2903 = scalar_select %p2877, 1, 0
      %v2904 = vstv %s2903
      %vm2905 = vcmp.eq.s32.totalorder %v2904, 1
      %v2906 = vsel %vm2905, %v2878, 0.0
      %v2907 = vsel %vm2905, %v2879, 0.0
      %v2908 = vsel %vm2905, %v2880, 0.0
      %v2909 = vsel %vm2905, %v2881, 0.0
      %v2910 = vsel %vm2905, %v2882, 0.0
      %v2911 = vsel %vm2905, %v2883, 0.0
      %v2912 = vsel %vm2905, %v2884, 0.0
      %v2913 = vsel %vm2905, %v2885, 0.0
      %v2914 = vsel %vm2905, %v2886, 0.0
      %v2915 = vsel %vm2905, %v2887, 0.0
      %v2916 = vsel %vm2905, %v2888, 0.0
      %v2917 = vsel %vm2905, %v2889, 0.0
      %v2918 = vsel %vm2905, %v2890, 0.0
      %v2919 = vsel %vm2905, %v2891, 0.0
      %v2920 = vsel %vm2905, %v2892, 0.0
      %v2921 = vsel %vm2905, %v2893, 0.0
      %v2922 = vsel %vm2905, %v2894, 0.0
      %v2923 = vsel %vm2905, %v2895, 0.0
      %v2924 = vsel %vm2905, %v2896, 0.0
      %v2925 = vsel %vm2905, %v2897, 0.0
      %v2926 = vsel %vm2905, %v2898, 0.0
      %v2927 = vsel %vm2905, %v2899, 0.0
      %v2928 = vsel %vm2905, %v2900, 0.0
      %v2929 = vsel %vm2905, %v2901, 0.0
      %v2930 = vsel %vm2905, %v2902, 0.0
      %v2931 = vadd.f32 %v2837, %v2906
      %v2932 = vadd.f32 %v2838, %v2907
      %v2933 = vadd.f32 %v2839, %v2908
      %v2934 = vadd.f32 %v2840, %v2909
      %v2935 = vadd.f32 %v2841, %v2910
      %v2936 = vadd.f32 %v2842, %v2911
      %v2937 = vadd.f32 %v2843, %v2912
      %v2938 = vadd.f32 %v2844, %v2913
      %v2939 = vadd.f32 %v2845, %v2914
      %v2940 = vadd.f32 %v2846, %v2915
      %v2941 = vadd.f32 %v2847, %v2916
      %v2942 = vadd.f32 %v2848, %v2917
      %v2943 = vadd.f32 %v2849, %v2918
      %v2944 = vadd.f32 %v2850, %v2919
      %v2945 = vadd.f32 %v2851, %v2920
      %v2946 = vadd.f32 %v2852, %v2921
      %v2947 = vadd.f32 %v2853, %v2922
      %v2948 = vadd.f32 %v2854, %v2923
      %v2949 = vadd.f32 %v2855, %v2924
      %v2950 = vadd.f32 %v2856, %v2925
      %v2951 = vadd.f32 %v2857, %v2926
      %v2952 = vadd.f32 %v2858, %v2927
      %v2953 = vadd.f32 %v2859, %v2928
      %v2954 = vadd.f32 %v2860, %v2929
      %v2955 = vadd.f32 %v2861, %v2930
      %v2956 = vmax.f32 %v2931, 0.0
      %v2957 = vmax.f32 %v2932, 0.0
      %v2958 = vmax.f32 %v2933, 0.0
      %v2959 = vmax.f32 %v2934, 0.0
      %v2960 = vmax.f32 %v2935, 0.0
      %v2961 = vmax.f32 %v2936, 0.0
      %v2962 = vmax.f32 %v2937, 0.0
      %v2963 = vmax.f32 %v2938, 0.0
      %v2964 = vmax.f32 %v2939, 0.0
      %v2965 = vmax.f32 %v2940, 0.0
      %v2966 = vmax.f32 %v2941, 0.0
      %v2967 = vmax.f32 %v2942, 0.0
      %v2968 = vmax.f32 %v2943, 0.0
      %v2969 = vmax.f32 %v2944, 0.0
      %v2970 = vmax.f32 %v2945, 0.0
      %v2971 = vmax.f32 %v2946, 0.0
      %v2972 = vmax.f32 %v2947, 0.0
      %v2973 = vmax.f32 %v2948, 0.0
      %v2974 = vmax.f32 %v2949, 0.0
      %v2975 = vmax.f32 %v2950, 0.0
      %v2976 = vmax.f32 %v2951, 0.0
      %v2977 = vmax.f32 %v2952, 0.0
      %v2978 = vmax.f32 %v2953, 0.0
      %v2979 = vmax.f32 %v2954, 0.0
      %v2980 = vmax.f32 %v2955, 0.0
      %v2981 = vld [vmem:[%s4] sm:$0xff]
      %v2982 = vld [vmem:[%s4 + $0x8] sm:$0xff]
      %v2983 = vld [vmem:[%s4 + $0x10] sm:$0xff]
      %v2984 = vld [vmem:[%s4 + $0x18] sm:$0xff]
      %v2985 = vld [vmem:[%s4 + $0x20] sm:$0xff]
      %v2986 = vld [vmem:[%s4 + $0x28] sm:$0xff]
      %v2987 = vld [vmem:[%s4 + $0x30] sm:$0xff]
      %v2988 = vld [vmem:[%s4 + $0x38] sm:$0xff]
      %v2989 = vld [vmem:[%s4 + $0x40] sm:$0xff]
      %v2990 = vld [vmem:[%s4 + $0x48] sm:$0xff]
      %v2991 = vld [vmem:[%s4 + $0x50] sm:$0xff]
      %v2992 = vld [vmem:[%s4 + $0x58] sm:$0xff]
      %v2993 = vld [vmem:[%s4 + $0x60] sm:$0xff]
      %v2994 = vld [vmem:[%s4 + $0x68] sm:$0xff]
      %v2995 = vld [vmem:[%s4 + $0x70] sm:$0xff]
      %v2996 = vld [vmem:[%s4 + $0x78] sm:$0xff]
      %v2997 = vld [vmem:[%s4 + $0x80] sm:$0xff]
      %v2998 = vld [vmem:[%s4 + $0x88] sm:$0xff]
      %v2999 = vld [vmem:[%s4 + $0x90] sm:$0xff]
      %v3000 = vld [vmem:[%s4 + $0x98] sm:$0xff]
      %v3001 = vld [vmem:[%s4 + $0xa0] sm:$0xff]
      %v3002 = vld [vmem:[%s4 + $0xa8] sm:$0xff]
      %v3003 = vld [vmem:[%s4 + $0xb0] sm:$0xff]
      %v3004 = vld [vmem:[%s4 + $0xb8] sm:$0xff]
      %v3005 = vld [vmem:[%s4 + $0xc0] sm:$0xff]
      %v3006 = vmul.f32 %v2956, %v2981
      %v3007 = vmul.f32 %v2957, %v2982
      %v3008 = vmul.f32 %v2958, %v2983
      %v3009 = vmul.f32 %v2959, %v2984
      %v3010 = vmul.f32 %v2960, %v2985
      %v3011 = vmul.f32 %v2961, %v2986
      %v3012 = vmul.f32 %v2962, %v2987
      %v3013 = vmul.f32 %v2963, %v2988
      %v3014 = vmul.f32 %v2964, %v2989
      %v3015 = vmul.f32 %v2965, %v2990
      %v3016 = vmul.f32 %v2966, %v2991
      %v3017 = vmul.f32 %v2967, %v2992
      %v3018 = vmul.f32 %v2968, %v2993
      %v3019 = vmul.f32 %v2969, %v2994
      %v3020 = vmul.f32 %v2970, %v2995
      %v3021 = vmul.f32 %v2971, %v2996
      %v3022 = vmul.f32 %v2972, %v2997
      %v3023 = vmul.f32 %v2973, %v2998
      %v3024 = vmul.f32 %v2974, %v2999
      %v3025 = vmul.f32 %v2975, %v3000
      %v3026 = vmul.f32 %v2976, %v3001
      %v3027 = vmul.f32 %v2977, %v3002
      %v3028 = vmul.f32 %v2978, %v3003
      %v3029 = vmul.f32 %v2979, %v3004
      %v3030 = vmul.f32 %v2980, %v3005
      %v3031 = vpack.c.bf16 %v3006, %v3006
      %v3032 = vpack.c.bf16 %v3007, %v3007
      %v3033 = vpack.c.bf16 %v3008, %v3008
      %v3034 = vpack.c.bf16 %v3009, %v3009
      %v3035 = vpack.c.bf16 %v3010, %v3010
      %v3036 = vpack.c.bf16 %v3011, %v3011
      %v3037 = vpack.c.bf16 %v3012, %v3012
      %v3038 = vpack.c.bf16 %v3013, %v3013
      %v3039 = vpack.c.bf16 %v3014, %v3014
      %v3040 = vpack.c.bf16 %v3015, %v3015
      %v3041 = vpack.c.bf16 %v3016, %v3016
      %v3042 = vpack.c.bf16 %v3017, %v3017
      %v3043 = vpack.c.bf16 %v3018, %v3018
      %v3044 = vpack.c.bf16 %v3019, %v3019
      %v3045 = vpack.c.bf16 %v3020, %v3020
      %v3046 = vpack.c.bf16 %v3021, %v3021
      %v3047 = vpack.c.bf16 %v3022, %v3022
      %v3048 = vpack.c.bf16 %v3023, %v3023
      %v3049 = vpack.c.bf16 %v3024, %v3024
      %v3050 = vpack.c.bf16 %v3025, %v3025
      %v3051 = vpack.c.bf16 %v3026, %v3026
      %v3052 = vpack.c.bf16 %v3027, %v3027
      %v3053 = vpack.c.bf16 %v3028, %v3028
      %v3054 = vpack.c.bf16 %v3029, %v3029
      %v3055 = vpack.c.bf16 %v3030, %v3030
      %vm3056 = vcmask 257024
      %3057 = vst.msk [vmem:[#allocation2 + $0x8] sm:$0xf] %vm3056, %v3031
      %3058 = vst.msk [vmem:[#allocation2 + $0xc] sm:$0xf] %vm3056, %v3032
      %3059 = vst.msk [vmem:[#allocation2 + $0x10] sm:$0xf] %vm3056, %v3033
      %3060 = vst.msk [vmem:[#allocation2 + $0x14] sm:$0xf] %vm3056, %v3034
      %3061 = vst.msk [vmem:[#allocation2 + $0x18] sm:$0xf] %vm3056, %v3035
      %3062 = vst.msk [vmem:[#allocation2 + $0x1c] sm:$0xf] %vm3056, %v3036
      %3063 = vst.msk [vmem:[#allocation2 + $0x20] sm:$0xf] %vm3056, %v3037
      %3064 = vst.msk [vmem:[#allocation2 + $0x24] sm:$0xf] %vm3056, %v3038
      %3065 = vst.msk [vmem:[#allocation2 + $0x28] sm:$0xf] %vm3056, %v3039
      %3066 = vst.msk [vmem:[#allocation2 + $0x2c] sm:$0xf] %vm3056, %v3040
      %3067 = vst.msk [vmem:[#allocation2 + $0x30] sm:$0xf] %vm3056, %v3041
      %3068 = vst.msk [vmem:[#allocation2 + $0x34] sm:$0xf] %vm3056, %v3042
      %3069 = vst.msk [vmem:[#allocation2 + $0x38] sm:$0xf] %vm3056, %v3043
      %3070 = vst.msk [vmem:[#allocation2 + $0x3c] sm:$0xf] %vm3056, %v3044
      %3071 = vst.msk [vmem:[#allocation2 + $0x40] sm:$0xf] %vm3056, %v3045
      %3072 = vst.msk [vmem:[#allocation2 + $0x44] sm:$0xf] %vm3056, %v3046
      %3073 = vst.msk [vmem:[#allocation2 + $0x48] sm:$0xf] %vm3056, %v3047
      %3074 = vst.msk [vmem:[#allocation2 + $0x4c] sm:$0xf] %vm3056, %v3048
      %3075 = vst.msk [vmem:[#allocation2 + $0x50] sm:$0xf] %vm3056, %v3049
      %3076 = vst.msk [vmem:[#allocation2 + $0x54] sm:$0xf] %vm3056, %v3050
      %3077 = vst.msk [vmem:[#allocation2 + $0x58] sm:$0xf] %vm3056, %v3051
      %3078 = vst.msk [vmem:[#allocation2 + $0x5c] sm:$0xf] %vm3056, %v3052
      %3079 = vst.msk [vmem:[#allocation2 + $0x60] sm:$0xf] %vm3056, %v3053
      %3080 = vst.msk [vmem:[#allocation2 + $0x64] sm:$0xf] %vm3056, %v3054
      %3081 = vst.msk [vmem:[#allocation2 + $0x68] sm:$0xf] %vm3056, %v3055
      %p3082 = scmp.lt.s32.totalorder %s24, 4
      %p3083 = pnand %p2875, %p3082
      %p3084 = pneg %p3083
      // Predicated region
      $region57: #{alphago_forward.2} parent=51 // pred_check
        _
      $region58: #{alphago_forward.2} parent=51 // pred_check_branch
        %3086 = sbr.rel (%p3083) target = $region60
      $region59: #{alphago_forward.2} parent=51 // pred_region
        %3087 = vst.msk [vmem:[#allocation3] sm:$0xff] %vm598, %v3006
        %3088 = vst.msk [vmem:[#allocation3 + $0x8] sm:$0xff] %vm598, %v3007
        %3089 = vst.msk [vmem:[#allocation3 + $0x10] sm:$0xff] %vm598, %v3008
        %3090 = vst.msk [vmem:[#allocation3 + $0x18] sm:$0xff] %vm598, %v3009
        %3091 = vst.msk [vmem:[#allocation3 + $0x20] sm:$0xff] %vm598, %v3010
        %3092 = vst.msk [vmem:[#allocation3 + $0x28] sm:$0xff] %vm598, %v3011
        %3093 = vst.msk [vmem:[#allocation3 + $0x30] sm:$0xff] %vm598, %v3012
        %3094 = vst.msk [vmem:[#allocation3 + $0x38] sm:$0xff] %vm598, %v3013
        %3095 = vst.msk [vmem:[#allocation3 + $0x40] sm:$0xff] %vm598, %v3014
        %3096 = vst.msk [vmem:[#allocation3 + $0x48] sm:$0xff] %vm598, %v3015
        %3097 = vst.msk [vmem:[#allocation3 + $0x50] sm:$0xff] %vm598, %v3016
        %3098 = vst.msk [vmem:[#allocation3 + $0x58] sm:$0xff] %vm598, %v3017
        %3099 = vst.msk [vmem:[#allocation3 + $0x60] sm:$0xff] %vm598, %v3018
        %3100 = vst.msk [vmem:[#allocation3 + $0x68] sm:$0xff] %vm598, %v3019
        %3101 = vst.msk [vmem:[#allocation3 + $0x70] sm:$0xff] %vm598, %v3020
        %3102 = vst.msk [vmem:[#allocation3 + $0x78] sm:$0xff] %vm598, %v3021
        %3103 = vst.msk [vmem:[#allocation3 + $0x80] sm:$0xff] %vm598, %v3022
        %3104 = vst.msk [vmem:[#allocation3 + $0x88] sm:$0xff] %vm598, %v3023
        %3105 = vst.msk [vmem:[#allocation3 + $0x90] sm:$0xff] %vm598, %v3024
        %3106 = vst.msk [vmem:[#allocation3 + $0x98] sm:$0xff] %vm598, %v3025
        %3107 = vst.msk [vmem:[#allocation3 + $0xa0] sm:$0xff] %vm598, %v3026
        %3108 = vst.msk [vmem:[#allocation3 + $0xa8] sm:$0xff] %vm598, %v3027
        %3109 = vst.msk [vmem:[#allocation3 + $0xb0] sm:$0xff] %vm598, %v3028
        %3110 = vst.msk [vmem:[#allocation3 + $0xb8] sm:$0xff] %vm598, %v3029
        %3111 = vst.msk [vmem:[#allocation3 + $0xc0] sm:$0xff] %vm598, %v3030
      $region60: #{alphago_forward.2} parent=51 // pred_fallthru
        _
      %p3112 = scmp.eq.s32.totalorder %s24, 4
      // Predicated region
      $region61: #{alphago_forward.2} parent=51 // pred_check
        %p3113 = pneg %p3112
      $region62: #{alphago_forward.2} parent=51 // pred_check_branch
        %3115 = sbr.rel (%p3113) target = $region64
      $region63: #{alphago_forward.2} parent=51 // pred_region
        %v3116 = vld [vmem:[#allocation2] sm:$0xc]
        %v3117 = vld [vmem:[#allocation2 + $0x4] sm:$0xf]
        %v3118 = vld [vmem:[#allocation2 + $0x8] sm:$0xf]
        %v3119 = vld [vmem:[#allocation2 + $0xc] sm:$0xf]
        %v3120 = vld [vmem:[#allocation2 + $0x10] sm:$0xf]
        %v3121 = vld [vmem:[#allocation2 + $0x14] sm:$0xf]
        %v3122 = vld [vmem:[#allocation2 + $0x18] sm:$0xf]
        %v3123 = vld [vmem:[#allocation2 + $0x1c] sm:$0xf]
        %v3124 = vld [vmem:[#allocation2 + $0x20] sm:$0xf]
        %v3125 = vld [vmem:[#allocation2 + $0x24] sm:$0xf]
        %v3126 = vld [vmem:[#allocation2 + $0x28] sm:$0xf]
        %v3127 = vld [vmem:[#allocation2 + $0x2c] sm:$0xf]
        %v3128 = vld [vmem:[#allocation2 + $0x30] sm:$0xf]
        %v3129 = vld [vmem:[#allocation2 + $0x34] sm:$0xf]
        %v3130 = vld [vmem:[#allocation2 + $0x38] sm:$0xf]
        %v3131 = vld [vmem:[#allocation2 + $0x3c] sm:$0xf]
        %v3132 = vld [vmem:[#allocation2 + $0x40] sm:$0xf]
        %v3133 = vld [vmem:[#allocation2 + $0x44] sm:$0xf]
        %v3134 = vld [vmem:[#allocation2 + $0x48] sm:$0xf]
        %v3135 = vld [vmem:[#allocation2 + $0x4c] sm:$0xf]
        %v3136 = vld [vmem:[#allocation2 + $0x50] sm:$0xf]
        %v3137 = vld [vmem:[#allocation2 + $0x54] sm:$0xf]
        %v3138 = vld [vmem:[#allocation2 + $0x58] sm:$0xf]
        %v3139 = vld [vmem:[#allocation2 + $0x5c] sm:$0xf]
        %v3140 = vld [vmem:[#allocation2 + $0x60] sm:$0xf]
        %v3141 = vld [vmem:[#allocation2 + $0x64] sm:$0x7]
        %v3142 = vld [vmem:[%s5] sm:$0xf]
        %v3143 = vld [vmem:[%s5 + $0x4] sm:$0xf]
        %v3144 = vld [vmem:[%s5 + $0x8] sm:$0xf]
        %v3145 = vld [vmem:[%s5 + $0xc] sm:$0xf]
        %v3146 = vld [vmem:[#allocation2] sm:$0x8]
        %s3147 = scalar_lea.vmem %s5, 16
        %v3148 = vld [vmem:[%s3147] sm:$0xf]
        %v3149 = vld [vmem:[%s3147 + $0x4] sm:$0xf]
        %v3150 = vld [vmem:[%s3147 + $0x8] sm:$0xf]
        %v3151 = vld [vmem:[%s3147 + $0xc] sm:$0xf]
        %v3178 = vunpack.c.l.b16 %v3146
        %v3179 = vunpack.c.l.b16 %v3117
        %v3180 = vunpack.c.l.b16 %v3118
        %v3181 = vunpack.c.l.b16 %v3119
        %v3182 = vunpack.c.l.b16 %v3120
        %v3183 = vunpack.c.l.b16 %v3121
        %v3184 = vunpack.c.l.b16 %v3122
        %v3185 = vunpack.c.l.b16 %v3123
        %v3186 = vunpack.c.l.b16 %v3124
        %v3187 = vunpack.c.l.b16 %v3125
        %v3188 = vunpack.c.l.b16 %v3126
        %v3189 = vunpack.c.l.b16 %v3127
        %v3190 = vunpack.c.l.b16 %v3128
        %v3191 = vunpack.c.l.b16 %v3129
        %v3192 = vunpack.c.l.b16 %v3130
        %v3193 = vunpack.c.l.b16 %v3131
        %v3194 = vunpack.c.l.b16 %v3132
        %v3195 = vunpack.c.l.b16 %v3133
        %v3196 = vunpack.c.l.b16 %v3134
        %v3197 = vunpack.c.l.b16 %v3135
        %v3198 = vunpack.c.l.b16 %v3136
        %v3199 = vunpack.c.l.b16 %v3137
        %v3200 = vunpack.c.l.b16 %v3138
        %v3201 = vunpack.c.l.b16 %v3139
        %v3202 = vunpack.c.l.b16 %v3140
        %v3203 = vunpack.c.l.b16 %v3141
        %v3204 = vpack.c.b16 %v3179, %v3178
        %v3205 = vpack.c.b16 %v3181, %v3180
        %v3206 = vpack.c.b16 %v3183, %v3182
        %v3207 = vpack.c.b16 %v3185, %v3184
        %v3208 = vpack.c.b16 %v3187, %v3186
        %v3209 = vpack.c.b16 %v3189, %v3188
        %v3210 = vpack.c.b16 %v3191, %v3190
        %v3211 = vpack.c.b16 %v3193, %v3192
        %v3212 = vpack.c.b16 %v3195, %v3194
        %v3213 = vpack.c.b16 %v3197, %v3196
        %v3214 = vpack.c.b16 %v3199, %v3198
        %v3215 = vpack.c.b16 %v3201, %v3200
        %v3216 = vpack.c.b16 %v3203, %v3202
        %v3217 = vrot.slane %v3204, 3
        %v3218 = vrot.slane %v3205, 3
        %v3219 = vsel %vm560, %v3217, %v3218
        %v3220 = vrot.slane %v3206, 3
        %v3221 = vsel %vm560, %v3218, %v3220
        %v3222 = vrot.slane %v3207, 3
        %v3223 = vsel %vm560, %v3220, %v3222
        %v3224 = vrot.slane %v3208, 3
        %v3225 = vsel %vm560, %v3222, %v3224
        %v3226 = vrot.slane %v3209, 3
        %v3227 = vsel %vm560, %v3224, %v3226
        %v3228 = vrot.slane %v3210, 3
        %v3229 = vsel %vm560, %v3226, %v3228
        %v3230 = vrot.slane %v3211, 3
        %v3231 = vsel %vm560, %v3228, %v3230
        %v3232 = vrot.slane %v3212, 3
        %v3233 = vsel %vm560, %v3230, %v3232
        %v3234 = vrot.slane %v3213, 3
        %v3235 = vsel %vm560, %v3232, %v3234
        %v3236 = vrot.slane %v3214, 3
        %v3237 = vsel %vm560, %v3234, %v3236
        %v3238 = vrot.slane %v3215, 3
        %v3239 = vsel %vm560, %v3236, %v3238
        %v3240 = vrot.slane %v3216, 3
        %v3241 = vsel %vm560, %v3238, %v3240
        %v3246 = vunpack.c.l.b16 %v3148
        %v3247 = vunpack.c.l.b16 %v3149
        %v3248 = vunpack.c.l.b16 %v3150
        %v3249 = vunpack.c.l.b16 %v3151
        %v3250 = vpack.c.b16 %v3247, %v3246
        %v3251 = vpack.c.b16 %v3249, %v3248
        %v3255 = vsel %vm598, %v3219, 0
        %v3258 = vsel %vm598, %v3221, 0
        %v3261 = vsel %vm598, %v3223, 0
        %v3264 = vsel %vm598, %v3225, 0
        %v3267 = vsel %vm598, %v3227, 0
        %v3270 = vsel %vm598, %v3229, 0
        %v3273 = vsel %vm598, %v3231, 0
        %v3276 = vsel %vm598, %v3233, 0
        %v3279 = vsel %vm598, %v3235, 0
        %v3282 = vsel %vm598, %v3237, 0
        %v3285 = vsel %vm598, %v3239, 0
        %v3288 = vsel %vm598, %v3241, 0
        %v3291 = vsel %vm598, %v3240, 0
        %3293 = vmatpush.bf16.msra.mxu0 0
        %3294 = vmatpush.bf16.msra.mxu0 0
        %3295 = vmatpush.bf16.msra.mxu0 0
        %3296 = vmatpush.bf16.msra.mxu0 0
        %3297 = vmatpush.bf16.msra.mxu0 0
        %3298 = vmatpush.bf16.msra.mxu0 0
        %3299 = vmatpush.bf16.msra.mxu0 %v3251
        %3300 = vmatpush.bf16.msra.mxu0 %v3250
        %3301 = vmatmul.bf16.gmra.mxu0 %v3255
        %v3302 = vpop.f32.mrf.mxu0
        %v3303 = vadd.f32 0.0, %v3302
        %v3304 = vpop.f32.mrf.mxu0
        %v3305 = vadd.f32 0.0, %v3304
        %3306 = vmatmul.bf16.gmra.mxu0 %v3258
        %v3307 = vpop.f32.mrf.mxu0
        %v3308 = vadd.f32 0.0, %v3307
        %v3309 = vpop.f32.mrf.mxu0
        %v3310 = vadd.f32 0.0, %v3309
        %3311 = vmatmul.bf16.gmra.mxu0 %v3261
        %v3312 = vpop.f32.mrf.mxu0
        %v3313 = vadd.f32 0.0, %v3312
        %v3314 = vpop.f32.mrf.mxu0
        %v3315 = vadd.f32 0.0, %v3314
        %3316 = vmatmul.bf16.gmra.mxu0 %v3264
        %v3317 = vpop.f32.mrf.mxu0
        %v3318 = vadd.f32 0.0, %v3317
        %v3319 = vpop.f32.mrf.mxu0
        %v3320 = vadd.f32 0.0, %v3319
        %3321 = vmatmul.bf16.gmra.mxu0 %v3267
        %v3322 = vpop.f32.mrf.mxu0
        %v3323 = vadd.f32 0.0, %v3322
        %v3324 = vpop.f32.mrf.mxu0
        %v3325 = vadd.f32 0.0, %v3324
        %3326 = vmatmul.bf16.gmra.mxu0 %v3270
        %v3327 = vpop.f32.mrf.mxu0
        %v3328 = vadd.f32 0.0, %v3327
        %v3329 = vpop.f32.mrf.mxu0
        %v3330 = vadd.f32 0.0, %v3329
        %3331 = vmatmul.bf16.gmra.mxu0 %v3273
        %v3332 = vpop.f32.mrf.mxu0
        %v3333 = vadd.f32 0.0, %v3332
        %v3334 = vpop.f32.mrf.mxu0
        %v3335 = vadd.f32 0.0, %v3334
        %3336 = vmatmul.bf16.gmra.mxu0 %v3276
        %v3337 = vpop.f32.mrf.mxu0
        %v3338 = vadd.f32 0.0, %v3337
        %v3339 = vpop.f32.mrf.mxu0
        %v3340 = vadd.f32 0.0, %v3339
        %3341 = vmatmul.bf16.gmra.mxu0 %v3279
        %v3342 = vpop.f32.mrf.mxu0
        %v3343 = vadd.f32 0.0, %v3342
        %v3344 = vpop.f32.mrf.mxu0
        %v3345 = vadd.f32 0.0, %v3344
        %3346 = vmatmul.bf16.gmra.mxu0 %v3282
        %v3347 = vpop.f32.mrf.mxu0
        %v3348 = vadd.f32 0.0, %v3347
        %v3349 = vpop.f32.mrf.mxu0
        %v3350 = vadd.f32 0.0, %v3349
        %3351 = vmatmul.bf16.gmra.mxu0 %v3285
        %v3352 = vpop.f32.mrf.mxu0
        %v3353 = vadd.f32 0.0, %v3352
        %v3354 = vpop.f32.mrf.mxu0
        %v3355 = vadd.f32 0.0, %v3354
        %3356 = vmatmul.bf16.gmra.mxu0 %v3288
        %v3357 = vpop.f32.mrf.mxu0
        %v3358 = vadd.f32 0.0, %v3357
        %v3359 = vpop.f32.mrf.mxu0
        %v3360 = vadd.f32 0.0, %v3359
        %3361 = vmatmul.bf16.gmra.mxu0 %v3291
        %v3362 = vpop.f32.mrf.mxu0
        %v3363 = vadd.f32 0.0, %v3362
        %v3364 = vpop.f32.mrf.mxu0
        %3365 = vdwg.mxu0
        %v3367 = vunpack.c.l.b16 %v3116
        %v3368 = vpack.c.b16 %v3179, %v3367
        %v3370 = vshrl.u32 %v3368, 16
        %v3372 = vrot.slane %v3370, 2
        %v3373 = vshll.u32 %v3368, 16
        %v3375 = vrot.slane %v3373, 3
        %v3376 = vor.u32 %v3372, %v3375
        %v3378 = vshrl.u32 %v3205, 16
        %v3380 = vrot.slane %v3378, 2
        %v3381 = vshll.u32 %v3205, 16
        %v3383 = vrot.slane %v3381, 3
        %v3384 = vor.u32 %v3380, %v3383
        %v3385 = vsel %vm714, %v3376, %v3384
        %v3387 = vshrl.u32 %v3206, 16
        %v3389 = vrot.slane %v3387, 2
        %v3390 = vshll.u32 %v3206, 16
        %v3392 = vrot.slane %v3390, 3
        %v3393 = vor.u32 %v3389, %v3392
        %v3394 = vsel %vm714, %v3384, %v3393
        %v3396 = vshrl.u32 %v3207, 16
        %v3398 = vrot.slane %v3396, 2
        %v3399 = vshll.u32 %v3207, 16
        %v3401 = vrot.slane %v3399, 3
        %v3402 = vor.u32 %v3398, %v3401
        %v3403 = vsel %vm714, %v3393, %v3402
        %v3405 = vshrl.u32 %v3208, 16
        %v3407 = vrot.slane %v3405, 2
        %v3408 = vshll.u32 %v3208, 16
        %v3410 = vrot.slane %v3408, 3
        %v3411 = vor.u32 %v3407, %v3410
        %v3412 = vsel %vm714, %v3402, %v3411
        %v3414 = vshrl.u32 %v3209, 16
        %v3416 = vrot.slane %v3414, 2
        %v3417 = vshll.u32 %v3209, 16
        %v3419 = vrot.slane %v3417, 3
        %v3420 = vor.u32 %v3416, %v3419
        %v3421 = vsel %vm714, %v3411, %v3420
        %v3423 = vshrl.u32 %v3210, 16
        %v3425 = vrot.slane %v3423, 2
        %v3426 = vshll.u32 %v3210, 16
        %v3428 = vrot.slane %v3426, 3
        %v3429 = vor.u32 %v3425, %v3428
        %v3430 = vsel %vm714, %v3420, %v3429
        %v3432 = vshrl.u32 %v3211, 16
        %v3434 = vrot.slane %v3432, 2
        %v3435 = vshll.u32 %v3211, 16
        %v3437 = vrot.slane %v3435, 3
        %v3438 = vor.u32 %v3434, %v3437
        %v3439 = vsel %vm714, %v3429, %v3438
        %v3441 = vshrl.u32 %v3212, 16
        %v3443 = vrot.slane %v3441, 2
        %v3444 = vshll.u32 %v3212, 16
        %v3446 = vrot.slane %v3444, 3
        %v3447 = vor.u32 %v3443, %v3446
        %v3448 = vsel %vm714, %v3438, %v3447
        %v3450 = vshrl.u32 %v3213, 16
        %v3452 = vrot.slane %v3450, 2
        %v3453 = vshll.u32 %v3213, 16
        %v3455 = vrot.slane %v3453, 3
        %v3456 = vor.u32 %v3452, %v3455
        %v3457 = vsel %vm714, %v3447, %v3456
        %v3459 = vshrl.u32 %v3214, 16
        %v3461 = vrot.slane %v3459, 2
        %v3462 = vshll.u32 %v3214, 16
        %v3464 = vrot.slane %v3462, 3
        %v3465 = vor.u32 %v3461, %v3464
        %v3466 = vsel %vm714, %v3456, %v3465
        %v3468 = vshrl.u32 %v3215, 16
        %v3470 = vrot.slane %v3468, 2
        %v3471 = vshll.u32 %v3215, 16
        %v3473 = vrot.slane %v3471, 3
        %v3474 = vor.u32 %v3470, %v3473
        %v3475 = vsel %vm714, %v3465, %v3474
        %v3477 = vshrl.u32 %v3216, 16
        %v3479 = vrot.slane %v3477, 2
        %v3480 = vshll.u32 %v3216, 16
        %v3482 = vrot.slane %v3480, 3
        %v3483 = vor.u32 %v3479, %v3482
        %v3484 = vsel %vm714, %v3474, %v3483
        %v3489 = vunpack.c.l.b16 %v3142
        %v3490 = vunpack.c.l.b16 %v3143
        %v3491 = vunpack.c.l.b16 %v3144
        %v3492 = vunpack.c.l.b16 %v3145
        %v3493 = vpack.c.b16 %v3490, %v3489
        %v3494 = vpack.c.b16 %v3492, %v3491
        %v3498 = vsel %vm598, %v3385, 0
        %v3501 = vsel %vm598, %v3394, 0
        %v3504 = vsel %vm598, %v3403, 0
        %v3507 = vsel %vm598, %v3412, 0
        %v3510 = vsel %vm598, %v3421, 0
        %v3513 = vsel %vm598, %v3430, 0
        %v3516 = vsel %vm598, %v3439, 0
        %v3519 = vsel %vm598, %v3448, 0
        %v3522 = vsel %vm598, %v3457, 0
        %v3525 = vsel %vm598, %v3466, 0
        %v3528 = vsel %vm598, %v3475, 0
        %v3531 = vsel %vm598, %v3484, 0
        %v3534 = vsel %vm598, %v3483, 0
        %3536 = vmatpush.bf16.msra.mxu0 0
        %3537 = vmatpush.bf16.msra.mxu0 0
        %3538 = vmatpush.bf16.msra.mxu0 0
        %3539 = vmatpush.bf16.msra.mxu0 0
        %3540 = vmatpush.bf16.msra.mxu0 0
        %3541 = vmatpush.bf16.msra.mxu0 0
        %3542 = vmatpush.bf16.msra.mxu0 %v3494
        %3543 = vmatpush.bf16.msra.mxu0 %v3493
        %3544 = vmatmul.bf16.gmra.mxu0 %v3498
        %v3545 = vpop.f32.mrf.mxu0
        %v3546 = vadd.f32 %v3303, %v3545
        %v3547 = vpop.f32.mrf.mxu0
        %v3548 = vadd.f32 %v3305, %v3547
        %3549 = vmatmul.bf16.gmra.mxu0 %v3501
        %v3550 = vpop.f32.mrf.mxu0
        %v3551 = vadd.f32 %v3308, %v3550
        %v3552 = vpop.f32.mrf.mxu0
        %v3553 = vadd.f32 %v3310, %v3552
        %3554 = vmatmul.bf16.gmra.mxu0 %v3504
        %v3555 = vpop.f32.mrf.mxu0
        %v3556 = vadd.f32 %v3313, %v3555
        %v3557 = vpop.f32.mrf.mxu0
        %v3558 = vadd.f32 %v3315, %v3557
        %3559 = vmatmul.bf16.gmra.mxu0 %v3507
        %v3560 = vpop.f32.mrf.mxu0
        %v3561 = vadd.f32 %v3318, %v3560
        %v3562 = vpop.f32.mrf.mxu0
        %v3563 = vadd.f32 %v3320, %v3562
        %3564 = vmatmul.bf16.gmra.mxu0 %v3510
        %v3565 = vpop.f32.mrf.mxu0
        %v3566 = vadd.f32 %v3323, %v3565
        %v3567 = vpop.f32.mrf.mxu0
        %v3568 = vadd.f32 %v3325, %v3567
        %3569 = vmatmul.bf16.gmra.mxu0 %v3513
        %v3570 = vpop.f32.mrf.mxu0
        %v3571 = vadd.f32 %v3328, %v3570
        %v3572 = vpop.f32.mrf.mxu0
        %v3573 = vadd.f32 %v3330, %v3572
        %3574 = vmatmul.bf16.gmra.mxu0 %v3516
        %v3575 = vpop.f32.mrf.mxu0
        %v3576 = vadd.f32 %v3333, %v3575
        %v3577 = vpop.f32.mrf.mxu0
        %v3578 = vadd.f32 %v3335, %v3577
        %3579 = vmatmul.bf16.gmra.mxu0 %v3519
        %v3580 = vpop.f32.mrf.mxu0
        %v3581 = vadd.f32 %v3338, %v3580
        %v3582 = vpop.f32.mrf.mxu0
        %v3583 = vadd.f32 %v3340, %v3582
        %3584 = vmatmul.bf16.gmra.mxu0 %v3522
        %v3585 = vpop.f32.mrf.mxu0
        %v3586 = vadd.f32 %v3343, %v3585
        %v3587 = vpop.f32.mrf.mxu0
        %v3588 = vadd.f32 %v3345, %v3587
        %3589 = vmatmul.bf16.gmra.mxu0 %v3525
        %v3590 = vpop.f32.mrf.mxu0
        %v3591 = vadd.f32 %v3348, %v3590
        %v3592 = vpop.f32.mrf.mxu0
        %v3593 = vadd.f32 %v3350, %v3592
        %3594 = vmatmul.bf16.gmra.mxu0 %v3528
        %v3595 = vpop.f32.mrf.mxu0
        %v3596 = vadd.f32 %v3353, %v3595
        %v3597 = vpop.f32.mrf.mxu0
        %v3598 = vadd.f32 %v3355, %v3597
        %3599 = vmatmul.bf16.gmra.mxu0 %v3531
        %v3600 = vpop.f32.mrf.mxu0
        %v3601 = vadd.f32 %v3358, %v3600
        %v3602 = vpop.f32.mrf.mxu0
        %v3603 = vadd.f32 %v3360, %v3602
        %3604 = vmatmul.bf16.gmra.mxu0 %v3534
        %v3605 = vpop.f32.mrf.mxu0
        %v3606 = vadd.f32 %v3363, %v3605
        %v3607 = vpop.f32.mrf.mxu0
        %3608 = vdwg.mxu0
        %v3609 = vld [vmem:[#allocation2 + $0x64] sm:$0xf]
        %s3610 = scalar_lea.vmem %s5, 32
        %v3611 = vld [vmem:[%s3610] sm:$0xf]
        %v3612 = vld [vmem:[%s3610 + $0x4] sm:$0xf]
        %v3613 = vld [vmem:[%s3610 + $0x8] sm:$0xf]
        %v3614 = vld [vmem:[%s3610 + $0xc] sm:$0xf]
        %v3616 = vunpack.c.l.b16 %v3609
        %v3617 = vpack.c.b16 %v3616, %v3202
        %v3619 = vshrl.u32 %v3204, 16
        %v3621 = vrot.slane %v3619, 3
        %v3622 = vshll.u32 %v3204, 16
        %v3624 = vrot.slane %v3622, 4
        %v3625 = vor.u32 %v3621, %v3624
        %v3626 = vrot.slane %v3378, 3
        %v3627 = vrot.slane %v3381, 4
        %v3628 = vor.u32 %v3626, %v3627
        %v3629 = vsel %vm964, %v3625, %v3628
        %v3630 = vrot.slane %v3387, 3
        %v3631 = vrot.slane %v3390, 4
        %v3632 = vor.u32 %v3630, %v3631
        %v3633 = vsel %vm964, %v3628, %v3632
        %v3634 = vrot.slane %v3396, 3
        %v3635 = vrot.slane %v3399, 4
        %v3636 = vor.u32 %v3634, %v3635
        %v3637 = vsel %vm964, %v3632, %v3636
        %v3638 = vrot.slane %v3405, 3
        %v3639 = vrot.slane %v3408, 4
        %v3640 = vor.u32 %v3638, %v3639
        %v3641 = vsel %vm964, %v3636, %v3640
        %v3642 = vrot.slane %v3414, 3
        %v3643 = vrot.slane %v3417, 4
        %v3644 = vor.u32 %v3642, %v3643
        %v3645 = vsel %vm964, %v3640, %v3644
        %v3646 = vrot.slane %v3423, 3
        %v3647 = vrot.slane %v3426, 4
        %v3648 = vor.u32 %v3646, %v3647
        %v3649 = vsel %vm964, %v3644, %v3648
        %v3650 = vrot.slane %v3432, 3
        %v3651 = vrot.slane %v3435, 4
        %v3652 = vor.u32 %v3650, %v3651
        %v3653 = vsel %vm964, %v3648, %v3652
        %v3654 = vrot.slane %v3441, 3
        %v3655 = vrot.slane %v3444, 4
        %v3656 = vor.u32 %v3654, %v3655
        %v3657 = vsel %vm964, %v3652, %v3656
        %v3658 = vrot.slane %v3450, 3
        %v3659 = vrot.slane %v3453, 4
        %v3660 = vor.u32 %v3658, %v3659
        %v3661 = vsel %vm964, %v3656, %v3660
        %v3662 = vrot.slane %v3459, 3
        %v3663 = vrot.slane %v3462, 4
        %v3664 = vor.u32 %v3662, %v3663
        %v3665 = vsel %vm964, %v3660, %v3664
        %v3666 = vrot.slane %v3468, 3
        %v3667 = vrot.slane %v3471, 4
        %v3668 = vor.u32 %v3666, %v3667
        %v3669 = vsel %vm964, %v3664, %v3668
        %v3671 = vshrl.u32 %v3617, 16
        %v3673 = vrot.slane %v3671, 3
        %v3674 = vshll.u32 %v3617, 16
        %v3676 = vrot.slane %v3674, 4
        %v3677 = vor.u32 %v3673, %v3676
        %v3678 = vsel %vm964, %v3668, %v3677
        %v3683 = vunpack.c.l.b16 %v3611
        %v3684 = vunpack.c.l.b16 %v3612
        %v3685 = vunpack.c.l.b16 %v3613
        %v3686 = vunpack.c.l.b16 %v3614
        %v3687 = vpack.c.b16 %v3684, %v3683
        %v3688 = vpack.c.b16 %v3686, %v3685
        %v3692 = vsel %vm598, %v3629, 0
        %v3695 = vsel %vm598, %v3633, 0
        %v3698 = vsel %vm598, %v3637, 0
        %v3701 = vsel %vm598, %v3641, 0
        %v3704 = vsel %vm598, %v3645, 0
        %v3707 = vsel %vm598, %v3649, 0
        %v3710 = vsel %vm598, %v3653, 0
        %v3713 = vsel %vm598, %v3657, 0
        %v3716 = vsel %vm598, %v3661, 0
        %v3719 = vsel %vm598, %v3665, 0
        %v3722 = vsel %vm598, %v3669, 0
        %v3725 = vsel %vm598, %v3678, 0
        %v3728 = vsel %vm598, %v3677, 0
        %3730 = vmatpush.bf16.msra.mxu0 0
        %3731 = vmatpush.bf16.msra.mxu0 0
        %3732 = vmatpush.bf16.msra.mxu0 0
        %3733 = vmatpush.bf16.msra.mxu0 0
        %3734 = vmatpush.bf16.msra.mxu0 0
        %3735 = vmatpush.bf16.msra.mxu0 0
        %3736 = vmatpush.bf16.msra.mxu0 %v3688
        %3737 = vmatpush.bf16.msra.mxu0 %v3687
        %3738 = vmatmul.bf16.gmra.mxu0 %v3692
        %v3739 = vpop.f32.mrf.mxu0
        %v3740 = vadd.f32 0.0, %v3739
        %v3741 = vpop.f32.mrf.mxu0
        %v3742 = vadd.f32 0.0, %v3741
        %3743 = vmatmul.bf16.gmra.mxu0 %v3695
        %v3744 = vpop.f32.mrf.mxu0
        %v3745 = vadd.f32 0.0, %v3744
        %v3746 = vpop.f32.mrf.mxu0
        %v3747 = vadd.f32 0.0, %v3746
        %3748 = vmatmul.bf16.gmra.mxu0 %v3698
        %v3749 = vpop.f32.mrf.mxu0
        %v3750 = vadd.f32 0.0, %v3749
        %v3751 = vpop.f32.mrf.mxu0
        %v3752 = vadd.f32 0.0, %v3751
        %3753 = vmatmul.bf16.gmra.mxu0 %v3701
        %v3754 = vpop.f32.mrf.mxu0
        %v3755 = vadd.f32 0.0, %v3754
        %v3756 = vpop.f32.mrf.mxu0
        %v3757 = vadd.f32 0.0, %v3756
        %3758 = vmatmul.bf16.gmra.mxu0 %v3704
        %v3759 = vpop.f32.mrf.mxu0
        %v3760 = vadd.f32 0.0, %v3759
        %v3761 = vpop.f32.mrf.mxu0
        %v3762 = vadd.f32 0.0, %v3761
        %3763 = vmatmul.bf16.gmra.mxu0 %v3707
        %v3764 = vpop.f32.mrf.mxu0
        %v3765 = vadd.f32 0.0, %v3764
        %v3766 = vpop.f32.mrf.mxu0
        %v3767 = vadd.f32 0.0, %v3766
        %3768 = vmatmul.bf16.gmra.mxu0 %v3710
        %v3769 = vpop.f32.mrf.mxu0
        %v3770 = vadd.f32 0.0, %v3769
        %v3771 = vpop.f32.mrf.mxu0
        %v3772 = vadd.f32 0.0, %v3771
        %3773 = vmatmul.bf16.gmra.mxu0 %v3713
        %v3774 = vpop.f32.mrf.mxu0
        %v3775 = vadd.f32 0.0, %v3774
        %v3776 = vpop.f32.mrf.mxu0
        %v3777 = vadd.f32 0.0, %v3776
        %3778 = vmatmul.bf16.gmra.mxu0 %v3716
        %v3779 = vpop.f32.mrf.mxu0
        %v3780 = vadd.f32 0.0, %v3779
        %v3781 = vpop.f32.mrf.mxu0
        %v3782 = vadd.f32 0.0, %v3781
        %3783 = vmatmul.bf16.gmra.mxu0 %v3719
        %v3784 = vpop.f32.mrf.mxu0
        %v3785 = vadd.f32 0.0, %v3784
        %v3786 = vpop.f32.mrf.mxu0
        %v3787 = vadd.f32 0.0, %v3786
        %3788 = vmatmul.bf16.gmra.mxu0 %v3722
        %v3789 = vpop.f32.mrf.mxu0
        %v3790 = vadd.f32 0.0, %v3789
        %v3791 = vpop.f32.mrf.mxu0
        %v3792 = vadd.f32 0.0, %v3791
        %3793 = vmatmul.bf16.gmra.mxu0 %v3725
        %v3794 = vpop.f32.mrf.mxu0
        %v3795 = vadd.f32 0.0, %v3794
        %v3796 = vpop.f32.mrf.mxu0
        %v3797 = vadd.f32 0.0, %v3796
        %3798 = vmatmul.bf16.gmra.mxu0 %v3728
        %v3799 = vpop.f32.mrf.mxu0
        %v3800 = vadd.f32 0.0, %v3799
        %v3801 = vpop.f32.mrf.mxu0
        %3802 = vdwg.mxu0
        %v3803 = vadd.f32 %v3546, %v3740
        %v3804 = vadd.f32 %v3548, %v3742
        %v3805 = vadd.f32 %v3551, %v3745
        %v3806 = vadd.f32 %v3553, %v3747
        %v3807 = vadd.f32 %v3556, %v3750
        %v3808 = vadd.f32 %v3558, %v3752
        %v3809 = vadd.f32 %v3561, %v3755
        %v3810 = vadd.f32 %v3563, %v3757
        %v3811 = vadd.f32 %v3566, %v3760
        %v3812 = vadd.f32 %v3568, %v3762
        %v3813 = vadd.f32 %v3571, %v3765
        %v3814 = vadd.f32 %v3573, %v3767
        %v3815 = vadd.f32 %v3576, %v3770
        %v3816 = vadd.f32 %v3578, %v3772
        %v3817 = vadd.f32 %v3581, %v3775
        %v3818 = vadd.f32 %v3583, %v3777
        %v3819 = vadd.f32 %v3586, %v3780
        %v3820 = vadd.f32 %v3588, %v3782
        %v3821 = vadd.f32 %v3591, %v3785
        %v3822 = vadd.f32 %v3593, %v3787
        %v3823 = vadd.f32 %v3596, %v3790
        %v3824 = vadd.f32 %v3598, %v3792
        %v3825 = vadd.f32 %v3601, %v3795
        %v3826 = vadd.f32 %v3603, %v3797
        %v3827 = vadd.f32 %v3606, %v3800
        %v3828 = vld [vmem:[#allocation2 + $0x4] sm:$0x8]
        %v3829 = vld [vmem:[#allocation2 + $0x8] sm:$0xf]
        %v3830 = vld [vmem:[#allocation2 + $0xc] sm:$0xf]
        %v3831 = vld [vmem:[#allocation2 + $0x10] sm:$0xf]
        %v3832 = vld [vmem:[#allocation2 + $0x14] sm:$0xf]
        %v3833 = vld [vmem:[#allocation2 + $0x18] sm:$0xf]
        %v3834 = vld [vmem:[#allocation2 + $0x1c] sm:$0xf]
        %v3835 = vld [vmem:[#allocation2 + $0x20] sm:$0xf]
        %v3836 = vld [vmem:[#allocation2 + $0x24] sm:$0xf]
        %v3837 = vld [vmem:[#allocation2 + $0x28] sm:$0xf]
        %v3838 = vld [vmem:[#allocation2 + $0x2c] sm:$0xf]
        %v3839 = vld [vmem:[#allocation2 + $0x30] sm:$0xf]
        %v3840 = vld [vmem:[#allocation2 + $0x34] sm:$0xf]
        %v3841 = vld [vmem:[#allocation2 + $0x38] sm:$0xf]
        %v3842 = vld [vmem:[#allocation2 + $0x3c] sm:$0xf]
        %v3843 = vld [vmem:[#allocation2 + $0x40] sm:$0xf]
        %v3844 = vld [vmem:[#allocation2 + $0x44] sm:$0xf]
        %v3845 = vld [vmem:[#allocation2 + $0x48] sm:$0xf]
        %v3846 = vld [vmem:[#allocation2 + $0x4c] sm:$0xf]
        %v3847 = vld [vmem:[#allocation2 + $0x50] sm:$0xf]
        %v3848 = vld [vmem:[#allocation2 + $0x54] sm:$0xf]
        %v3849 = vld [vmem:[#allocation2 + $0x58] sm:$0xf]
        %v3850 = vld [vmem:[#allocation2 + $0x5c] sm:$0xf]
        %v3851 = vld [vmem:[#allocation2 + $0x60] sm:$0xf]
        %v3852 = vld [vmem:[#allocation2 + $0x64] sm:$0xf]
        %v3853 = vld [vmem:[#allocation2 + $0x68] sm:$0xf]
        %s3854 = scalar_lea.vmem %s5, 48
        %v3855 = vld [vmem:[%s3854] sm:$0xf]
        %v3856 = vld [vmem:[%s3854 + $0x4] sm:$0xf]
        %v3857 = vld [vmem:[%s3854 + $0x8] sm:$0xf]
        %v3858 = vld [vmem:[%s3854 + $0xc] sm:$0xf]
        %v3885 = vunpack.c.l.b16 %v3828
        %v3886 = vunpack.c.l.b16 %v3829
        %v3887 = vunpack.c.l.b16 %v3830
        %v3888 = vunpack.c.l.b16 %v3831
        %v3889 = vunpack.c.l.b16 %v3832
        %v3890 = vunpack.c.l.b16 %v3833
        %v3891 = vunpack.c.l.b16 %v3834
        %v3892 = vunpack.c.l.b16 %v3835
        %v3893 = vunpack.c.l.b16 %v3836
        %v3894 = vunpack.c.l.b16 %v3837
        %v3895 = vunpack.c.l.b16 %v3838
        %v3896 = vunpack.c.l.b16 %v3839
        %v3897 = vunpack.c.l.b16 %v3840
        %v3898 = vunpack.c.l.b16 %v3841
        %v3899 = vunpack.c.l.b16 %v3842
        %v3900 = vunpack.c.l.b16 %v3843
        %v3901 = vunpack.c.l.b16 %v3844
        %v3902 = vunpack.c.l.b16 %v3845
        %v3903 = vunpack.c.l.b16 %v3846
        %v3904 = vunpack.c.l.b16 %v3847
        %v3905 = vunpack.c.l.b16 %v3848
        %v3906 = vunpack.c.l.b16 %v3849
        %v3907 = vunpack.c.l.b16 %v3850
        %v3908 = vunpack.c.l.b16 %v3851
        %v3909 = vunpack.c.l.b16 %v3852
        %v3910 = vunpack.c.l.b16 %v3853
        %v3911 = vpack.c.b16 %v3886, %v3885
        %v3912 = vpack.c.b16 %v3888, %v3887
        %v3913 = vpack.c.b16 %v3890, %v3889
        %v3914 = vpack.c.b16 %v3892, %v3891
        %v3915 = vpack.c.b16 %v3894, %v3893
        %v3916 = vpack.c.b16 %v3896, %v3895
        %v3917 = vpack.c.b16 %v3898, %v3897
        %v3918 = vpack.c.b16 %v3900, %v3899
        %v3919 = vpack.c.b16 %v3902, %v3901
        %v3920 = vpack.c.b16 %v3904, %v3903
        %v3921 = vpack.c.b16 %v3906, %v3905
        %v3922 = vpack.c.b16 %v3908, %v3907
        %v3923 = vpack.c.b16 %v3910, %v3909
        %v3925 = vshrl.u32 %v3911, 16
        %v3927 = vrot.slane %v3925, 3
        %v3928 = vshll.u32 %v3911, 16
        %v3930 = vrot.slane %v3928, 4
        %v3931 = vor.u32 %v3927, %v3930
        %v3933 = vshrl.u32 %v3912, 16
        %v3935 = vrot.slane %v3933, 3
        %v3936 = vshll.u32 %v3912, 16
        %v3938 = vrot.slane %v3936, 4
        %v3939 = vor.u32 %v3935, %v3938
        %v3940 = vsel %vm964, %v3931, %v3939
        %v3942 = vshrl.u32 %v3913, 16
        %v3944 = vrot.slane %v3942, 3
        %v3945 = vshll.u32 %v3913, 16
        %v3947 = vrot.slane %v3945, 4
        %v3948 = vor.u32 %v3944, %v3947
        %v3949 = vsel %vm964, %v3939, %v3948
        %v3951 = vshrl.u32 %v3914, 16
        %v3953 = vrot.slane %v3951, 3
        %v3954 = vshll.u32 %v3914, 16
        %v3956 = vrot.slane %v3954, 4
        %v3957 = vor.u32 %v3953, %v3956
        %v3958 = vsel %vm964, %v3948, %v3957
        %v3960 = vshrl.u32 %v3915, 16
        %v3962 = vrot.slane %v3960, 3
        %v3963 = vshll.u32 %v3915, 16
        %v3965 = vrot.slane %v3963, 4
        %v3966 = vor.u32 %v3962, %v3965
        %v3967 = vsel %vm964, %v3957, %v3966
        %v3969 = vshrl.u32 %v3916, 16
        %v3971 = vrot.slane %v3969, 3
        %v3972 = vshll.u32 %v3916, 16
        %v3974 = vrot.slane %v3972, 4
        %v3975 = vor.u32 %v3971, %v3974
        %v3976 = vsel %vm964, %v3966, %v3975
        %v3978 = vshrl.u32 %v3917, 16
        %v3980 = vrot.slane %v3978, 3
        %v3981 = vshll.u32 %v3917, 16
        %v3983 = vrot.slane %v3981, 4
        %v3984 = vor.u32 %v3980, %v3983
        %v3985 = vsel %vm964, %v3975, %v3984
        %v3987 = vshrl.u32 %v3918, 16
        %v3989 = vrot.slane %v3987, 3
        %v3990 = vshll.u32 %v3918, 16
        %v3992 = vrot.slane %v3990, 4
        %v3993 = vor.u32 %v3989, %v3992
        %v3994 = vsel %vm964, %v3984, %v3993
        %v3996 = vshrl.u32 %v3919, 16
        %v3998 = vrot.slane %v3996, 3
        %v3999 = vshll.u32 %v3919, 16
        %v4001 = vrot.slane %v3999, 4
        %v4002 = vor.u32 %v3998, %v4001
        %v4003 = vsel %vm964, %v3993, %v4002
        %v4005 = vshrl.u32 %v3920, 16
        %v4007 = vrot.slane %v4005, 3
        %v4008 = vshll.u32 %v3920, 16
        %v4010 = vrot.slane %v4008, 4
        %v4011 = vor.u32 %v4007, %v4010
        %v4012 = vsel %vm964, %v4002, %v4011
        %v4014 = vshrl.u32 %v3921, 16
        %v4016 = vrot.slane %v4014, 3
        %v4017 = vshll.u32 %v3921, 16
        %v4019 = vrot.slane %v4017, 4
        %v4020 = vor.u32 %v4016, %v4019
        %v4021 = vsel %vm964, %v4011, %v4020
        %v4023 = vshrl.u32 %v3922, 16
        %v4025 = vrot.slane %v4023, 3
        %v4026 = vshll.u32 %v3922, 16
        %v4028 = vrot.slane %v4026, 4
        %v4029 = vor.u32 %v4025, %v4028
        %v4030 = vsel %vm964, %v4020, %v4029
        %v4032 = vshrl.u32 %v3923, 16
        %v4034 = vrot.slane %v4032, 3
        %v4035 = vshll.u32 %v3923, 16
        %v4037 = vrot.slane %v4035, 4
        %v4038 = vor.u32 %v4034, %v4037
        %v4039 = vsel %vm964, %v4029, %v4038
        %v4044 = vunpack.c.l.b16 %v3855
        %v4045 = vunpack.c.l.b16 %v3856
        %v4046 = vunpack.c.l.b16 %v3857
        %v4047 = vunpack.c.l.b16 %v3858
        %v4048 = vpack.c.b16 %v4045, %v4044
        %v4049 = vpack.c.b16 %v4047, %v4046
        %v4053 = vsel %vm598, %v3940, 0
        %v4056 = vsel %vm598, %v3949, 0
        %v4059 = vsel %vm598, %v3958, 0
        %v4062 = vsel %vm598, %v3967, 0
        %v4065 = vsel %vm598, %v3976, 0
        %v4068 = vsel %vm598, %v3985, 0
        %v4071 = vsel %vm598, %v3994, 0
        %v4074 = vsel %vm598, %v4003, 0
        %v4077 = vsel %vm598, %v4012, 0
        %v4080 = vsel %vm598, %v4021, 0
        %v4083 = vsel %vm598, %v4030, 0
        %v4086 = vsel %vm598, %v4039, 0
        %v4089 = vsel %vm598, %v4038, 0
        %4091 = vmatpush.bf16.msra.mxu0 0
        %4092 = vmatpush.bf16.msra.mxu0 0
        %4093 = vmatpush.bf16.msra.mxu0 0
        %4094 = vmatpush.bf16.msra.mxu0 0
        %4095 = vmatpush.bf16.msra.mxu0 0
        %4096 = vmatpush.bf16.msra.mxu0 0
        %4097 = vmatpush.bf16.msra.mxu0 %v4049
        %4098 = vmatpush.bf16.msra.mxu0 %v4048
        %4099 = vmatmul.bf16.gmra.mxu0 %v4053
        %v4100 = vpop.f32.mrf.mxu0
        %v4101 = vadd.f32 0.0, %v4100
        %v4102 = vpop.f32.mrf.mxu0
        %v4103 = vadd.f32 0.0, %v4102
        %4104 = vmatmul.bf16.gmra.mxu0 %v4056
        %v4105 = vpop.f32.mrf.mxu0
        %v4106 = vadd.f32 0.0, %v4105
        %v4107 = vpop.f32.mrf.mxu0
        %v4108 = vadd.f32 0.0, %v4107
        %4109 = vmatmul.bf16.gmra.mxu0 %v4059
        %v4110 = vpop.f32.mrf.mxu0
        %v4111 = vadd.f32 0.0, %v4110
        %v4112 = vpop.f32.mrf.mxu0
        %v4113 = vadd.f32 0.0, %v4112
        %4114 = vmatmul.bf16.gmra.mxu0 %v4062
        %v4115 = vpop.f32.mrf.mxu0
        %v4116 = vadd.f32 0.0, %v4115
        %v4117 = vpop.f32.mrf.mxu0
        %v4118 = vadd.f32 0.0, %v4117
        %4119 = vmatmul.bf16.gmra.mxu0 %v4065
        %v4120 = vpop.f32.mrf.mxu0
        %v4121 = vadd.f32 0.0, %v4120
        %v4122 = vpop.f32.mrf.mxu0
        %v4123 = vadd.f32 0.0, %v4122
        %4124 = vmatmul.bf16.gmra.mxu0 %v4068
        %v4125 = vpop.f32.mrf.mxu0
        %v4126 = vadd.f32 0.0, %v4125
        %v4127 = vpop.f32.mrf.mxu0
        %v4128 = vadd.f32 0.0, %v4127
        %4129 = vmatmul.bf16.gmra.mxu0 %v4071
        %v4130 = vpop.f32.mrf.mxu0
        %v4131 = vadd.f32 0.0, %v4130
        %v4132 = vpop.f32.mrf.mxu0
        %v4133 = vadd.f32 0.0, %v4132
        %4134 = vmatmul.bf16.gmra.mxu0 %v4074
        %v4135 = vpop.f32.mrf.mxu0
        %v4136 = vadd.f32 0.0, %v4135
        %v4137 = vpop.f32.mrf.mxu0
        %v4138 = vadd.f32 0.0, %v4137
        %4139 = vmatmul.bf16.gmra.mxu0 %v4077
        %v4140 = vpop.f32.mrf.mxu0
        %v4141 = vadd.f32 0.0, %v4140
        %v4142 = vpop.f32.mrf.mxu0
        %v4143 = vadd.f32 0.0, %v4142
        %4144 = vmatmul.bf16.gmra.mxu0 %v4080
        %v4145 = vpop.f32.mrf.mxu0
        %v4146 = vadd.f32 0.0, %v4145
        %v4147 = vpop.f32.mrf.mxu0
        %v4148 = vadd.f32 0.0, %v4147
        %4149 = vmatmul.bf16.gmra.mxu0 %v4083
        %v4150 = vpop.f32.mrf.mxu0
        %v4151 = vadd.f32 0.0, %v4150
        %v4152 = vpop.f32.mrf.mxu0
        %v4153 = vadd.f32 0.0, %v4152
        %4154 = vmatmul.bf16.gmra.mxu0 %v4086
        %v4155 = vpop.f32.mrf.mxu0
        %v4156 = vadd.f32 0.0, %v4155
        %v4157 = vpop.f32.mrf.mxu0
        %v4158 = vadd.f32 0.0, %v4157
        %4159 = vmatmul.bf16.gmra.mxu0 %v4089
        %v4160 = vpop.f32.mrf.mxu0
        %v4161 = vadd.f32 0.0, %v4160
        %v4162 = vpop.f32.mrf.mxu0
        %4163 = vdwg.mxu0
        %v4164 = vadd.f32 %v3803, %v4101
        %v4165 = vadd.f32 %v3804, %v4103
        %v4166 = vadd.f32 %v3805, %v4106
        %v4167 = vadd.f32 %v3806, %v4108
        %v4168 = vadd.f32 %v3807, %v4111
        %v4169 = vadd.f32 %v3808, %v4113
        %v4170 = vadd.f32 %v3809, %v4116
        %v4171 = vadd.f32 %v3810, %v4118
        %v4172 = vadd.f32 %v3811, %v4121
        %v4173 = vadd.f32 %v3812, %v4123
        %v4174 = vadd.f32 %v3813, %v4126
        %v4175 = vadd.f32 %v3814, %v4128
        %v4176 = vadd.f32 %v3815, %v4131
        %v4177 = vadd.f32 %v3816, %v4133
        %v4178 = vadd.f32 %v3817, %v4136
        %v4179 = vadd.f32 %v3818, %v4138
        %v4180 = vadd.f32 %v3819, %v4141
        %v4181 = vadd.f32 %v3820, %v4143
        %v4182 = vadd.f32 %v3821, %v4146
        %v4183 = vadd.f32 %v3822, %v4148
        %v4184 = vadd.f32 %v3823, %v4151
        %v4185 = vadd.f32 %v3824, %v4153
        %v4186 = vadd.f32 %v3825, %v4156
        %v4187 = vadd.f32 %v3826, %v4158
        %v4188 = vadd.f32 %v3827, %v4161
        %s4189 = scalar_lea.vmem %s5, 64
        %v4190 = vld [vmem:[%s4189] sm:$0xf]
        %v4191 = vld [vmem:[%s4189 + $0x4] sm:$0xf]
        %v4192 = vld [vmem:[%s4189 + $0x8] sm:$0xf]
        %v4193 = vld [vmem:[%s4189 + $0xc] sm:$0xf]
        %v4194 = vpack.c.b16 %v3887, %v3886
        %v4195 = vpack.c.b16 %v3889, %v3888
        %v4196 = vpack.c.b16 %v3891, %v3890
        %v4197 = vpack.c.b16 %v3893, %v3892
        %v4198 = vpack.c.b16 %v3895, %v3894
        %v4199 = vpack.c.b16 %v3897, %v3896
        %v4200 = vpack.c.b16 %v3899, %v3898
        %v4201 = vpack.c.b16 %v3901, %v3900
        %v4202 = vpack.c.b16 %v3903, %v3902
        %v4203 = vpack.c.b16 %v3905, %v3904
        %v4204 = vpack.c.b16 %v3907, %v3906
        %v4205 = vpack.c.b16 %v3909, %v3908
        %v4206 = vpack.c.b16 %v3910, %v3910
        %v4211 = vunpack.c.l.b16 %v4190
        %v4212 = vunpack.c.l.b16 %v4191
        %v4213 = vunpack.c.l.b16 %v4192
        %v4214 = vunpack.c.l.b16 %v4193
        %v4215 = vpack.c.b16 %v4212, %v4211
        %v4216 = vpack.c.b16 %v4214, %v4213
        %v4220 = vsel %vm598, %v4194, 0
        %v4223 = vsel %vm598, %v4195, 0
        %v4226 = vsel %vm598, %v4196, 0
        %v4229 = vsel %vm598, %v4197, 0
        %v4232 = vsel %vm598, %v4198, 0
        %v4235 = vsel %vm598, %v4199, 0
        %v4238 = vsel %vm598, %v4200, 0
        %v4241 = vsel %vm598, %v4201, 0
        %v4244 = vsel %vm598, %v4202, 0
        %v4247 = vsel %vm598, %v4203, 0
        %v4250 = vsel %vm598, %v4204, 0
        %v4253 = vsel %vm598, %v4205, 0
        %v4256 = vsel %vm598, %v4206, 0
        %4258 = vmatpush.bf16.msra.mxu0 0
        %4259 = vmatpush.bf16.msra.mxu0 0
        %4260 = vmatpush.bf16.msra.mxu0 0
        %4261 = vmatpush.bf16.msra.mxu0 0
        %4262 = vmatpush.bf16.msra.mxu0 0
        %4263 = vmatpush.bf16.msra.mxu0 0
        %4264 = vmatpush.bf16.msra.mxu0 %v4216
        %4265 = vmatpush.bf16.msra.mxu0 %v4215
        %4266 = vmatmul.bf16.gmra.mxu0 %v4220
        %v4267 = vpop.f32.mrf.mxu0
        %v4268 = vadd.f32 0.0, %v4267
        %v4269 = vpop.f32.mrf.mxu0
        %v4270 = vadd.f32 0.0, %v4269
        %4271 = vmatmul.bf16.gmra.mxu0 %v4223
        %v4272 = vpop.f32.mrf.mxu0
        %v4273 = vadd.f32 0.0, %v4272
        %v4274 = vpop.f32.mrf.mxu0
        %v4275 = vadd.f32 0.0, %v4274
        %4276 = vmatmul.bf16.gmra.mxu0 %v4226
        %v4277 = vpop.f32.mrf.mxu0
        %v4278 = vadd.f32 0.0, %v4277
        %v4279 = vpop.f32.mrf.mxu0
        %v4280 = vadd.f32 0.0, %v4279
        %4281 = vmatmul.bf16.gmra.mxu0 %v4229
        %v4282 = vpop.f32.mrf.mxu0
        %v4283 = vadd.f32 0.0, %v4282
        %v4284 = vpop.f32.mrf.mxu0
        %v4285 = vadd.f32 0.0, %v4284
        %4286 = vmatmul.bf16.gmra.mxu0 %v4232
        %v4287 = vpop.f32.mrf.mxu0
        %v4288 = vadd.f32 0.0, %v4287
        %v4289 = vpop.f32.mrf.mxu0
        %v4290 = vadd.f32 0.0, %v4289
        %4291 = vmatmul.bf16.gmra.mxu0 %v4235
        %v4292 = vpop.f32.mrf.mxu0
        %v4293 = vadd.f32 0.0, %v4292
        %v4294 = vpop.f32.mrf.mxu0
        %v4295 = vadd.f32 0.0, %v4294
        %4296 = vmatmul.bf16.gmra.mxu0 %v4238
        %v4297 = vpop.f32.mrf.mxu0
        %v4298 = vadd.f32 0.0, %v4297
        %v4299 = vpop.f32.mrf.mxu0
        %v4300 = vadd.f32 0.0, %v4299
        %4301 = vmatmul.bf16.gmra.mxu0 %v4241
        %v4302 = vpop.f32.mrf.mxu0
        %v4303 = vadd.f32 0.0, %v4302
        %v4304 = vpop.f32.mrf.mxu0
        %v4305 = vadd.f32 0.0, %v4304
        %4306 = vmatmul.bf16.gmra.mxu0 %v4244
        %v4307 = vpop.f32.mrf.mxu0
        %v4308 = vadd.f32 0.0, %v4307
        %v4309 = vpop.f32.mrf.mxu0
        %v4310 = vadd.f32 0.0, %v4309
        %4311 = vmatmul.bf16.gmra.mxu0 %v4247
        %v4312 = vpop.f32.mrf.mxu0
        %v4313 = vadd.f32 0.0, %v4312
        %v4314 = vpop.f32.mrf.mxu0
        %v4315 = vadd.f32 0.0, %v4314
        %4316 = vmatmul.bf16.gmra.mxu0 %v4250
        %v4317 = vpop.f32.mrf.mxu0
        %v4318 = vadd.f32 0.0, %v4317
        %v4319 = vpop.f32.mrf.mxu0
        %v4320 = vadd.f32 0.0, %v4319
        %4321 = vmatmul.bf16.gmra.mxu0 %v4253
        %v4322 = vpop.f32.mrf.mxu0
        %v4323 = vadd.f32 0.0, %v4322
        %v4324 = vpop.f32.mrf.mxu0
        %v4325 = vadd.f32 0.0, %v4324
        %4326 = vmatmul.bf16.gmra.mxu0 %v4256
        %v4327 = vpop.f32.mrf.mxu0
        %v4328 = vadd.f32 0.0, %v4327
        %v4329 = vpop.f32.mrf.mxu0
        %4330 = vdwg.mxu0
        %v4331 = vadd.f32 %v4164, %v4268
        %v4332 = vadd.f32 %v4165, %v4270
        %v4333 = vadd.f32 %v4166, %v4273
        %v4334 = vadd.f32 %v4167, %v4275
        %v4335 = vadd.f32 %v4168, %v4278
        %v4336 = vadd.f32 %v4169, %v4280
        %v4337 = vadd.f32 %v4170, %v4283
        %v4338 = vadd.f32 %v4171, %v4285
        %v4339 = vadd.f32 %v4172, %v4288
        %v4340 = vadd.f32 %v4173, %v4290
        %v4341 = vadd.f32 %v4174, %v4293
        %v4342 = vadd.f32 %v4175, %v4295
        %v4343 = vadd.f32 %v4176, %v4298
        %v4344 = vadd.f32 %v4177, %v4300
        %v4345 = vadd.f32 %v4178, %v4303
        %v4346 = vadd.f32 %v4179, %v4305
        %v4347 = vadd.f32 %v4180, %v4308
        %v4348 = vadd.f32 %v4181, %v4310
        %v4349 = vadd.f32 %v4182, %v4313
        %v4350 = vadd.f32 %v4183, %v4315
        %v4351 = vadd.f32 %v4184, %v4318
        %v4352 = vadd.f32 %v4185, %v4320
        %v4353 = vadd.f32 %v4186, %v4323
        %v4354 = vadd.f32 %v4187, %v4325
        %v4355 = vadd.f32 %v4188, %v4328
        %v4356 = vld [vmem:[#allocation2 + $0x8] sm:$0xf]
        %v4357 = vld [vmem:[#allocation2 + $0xc] sm:$0xf]
        %v4358 = vld [vmem:[#allocation2 + $0x10] sm:$0xf]
        %v4359 = vld [vmem:[#allocation2 + $0x14] sm:$0xf]
        %v4360 = vld [vmem:[#allocation2 + $0x18] sm:$0xf]
        %v4361 = vld [vmem:[#allocation2 + $0x1c] sm:$0xf]
        %v4362 = vld [vmem:[#allocation2 + $0x20] sm:$0xf]
        %v4363 = vld [vmem:[#allocation2 + $0x24] sm:$0xf]
        %v4364 = vld [vmem:[#allocation2 + $0x28] sm:$0xf]
        %v4365 = vld [vmem:[#allocation2 + $0x2c] sm:$0xf]
        %v4366 = vld [vmem:[#allocation2 + $0x30] sm:$0xf]
        %v4367 = vld [vmem:[#allocation2 + $0x34] sm:$0xf]
        %v4368 = vld [vmem:[#allocation2 + $0x38] sm:$0xf]
        %v4369 = vld [vmem:[#allocation2 + $0x3c] sm:$0xf]
        %v4370 = vld [vmem:[#allocation2 + $0x40] sm:$0xf]
        %v4371 = vld [vmem:[#allocation2 + $0x44] sm:$0xf]
        %v4372 = vld [vmem:[#allocation2 + $0x48] sm:$0xf]
        %v4373 = vld [vmem:[#allocation2 + $0x4c] sm:$0xf]
        %v4374 = vld [vmem:[#allocation2 + $0x50] sm:$0xf]
        %v4375 = vld [vmem:[#allocation2 + $0x54] sm:$0xf]
        %v4376 = vld [vmem:[#allocation2 + $0x58] sm:$0xf]
        %v4377 = vld [vmem:[#allocation2 + $0x5c] sm:$0xf]
        %v4378 = vld [vmem:[#allocation2 + $0x60] sm:$0xf]
        %v4379 = vld [vmem:[#allocation2 + $0x64] sm:$0xf]
        %v4380 = vld [vmem:[#allocation2 + $0x68] sm:$0xf]
        %v4381 = vld [vmem:[#allocation2 + $0x6c] sm:$0x1]
        %s4382 = scalar_lea.vmem %s5, 80
        %v4383 = vld [vmem:[%s4382] sm:$0xf]
        %v4384 = vld [vmem:[%s4382 + $0x4] sm:$0xf]
        %v4385 = vld [vmem:[%s4382 + $0x8] sm:$0xf]
        %v4386 = vld [vmem:[%s4382 + $0xc] sm:$0xf]
        %v4413 = vunpack.c.l.b16 %v4356
        %v4414 = vunpack.c.l.b16 %v4357
        %v4415 = vunpack.c.l.b16 %v4358
        %v4416 = vunpack.c.l.b16 %v4359
        %v4417 = vunpack.c.l.b16 %v4360
        %v4418 = vunpack.c.l.b16 %v4361
        %v4419 = vunpack.c.l.b16 %v4362
        %v4420 = vunpack.c.l.b16 %v4363
        %v4421 = vunpack.c.l.b16 %v4364
        %v4422 = vunpack.c.l.b16 %v4365
        %v4423 = vunpack.c.l.b16 %v4366
        %v4424 = vunpack.c.l.b16 %v4367
        %v4425 = vunpack.c.l.b16 %v4368
        %v4426 = vunpack.c.l.b16 %v4369
        %v4427 = vunpack.c.l.b16 %v4370
        %v4428 = vunpack.c.l.b16 %v4371
        %v4429 = vunpack.c.l.b16 %v4372
        %v4430 = vunpack.c.l.b16 %v4373
        %v4431 = vunpack.c.l.b16 %v4374
        %v4432 = vunpack.c.l.b16 %v4375
        %v4433 = vunpack.c.l.b16 %v4376
        %v4434 = vunpack.c.l.b16 %v4377
        %v4435 = vunpack.c.l.b16 %v4378
        %v4436 = vunpack.c.l.b16 %v4379
        %v4437 = vunpack.c.l.b16 %v4380
        %v4438 = vunpack.c.l.b16 %v4381
        %v4439 = vpack.c.b16 %v4414, %v4413
        %v4440 = vpack.c.b16 %v4416, %v4415
        %v4441 = vpack.c.b16 %v4418, %v4417
        %v4442 = vpack.c.b16 %v4420, %v4419
        %v4443 = vpack.c.b16 %v4422, %v4421
        %v4444 = vpack.c.b16 %v4424, %v4423
        %v4445 = vpack.c.b16 %v4426, %v4425
        %v4446 = vpack.c.b16 %v4428, %v4427
        %v4447 = vpack.c.b16 %v4430, %v4429
        %v4448 = vpack.c.b16 %v4432, %v4431
        %v4449 = vpack.c.b16 %v4434, %v4433
        %v4450 = vpack.c.b16 %v4436, %v4435
        %v4451 = vpack.c.b16 %v4438, %v4437
        %v4453 = vshrl.u32 %v4439, 16
        %v4455 = vshll.u32 %v4439, 16
        %v4457 = vrot.slane %v4455, 1
        %v4458 = vor.u32 %v4453, %v4457
        %v4460 = vshll.u32 %v4440, 16
        %v4462 = vrot.slane %v4460, 1
        %v4463 = vsel %vm1799, %v4458, %v4462
        %v4464 = vshrl.u32 %v4440, 16
        %v4466 = vor.u32 %v4464, %v4462
        %v4468 = vshll.u32 %v4441, 16
        %v4470 = vrot.slane %v4468, 1
        %v4471 = vsel %vm1799, %v4466, %v4470
        %v4472 = vshrl.u32 %v4441, 16
        %v4474 = vor.u32 %v4472, %v4470
        %v4476 = vshll.u32 %v4442, 16
        %v4478 = vrot.slane %v4476, 1
        %v4479 = vsel %vm1799, %v4474, %v4478
        %v4480 = vshrl.u32 %v4442, 16
        %v4482 = vor.u32 %v4480, %v4478
        %v4484 = vshll.u32 %v4443, 16
        %v4486 = vrot.slane %v4484, 1
        %v4487 = vsel %vm1799, %v4482, %v4486
        %v4488 = vshrl.u32 %v4443, 16
        %v4490 = vor.u32 %v4488, %v4486
        %v4492 = vshll.u32 %v4444, 16
        %v4494 = vrot.slane %v4492, 1
        %v4495 = vsel %vm1799, %v4490, %v4494
        %v4496 = vshrl.u32 %v4444, 16
        %v4498 = vor.u32 %v4496, %v4494
        %v4500 = vshll.u32 %v4445, 16
        %v4502 = vrot.slane %v4500, 1
        %v4503 = vsel %vm1799, %v4498, %v4502
        %v4504 = vshrl.u32 %v4445, 16
        %v4506 = vor.u32 %v4504, %v4502
        %v4508 = vshll.u32 %v4446, 16
        %v4510 = vrot.slane %v4508, 1
        %v4511 = vsel %vm1799, %v4506, %v4510
        %v4512 = vshrl.u32 %v4446, 16
        %v4514 = vor.u32 %v4512, %v4510
        %v4516 = vshll.u32 %v4447, 16
        %v4518 = vrot.slane %v4516, 1
        %v4519 = vsel %vm1799, %v4514, %v4518
        %v4520 = vshrl.u32 %v4447, 16
        %v4522 = vor.u32 %v4520, %v4518
        %v4524 = vshll.u32 %v4448, 16
        %v4526 = vrot.slane %v4524, 1
        %v4527 = vsel %vm1799, %v4522, %v4526
        %v4528 = vshrl.u32 %v4448, 16
        %v4530 = vor.u32 %v4528, %v4526
        %v4532 = vshll.u32 %v4449, 16
        %v4534 = vrot.slane %v4532, 1
        %v4535 = vsel %vm1799, %v4530, %v4534
        %v4536 = vshrl.u32 %v4449, 16
        %v4538 = vor.u32 %v4536, %v4534
        %v4540 = vshll.u32 %v4450, 16
        %v4542 = vrot.slane %v4540, 1
        %v4543 = vsel %vm1799, %v4538, %v4542
        %v4544 = vshrl.u32 %v4450, 16
        %v4546 = vor.u32 %v4544, %v4542
        %v4548 = vshll.u32 %v4451, 16
        %v4550 = vrot.slane %v4548, 1
        %v4551 = vsel %vm1799, %v4546, %v4550
        %v4552 = vshrl.u32 %v4451, 16
        %v4554 = vor.u32 %v4552, %v4550
        %v4559 = vunpack.c.l.b16 %v4383
        %v4560 = vunpack.c.l.b16 %v4384
        %v4561 = vunpack.c.l.b16 %v4385
        %v4562 = vunpack.c.l.b16 %v4386
        %v4563 = vpack.c.b16 %v4560, %v4559
        %v4564 = vpack.c.b16 %v4562, %v4561
        %v4568 = vsel %vm598, %v4463, 0
        %v4571 = vsel %vm598, %v4471, 0
        %v4574 = vsel %vm598, %v4479, 0
        %v4577 = vsel %vm598, %v4487, 0
        %v4580 = vsel %vm598, %v4495, 0
        %v4583 = vsel %vm598, %v4503, 0
        %v4586 = vsel %vm598, %v4511, 0
        %v4589 = vsel %vm598, %v4519, 0
        %v4592 = vsel %vm598, %v4527, 0
        %v4595 = vsel %vm598, %v4535, 0
        %v4598 = vsel %vm598, %v4543, 0
        %v4601 = vsel %vm598, %v4551, 0
        %v4604 = vsel %vm598, %v4554, 0
        %4606 = vmatpush.bf16.msra.mxu0 0
        %4607 = vmatpush.bf16.msra.mxu0 0
        %4608 = vmatpush.bf16.msra.mxu0 0
        %4609 = vmatpush.bf16.msra.mxu0 0
        %4610 = vmatpush.bf16.msra.mxu0 0
        %4611 = vmatpush.bf16.msra.mxu0 0
        %4612 = vmatpush.bf16.msra.mxu0 %v4564
        %4613 = vmatpush.bf16.msra.mxu0 %v4563
        %4614 = vmatmul.bf16.gmra.mxu0 %v4568
        %v4615 = vpop.f32.mrf.mxu0
        %v4616 = vadd.f32 0.0, %v4615
        %v4617 = vpop.f32.mrf.mxu0
        %v4618 = vadd.f32 0.0, %v4617
        %4619 = vmatmul.bf16.gmra.mxu0 %v4571
        %v4620 = vpop.f32.mrf.mxu0
        %v4621 = vadd.f32 0.0, %v4620
        %v4622 = vpop.f32.mrf.mxu0
        %v4623 = vadd.f32 0.0, %v4622
        %4624 = vmatmul.bf16.gmra.mxu0 %v4574
        %v4625 = vpop.f32.mrf.mxu0
        %v4626 = vadd.f32 0.0, %v4625
        %v4627 = vpop.f32.mrf.mxu0
        %v4628 = vadd.f32 0.0, %v4627
        %4629 = vmatmul.bf16.gmra.mxu0 %v4577
        %v4630 = vpop.f32.mrf.mxu0
        %v4631 = vadd.f32 0.0, %v4630
        %v4632 = vpop.f32.mrf.mxu0
        %v4633 = vadd.f32 0.0, %v4632
        %4634 = vmatmul.bf16.gmra.mxu0 %v4580
        %v4635 = vpop.f32.mrf.mxu0
        %v4636 = vadd.f32 0.0, %v4635
        %v4637 = vpop.f32.mrf.mxu0
        %v4638 = vadd.f32 0.0, %v4637
        %4639 = vmatmul.bf16.gmra.mxu0 %v4583
        %v4640 = vpop.f32.mrf.mxu0
        %v4641 = vadd.f32 0.0, %v4640
        %v4642 = vpop.f32.mrf.mxu0
        %v4643 = vadd.f32 0.0, %v4642
        %4644 = vmatmul.bf16.gmra.mxu0 %v4586
        %v4645 = vpop.f32.mrf.mxu0
        %v4646 = vadd.f32 0.0, %v4645
        %v4647 = vpop.f32.mrf.mxu0
        %v4648 = vadd.f32 0.0, %v4647
        %4649 = vmatmul.bf16.gmra.mxu0 %v4589
        %v4650 = vpop.f32.mrf.mxu0
        %v4651 = vadd.f32 0.0, %v4650
        %v4652 = vpop.f32.mrf.mxu0
        %v4653 = vadd.f32 0.0, %v4652
        %4654 = vmatmul.bf16.gmra.mxu0 %v4592
        %v4655 = vpop.f32.mrf.mxu0
        %v4656 = vadd.f32 0.0, %v4655
        %v4657 = vpop.f32.mrf.mxu0
        %v4658 = vadd.f32 0.0, %v4657
        %4659 = vmatmul.bf16.gmra.mxu0 %v4595
        %v4660 = vpop.f32.mrf.mxu0
        %v4661 = vadd.f32 0.0, %v4660
        %v4662 = vpop.f32.mrf.mxu0
        %v4663 = vadd.f32 0.0, %v4662
        %4664 = vmatmul.bf16.gmra.mxu0 %v4598
        %v4665 = vpop.f32.mrf.mxu0
        %v4666 = vadd.f32 0.0, %v4665
        %v4667 = vpop.f32.mrf.mxu0
        %v4668 = vadd.f32 0.0, %v4667
        %4669 = vmatmul.bf16.gmra.mxu0 %v4601
        %v4670 = vpop.f32.mrf.mxu0
        %v4671 = vadd.f32 0.0, %v4670
        %v4672 = vpop.f32.mrf.mxu0
        %v4673 = vadd.f32 0.0, %v4672
        %4674 = vmatmul.bf16.gmra.mxu0 %v4604
        %v4675 = vpop.f32.mrf.mxu0
        %v4676 = vadd.f32 0.0, %v4675
        %v4677 = vpop.f32.mrf.mxu0
        %4678 = vdwg.mxu0
        %v4679 = vadd.f32 %v4331, %v4616
        %v4680 = vadd.f32 %v4332, %v4618
        %v4681 = vadd.f32 %v4333, %v4621
        %v4682 = vadd.f32 %v4334, %v4623
        %v4683 = vadd.f32 %v4335, %v4626
        %v4684 = vadd.f32 %v4336, %v4628
        %v4685 = vadd.f32 %v4337, %v4631
        %v4686 = vadd.f32 %v4338, %v4633
        %v4687 = vadd.f32 %v4339, %v4636
        %v4688 = vadd.f32 %v4340, %v4638
        %v4689 = vadd.f32 %v4341, %v4641
        %v4690 = vadd.f32 %v4342, %v4643
        %v4691 = vadd.f32 %v4343, %v4646
        %v4692 = vadd.f32 %v4344, %v4648
        %v4693 = vadd.f32 %v4345, %v4651
        %v4694 = vadd.f32 %v4346, %v4653
        %v4695 = vadd.f32 %v4347, %v4656
        %v4696 = vadd.f32 %v4348, %v4658
        %v4697 = vadd.f32 %v4349, %v4661
        %v4698 = vadd.f32 %v4350, %v4663
        %v4699 = vadd.f32 %v4351, %v4666
        %v4700 = vadd.f32 %v4352, %v4668
        %v4701 = vadd.f32 %v4353, %v4671
        %v4702 = vadd.f32 %v4354, %v4673
        %v4703 = vadd.f32 %v4355, %v4676
        %v4704 = vld [vmem:[#allocation2 + $0xc] sm:$0xf]
        %v4705 = vld [vmem:[#allocation2 + $0x10] sm:$0xf]
        %v4706 = vld [vmem:[#allocation2 + $0x14] sm:$0xf]
        %v4707 = vld [vmem:[#allocation2 + $0x18] sm:$0xf]
        %v4708 = vld [vmem:[#allocation2 + $0x1c] sm:$0xf]
        %v4709 = vld [vmem:[#allocation2 + $0x20] sm:$0xf]
        %v4710 = vld [vmem:[#allocation2 + $0x24] sm:$0xf]
        %v4711 = vld [vmem:[#allocation2 + $0x28] sm:$0xf]
        %v4712 = vld [vmem:[#allocation2 + $0x2c] sm:$0xf]
        %v4713 = vld [vmem:[#allocation2 + $0x30] sm:$0xf]
        %v4714 = vld [vmem:[#allocation2 + $0x34] sm:$0xf]
        %v4715 = vld [vmem:[#allocation2 + $0x38] sm:$0xf]
        %v4716 = vld [vmem:[#allocation2 + $0x3c] sm:$0xf]
        %v4717 = vld [vmem:[#allocation2 + $0x40] sm:$0xf]
        %v4718 = vld [vmem:[#allocation2 + $0x44] sm:$0xf]
        %v4719 = vld [vmem:[#allocation2 + $0x48] sm:$0xf]
        %v4720 = vld [vmem:[#allocation2 + $0x4c] sm:$0xf]
        %v4721 = vld [vmem:[#allocation2 + $0x50] sm:$0xf]
        %v4722 = vld [vmem:[#allocation2 + $0x54] sm:$0xf]
        %v4723 = vld [vmem:[#allocation2 + $0x58] sm:$0xf]
        %v4724 = vld [vmem:[#allocation2 + $0x5c] sm:$0xf]
        %v4725 = vld [vmem:[#allocation2 + $0x60] sm:$0xf]
        %v4726 = vld [vmem:[#allocation2 + $0x64] sm:$0xf]
        %v4727 = vld [vmem:[#allocation2 + $0x68] sm:$0xf]
        %v4728 = vld [vmem:[#allocation2 + $0x6c] sm:$0xf]
        %v4729 = vld [vmem:[#allocation2 + $0x70] sm:$0x1]
        %s4730 = scalar_lea.vmem %s5, 96
        %v4731 = vld [vmem:[%s4730] sm:$0xf]
        %v4732 = vld [vmem:[%s4730 + $0x4] sm:$0xf]
        %v4733 = vld [vmem:[%s4730 + $0x8] sm:$0xf]
        %v4734 = vld [vmem:[%s4730 + $0xc] sm:$0xf]
        %v4761 = vunpack.c.l.b16 %v4704
        %v4762 = vunpack.c.l.b16 %v4705
        %v4763 = vunpack.c.l.b16 %v4706
        %v4764 = vunpack.c.l.b16 %v4707
        %v4765 = vunpack.c.l.b16 %v4708
        %v4766 = vunpack.c.l.b16 %v4709
        %v4767 = vunpack.c.l.b16 %v4710
        %v4768 = vunpack.c.l.b16 %v4711
        %v4769 = vunpack.c.l.b16 %v4712
        %v4770 = vunpack.c.l.b16 %v4713
        %v4771 = vunpack.c.l.b16 %v4714
        %v4772 = vunpack.c.l.b16 %v4715
        %v4773 = vunpack.c.l.b16 %v4716
        %v4774 = vunpack.c.l.b16 %v4717
        %v4775 = vunpack.c.l.b16 %v4718
        %v4776 = vunpack.c.l.b16 %v4719
        %v4777 = vunpack.c.l.b16 %v4720
        %v4778 = vunpack.c.l.b16 %v4721
        %v4779 = vunpack.c.l.b16 %v4722
        %v4780 = vunpack.c.l.b16 %v4723
        %v4781 = vunpack.c.l.b16 %v4724
        %v4782 = vunpack.c.l.b16 %v4725
        %v4783 = vunpack.c.l.b16 %v4726
        %v4784 = vunpack.c.l.b16 %v4727
        %v4785 = vunpack.c.l.b16 %v4728
        %v4786 = vunpack.c.l.b16 %v4729
        %v4787 = vpack.c.b16 %v4762, %v4761
        %v4788 = vpack.c.b16 %v4764, %v4763
        %v4789 = vpack.c.b16 %v4766, %v4765
        %v4790 = vpack.c.b16 %v4768, %v4767
        %v4791 = vpack.c.b16 %v4770, %v4769
        %v4792 = vpack.c.b16 %v4772, %v4771
        %v4793 = vpack.c.b16 %v4774, %v4773
        %v4794 = vpack.c.b16 %v4776, %v4775
        %v4795 = vpack.c.b16 %v4778, %v4777
        %v4796 = vpack.c.b16 %v4780, %v4779
        %v4797 = vpack.c.b16 %v4782, %v4781
        %v4798 = vpack.c.b16 %v4784, %v4783
        %v4799 = vpack.c.b16 %v4786, %v4785
        %v4801 = vshrl.u32 %v4787, 16
        %v4803 = vshll.u32 %v4787, 16
        %v4805 = vrot.slane %v4803, 1
        %v4806 = vor.u32 %v4801, %v4805
        %v4808 = vshll.u32 %v4788, 16
        %v4810 = vrot.slane %v4808, 1
        %v4811 = vsel %vm1799, %v4806, %v4810
        %v4812 = vshrl.u32 %v4788, 16
        %v4814 = vor.u32 %v4812, %v4810
        %v4816 = vshll.u32 %v4789, 16
        %v4818 = vrot.slane %v4816, 1
        %v4819 = vsel %vm1799, %v4814, %v4818
        %v4820 = vshrl.u32 %v4789, 16
        %v4822 = vor.u32 %v4820, %v4818
        %v4824 = vshll.u32 %v4790, 16
        %v4826 = vrot.slane %v4824, 1
        %v4827 = vsel %vm1799, %v4822, %v4826
        %v4828 = vshrl.u32 %v4790, 16
        %v4830 = vor.u32 %v4828, %v4826
        %v4832 = vshll.u32 %v4791, 16
        %v4834 = vrot.slane %v4832, 1
        %v4835 = vsel %vm1799, %v4830, %v4834
        %v4836 = vshrl.u32 %v4791, 16
        %v4838 = vor.u32 %v4836, %v4834
        %v4840 = vshll.u32 %v4792, 16
        %v4842 = vrot.slane %v4840, 1
        %v4843 = vsel %vm1799, %v4838, %v4842
        %v4844 = vshrl.u32 %v4792, 16
        %v4846 = vor.u32 %v4844, %v4842
        %v4848 = vshll.u32 %v4793, 16
        %v4850 = vrot.slane %v4848, 1
        %v4851 = vsel %vm1799, %v4846, %v4850
        %v4852 = vshrl.u32 %v4793, 16
        %v4854 = vor.u32 %v4852, %v4850
        %v4856 = vshll.u32 %v4794, 16
        %v4858 = vrot.slane %v4856, 1
        %v4859 = vsel %vm1799, %v4854, %v4858
        %v4860 = vshrl.u32 %v4794, 16
        %v4862 = vor.u32 %v4860, %v4858
        %v4864 = vshll.u32 %v4795, 16
        %v4866 = vrot.slane %v4864, 1
        %v4867 = vsel %vm1799, %v4862, %v4866
        %v4868 = vshrl.u32 %v4795, 16
        %v4870 = vor.u32 %v4868, %v4866
        %v4872 = vshll.u32 %v4796, 16
        %v4874 = vrot.slane %v4872, 1
        %v4875 = vsel %vm1799, %v4870, %v4874
        %v4876 = vshrl.u32 %v4796, 16
        %v4878 = vor.u32 %v4876, %v4874
        %v4880 = vshll.u32 %v4797, 16
        %v4882 = vrot.slane %v4880, 1
        %v4883 = vsel %vm1799, %v4878, %v4882
        %v4884 = vshrl.u32 %v4797, 16
        %v4886 = vor.u32 %v4884, %v4882
        %v4888 = vshll.u32 %v4798, 16
        %v4890 = vrot.slane %v4888, 1
        %v4891 = vsel %vm1799, %v4886, %v4890
        %v4892 = vshrl.u32 %v4798, 16
        %v4894 = vor.u32 %v4892, %v4890
        %v4896 = vshll.u32 %v4799, 16
        %v4898 = vrot.slane %v4896, 1
        %v4899 = vsel %vm1799, %v4894, %v4898
        %v4900 = vshrl.u32 %v4799, 16
        %v4902 = vor.u32 %v4900, %v4898
        %v4907 = vunpack.c.l.b16 %v4731
        %v4908 = vunpack.c.l.b16 %v4732
        %v4909 = vunpack.c.l.b16 %v4733
        %v4910 = vunpack.c.l.b16 %v4734
        %v4911 = vpack.c.b16 %v4908, %v4907
        %v4912 = vpack.c.b16 %v4910, %v4909
        %v4916 = vsel %vm598, %v4811, 0
        %v4919 = vsel %vm598, %v4819, 0
        %v4922 = vsel %vm598, %v4827, 0
        %v4925 = vsel %vm598, %v4835, 0
        %v4928 = vsel %vm598, %v4843, 0
        %v4931 = vsel %vm598, %v4851, 0
        %v4934 = vsel %vm598, %v4859, 0
        %v4937 = vsel %vm598, %v4867, 0
        %v4940 = vsel %vm598, %v4875, 0
        %v4943 = vsel %vm598, %v4883, 0
        %v4946 = vsel %vm598, %v4891, 0
        %v4949 = vsel %vm598, %v4899, 0
        %v4952 = vsel %vm598, %v4902, 0
        %4954 = vmatpush.bf16.msra.mxu0 0
        %4955 = vmatpush.bf16.msra.mxu0 0
        %4956 = vmatpush.bf16.msra.mxu0 0
        %4957 = vmatpush.bf16.msra.mxu0 0
        %4958 = vmatpush.bf16.msra.mxu0 0
        %4959 = vmatpush.bf16.msra.mxu0 0
        %4960 = vmatpush.bf16.msra.mxu0 %v4912
        %4961 = vmatpush.bf16.msra.mxu0 %v4911
        %4962 = vmatmul.bf16.gmra.mxu0 %v4916
        %v4963 = vpop.f32.mrf.mxu0
        %v4964 = vadd.f32 0.0, %v4963
        %v4965 = vpop.f32.mrf.mxu0
        %v4966 = vadd.f32 0.0, %v4965
        %4967 = vmatmul.bf16.gmra.mxu0 %v4919
        %v4968 = vpop.f32.mrf.mxu0
        %v4969 = vadd.f32 0.0, %v4968
        %v4970 = vpop.f32.mrf.mxu0
        %v4971 = vadd.f32 0.0, %v4970
        %4972 = vmatmul.bf16.gmra.mxu0 %v4922
        %v4973 = vpop.f32.mrf.mxu0
        %v4974 = vadd.f32 0.0, %v4973
        %v4975 = vpop.f32.mrf.mxu0
        %v4976 = vadd.f32 0.0, %v4975
        %4977 = vmatmul.bf16.gmra.mxu0 %v4925
        %v4978 = vpop.f32.mrf.mxu0
        %v4979 = vadd.f32 0.0, %v4978
        %v4980 = vpop.f32.mrf.mxu0
        %v4981 = vadd.f32 0.0, %v4980
        %4982 = vmatmul.bf16.gmra.mxu0 %v4928
        %v4983 = vpop.f32.mrf.mxu0
        %v4984 = vadd.f32 0.0, %v4983
        %v4985 = vpop.f32.mrf.mxu0
        %v4986 = vadd.f32 0.0, %v4985
        %4987 = vmatmul.bf16.gmra.mxu0 %v4931
        %v4988 = vpop.f32.mrf.mxu0
        %v4989 = vadd.f32 0.0, %v4988
        %v4990 = vpop.f32.mrf.mxu0
        %v4991 = vadd.f32 0.0, %v4990
        %4992 = vmatmul.bf16.gmra.mxu0 %v4934
        %v4993 = vpop.f32.mrf.mxu0
        %v4994 = vadd.f32 0.0, %v4993
        %v4995 = vpop.f32.mrf.mxu0
        %v4996 = vadd.f32 0.0, %v4995
        %4997 = vmatmul.bf16.gmra.mxu0 %v4937
        %v4998 = vpop.f32.mrf.mxu0
        %v4999 = vadd.f32 0.0, %v4998
        %v5000 = vpop.f32.mrf.mxu0
        %v5001 = vadd.f32 0.0, %v5000
        %5002 = vmatmul.bf16.gmra.mxu0 %v4940
        %v5003 = vpop.f32.mrf.mxu0
        %v5004 = vadd.f32 0.0, %v5003
        %v5005 = vpop.f32.mrf.mxu0
        %v5006 = vadd.f32 0.0, %v5005
        %5007 = vmatmul.bf16.gmra.mxu0 %v4943
        %v5008 = vpop.f32.mrf.mxu0
        %v5009 = vadd.f32 0.0, %v5008
        %v5010 = vpop.f32.mrf.mxu0
        %v5011 = vadd.f32 0.0, %v5010
        %5012 = vmatmul.bf16.gmra.mxu0 %v4946
        %v5013 = vpop.f32.mrf.mxu0
        %v5014 = vadd.f32 0.0, %v5013
        %v5015 = vpop.f32.mrf.mxu0
        %v5016 = vadd.f32 0.0, %v5015
        %5017 = vmatmul.bf16.gmra.mxu0 %v4949
        %v5018 = vpop.f32.mrf.mxu0
        %v5019 = vadd.f32 0.0, %v5018
        %v5020 = vpop.f32.mrf.mxu0
        %v5021 = vadd.f32 0.0, %v5020
        %5022 = vmatmul.bf16.gmra.mxu0 %v4952
        %v5023 = vpop.f32.mrf.mxu0
        %v5024 = vadd.f32 0.0, %v5023
        %v5025 = vpop.f32.mrf.mxu0
        %5026 = vdwg.mxu0
        %v5027 = vadd.f32 %v4679, %v4964
        %v5028 = vadd.f32 %v4680, %v4966
        %v5029 = vadd.f32 %v4681, %v4969
        %v5030 = vadd.f32 %v4682, %v4971
        %v5031 = vadd.f32 %v4683, %v4974
        %v5032 = vadd.f32 %v4684, %v4976
        %v5033 = vadd.f32 %v4685, %v4979
        %v5034 = vadd.f32 %v4686, %v4981
        %v5035 = vadd.f32 %v4687, %v4984
        %v5036 = vadd.f32 %v4688, %v4986
        %v5037 = vadd.f32 %v4689, %v4989
        %v5038 = vadd.f32 %v4690, %v4991
        %v5039 = vadd.f32 %v4691, %v4994
        %v5040 = vadd.f32 %v4692, %v4996
        %v5041 = vadd.f32 %v4693, %v4999
        %v5042 = vadd.f32 %v4694, %v5001
        %v5043 = vadd.f32 %v4695, %v5004
        %v5044 = vadd.f32 %v4696, %v5006
        %v5045 = vadd.f32 %v4697, %v5009
        %v5046 = vadd.f32 %v4698, %v5011
        %v5047 = vadd.f32 %v4699, %v5014
        %v5048 = vadd.f32 %v4700, %v5016
        %v5049 = vadd.f32 %v4701, %v5019
        %v5050 = vadd.f32 %v4702, %v5021
        %v5051 = vadd.f32 %v4703, %v5024
        %v5052 = vld [vmem:[#allocation2 + $0xc] sm:$0xe]
        %s5053 = scalar_lea.vmem %s5, 112
        %v5054 = vld [vmem:[%s5053] sm:$0xf]
        %v5055 = vld [vmem:[%s5053 + $0x4] sm:$0xf]
        %v5056 = vld [vmem:[%s5053 + $0x8] sm:$0xf]
        %v5057 = vld [vmem:[%s5053 + $0xc] sm:$0xf]
        %v5059 = vunpack.c.l.b16 %v5052
        %v5060 = vpack.c.b16 %v4762, %v5059
        %v5061 = vrot.slane %v5060, 1
        %v5062 = vrot.slane %v4788, 1
        %v5063 = vsel %vm2409, %v5061, %v5062
        %v5064 = vrot.slane %v4789, 1
        %v5065 = vsel %vm2409, %v5062, %v5064
        %v5066 = vrot.slane %v4790, 1
        %v5067 = vsel %vm2409, %v5064, %v5066
        %v5068 = vrot.slane %v4791, 1
        %v5069 = vsel %vm2409, %v5066, %v5068
        %v5070 = vrot.slane %v4792, 1
        %v5071 = vsel %vm2409, %v5068, %v5070
        %v5072 = vrot.slane %v4793, 1
        %v5073 = vsel %vm2409, %v5070, %v5072
        %v5074 = vrot.slane %v4794, 1
        %v5075 = vsel %vm2409, %v5072, %v5074
        %v5076 = vrot.slane %v4795, 1
        %v5077 = vsel %vm2409, %v5074, %v5076
        %v5078 = vrot.slane %v4796, 1
        %v5079 = vsel %vm2409, %v5076, %v5078
        %v5080 = vrot.slane %v4797, 1
        %v5081 = vsel %vm2409, %v5078, %v5080
        %v5082 = vrot.slane %v4798, 1
        %v5083 = vsel %vm2409, %v5080, %v5082
        %v5084 = vrot.slane %v4799, 1
        %v5085 = vsel %vm2409, %v5082, %v5084
        %v5090 = vunpack.c.l.b16 %v5054
        %v5091 = vunpack.c.l.b16 %v5055
        %v5092 = vunpack.c.l.b16 %v5056
        %v5093 = vunpack.c.l.b16 %v5057
        %v5094 = vpack.c.b16 %v5091, %v5090
        %v5095 = vpack.c.b16 %v5093, %v5092
        %v5099 = vsel %vm598, %v5063, 0
        %v5102 = vsel %vm598, %v5065, 0
        %v5105 = vsel %vm598, %v5067, 0
        %v5108 = vsel %vm598, %v5069, 0
        %v5111 = vsel %vm598, %v5071, 0
        %v5114 = vsel %vm598, %v5073, 0
        %v5117 = vsel %vm598, %v5075, 0
        %v5120 = vsel %vm598, %v5077, 0
        %v5123 = vsel %vm598, %v5079, 0
        %v5126 = vsel %vm598, %v5081, 0
        %v5129 = vsel %vm598, %v5083, 0
        %v5132 = vsel %vm598, %v5085, 0
        %v5135 = vsel %vm598, %v5084, 0
        %5137 = vmatpush.bf16.msra.mxu0 0
        %5138 = vmatpush.bf16.msra.mxu0 0
        %5139 = vmatpush.bf16.msra.mxu0 0
        %5140 = vmatpush.bf16.msra.mxu0 0
        %5141 = vmatpush.bf16.msra.mxu0 0
        %5142 = vmatpush.bf16.msra.mxu0 0
        %5143 = vmatpush.bf16.msra.mxu0 %v5095
        %5144 = vmatpush.bf16.msra.mxu0 %v5094
        %5145 = vmatmul.bf16.gmra.mxu0 %v5099
        %v5146 = vpop.f32.mrf.mxu0
        %v5147 = vadd.f32 0.0, %v5146
        %v5148 = vpop.f32.mrf.mxu0
        %v5149 = vadd.f32 0.0, %v5148
        %5150 = vmatmul.bf16.gmra.mxu0 %v5102
        %v5151 = vpop.f32.mrf.mxu0
        %v5152 = vadd.f32 0.0, %v5151
        %v5153 = vpop.f32.mrf.mxu0
        %v5154 = vadd.f32 0.0, %v5153
        %5155 = vmatmul.bf16.gmra.mxu0 %v5105
        %v5156 = vpop.f32.mrf.mxu0
        %v5157 = vadd.f32 0.0, %v5156
        %v5158 = vpop.f32.mrf.mxu0
        %v5159 = vadd.f32 0.0, %v5158
        %5160 = vmatmul.bf16.gmra.mxu0 %v5108
        %v5161 = vpop.f32.mrf.mxu0
        %v5162 = vadd.f32 0.0, %v5161
        %v5163 = vpop.f32.mrf.mxu0
        %v5164 = vadd.f32 0.0, %v5163
        %5165 = vmatmul.bf16.gmra.mxu0 %v5111
        %v5166 = vpop.f32.mrf.mxu0
        %v5167 = vadd.f32 0.0, %v5166
        %v5168 = vpop.f32.mrf.mxu0
        %v5169 = vadd.f32 0.0, %v5168
        %5170 = vmatmul.bf16.gmra.mxu0 %v5114
        %v5171 = vpop.f32.mrf.mxu0
        %v5172 = vadd.f32 0.0, %v5171
        %v5173 = vpop.f32.mrf.mxu0
        %v5174 = vadd.f32 0.0, %v5173
        %5175 = vmatmul.bf16.gmra.mxu0 %v5117
        %v5176 = vpop.f32.mrf.mxu0
        %v5177 = vadd.f32 0.0, %v5176
        %v5178 = vpop.f32.mrf.mxu0
        %v5179 = vadd.f32 0.0, %v5178
        %5180 = vmatmul.bf16.gmra.mxu0 %v5120
        %v5181 = vpop.f32.mrf.mxu0
        %v5182 = vadd.f32 0.0, %v5181
        %v5183 = vpop.f32.mrf.mxu0
        %v5184 = vadd.f32 0.0, %v5183
        %5185 = vmatmul.bf16.gmra.mxu0 %v5123
        %v5186 = vpop.f32.mrf.mxu0
        %v5187 = vadd.f32 0.0, %v5186
        %v5188 = vpop.f32.mrf.mxu0
        %v5189 = vadd.f32 0.0, %v5188
        %5190 = vmatmul.bf16.gmra.mxu0 %v5126
        %v5191 = vpop.f32.mrf.mxu0
        %v5192 = vadd.f32 0.0, %v5191
        %v5193 = vpop.f32.mrf.mxu0
        %v5194 = vadd.f32 0.0, %v5193
        %5195 = vmatmul.bf16.gmra.mxu0 %v5129
        %v5196 = vpop.f32.mrf.mxu0
        %v5197 = vadd.f32 0.0, %v5196
        %v5198 = vpop.f32.mrf.mxu0
        %v5199 = vadd.f32 0.0, %v5198
        %5200 = vmatmul.bf16.gmra.mxu0 %v5132
        %v5201 = vpop.f32.mrf.mxu0
        %v5202 = vadd.f32 0.0, %v5201
        %v5203 = vpop.f32.mrf.mxu0
        %v5204 = vadd.f32 0.0, %v5203
        %5205 = vmatmul.bf16.gmra.mxu0 %v5135
        %v5206 = vpop.f32.mrf.mxu0
        %v5207 = vadd.f32 0.0, %v5206
        %v5208 = vpop.f32.mrf.mxu0
        %5209 = vdwg.mxu0
        %v5210 = vadd.f32 %v5027, %v5147
        %v5211 = vadd.f32 %v5028, %v5149
        %v5212 = vadd.f32 %v5029, %v5152
        %v5213 = vadd.f32 %v5030, %v5154
        %v5214 = vadd.f32 %v5031, %v5157
        %v5215 = vadd.f32 %v5032, %v5159
        %v5216 = vadd.f32 %v5033, %v5162
        %v5217 = vadd.f32 %v5034, %v5164
        %v5218 = vadd.f32 %v5035, %v5167
        %v5219 = vadd.f32 %v5036, %v5169
        %v5220 = vadd.f32 %v5037, %v5172
        %v5221 = vadd.f32 %v5038, %v5174
        %v5222 = vadd.f32 %v5039, %v5177
        %v5223 = vadd.f32 %v5040, %v5179
        %v5224 = vadd.f32 %v5041, %v5182
        %v5225 = vadd.f32 %v5042, %v5184
        %v5226 = vadd.f32 %v5043, %v5187
        %v5227 = vadd.f32 %v5044, %v5189
        %v5228 = vadd.f32 %v5045, %v5192
        %v5229 = vadd.f32 %v5046, %v5194
        %v5230 = vadd.f32 %v5047, %v5197
        %v5231 = vadd.f32 %v5048, %v5199
        %v5232 = vadd.f32 %v5049, %v5202
        %v5233 = vadd.f32 %v5050, %v5204
        %v5234 = vadd.f32 %v5051, %v5207
        %v5235 = vld [vmem:[#allocation2 + $0x70] sm:$0x3]
        %s5236 = scalar_lea.vmem %s5, 128
        %v5237 = vld [vmem:[%s5236] sm:$0xf]
        %v5238 = vld [vmem:[%s5236 + $0x4] sm:$0xf]
        %v5239 = vld [vmem:[%s5236 + $0x8] sm:$0xf]
        %v5240 = vld [vmem:[%s5236 + $0xc] sm:$0xf]
        %v5242 = vunpack.c.l.b16 %v5235
        %v5243 = vpack.c.b16 %v5242, %v4785
        %v5245 = vshrl.u32 %v5060, 16
        %v5247 = vrot.slane %v5245, 1
        %v5248 = vshll.u32 %v5060, 16
        %v5250 = vrot.slane %v5248, 2
        %v5251 = vor.u32 %v5247, %v5250
        %v5252 = vrot.slane %v4812, 1
        %v5253 = vrot.slane %v4808, 2
        %v5254 = vor.u32 %v5252, %v5253
        %v5255 = vsel %vm2593, %v5251, %v5254
        %v5256 = vrot.slane %v4820, 1
        %v5257 = vrot.slane %v4816, 2
        %v5258 = vor.u32 %v5256, %v5257
        %v5259 = vsel %vm2593, %v5254, %v5258
        %v5260 = vrot.slane %v4828, 1
        %v5261 = vrot.slane %v4824, 2
        %v5262 = vor.u32 %v5260, %v5261
        %v5263 = vsel %vm2593, %v5258, %v5262
        %v5264 = vrot.slane %v4836, 1
        %v5265 = vrot.slane %v4832, 2
        %v5266 = vor.u32 %v5264, %v5265
        %v5267 = vsel %vm2593, %v5262, %v5266
        %v5268 = vrot.slane %v4844, 1
        %v5269 = vrot.slane %v4840, 2
        %v5270 = vor.u32 %v5268, %v5269
        %v5271 = vsel %vm2593, %v5266, %v5270
        %v5272 = vrot.slane %v4852, 1
        %v5273 = vrot.slane %v4848, 2
        %v5274 = vor.u32 %v5272, %v5273
        %v5275 = vsel %vm2593, %v5270, %v5274
        %v5276 = vrot.slane %v4860, 1
        %v5277 = vrot.slane %v4856, 2
        %v5278 = vor.u32 %v5276, %v5277
        %v5279 = vsel %vm2593, %v5274, %v5278
        %v5280 = vrot.slane %v4868, 1
        %v5281 = vrot.slane %v4864, 2
        %v5282 = vor.u32 %v5280, %v5281
        %v5283 = vsel %vm2593, %v5278, %v5282
        %v5284 = vrot.slane %v4876, 1
        %v5285 = vrot.slane %v4872, 2
        %v5286 = vor.u32 %v5284, %v5285
        %v5287 = vsel %vm2593, %v5282, %v5286
        %v5288 = vrot.slane %v4884, 1
        %v5289 = vrot.slane %v4880, 2
        %v5290 = vor.u32 %v5288, %v5289
        %v5291 = vsel %vm2593, %v5286, %v5290
        %v5292 = vrot.slane %v4892, 1
        %v5293 = vrot.slane %v4888, 2
        %v5294 = vor.u32 %v5292, %v5293
        %v5295 = vsel %vm2593, %v5290, %v5294
        %v5297 = vshrl.u32 %v5243, 16
        %v5299 = vrot.slane %v5297, 1
        %v5300 = vshll.u32 %v5243, 16
        %v5302 = vrot.slane %v5300, 2
        %v5303 = vor.u32 %v5299, %v5302
        %v5304 = vsel %vm2593, %v5294, %v5303
        %v5309 = vunpack.c.l.b16 %v5237
        %v5310 = vunpack.c.l.b16 %v5238
        %v5311 = vunpack.c.l.b16 %v5239
        %v5312 = vunpack.c.l.b16 %v5240
        %v5313 = vpack.c.b16 %v5310, %v5309
        %v5314 = vpack.c.b16 %v5312, %v5311
        %v5318 = vsel %vm598, %v5255, 0
        %v5321 = vsel %vm598, %v5259, 0
        %v5324 = vsel %vm598, %v5263, 0
        %v5327 = vsel %vm598, %v5267, 0
        %v5330 = vsel %vm598, %v5271, 0
        %v5333 = vsel %vm598, %v5275, 0
        %v5336 = vsel %vm598, %v5279, 0
        %v5339 = vsel %vm598, %v5283, 0
        %v5342 = vsel %vm598, %v5287, 0
        %v5345 = vsel %vm598, %v5291, 0
        %v5348 = vsel %vm598, %v5295, 0
        %v5351 = vsel %vm598, %v5304, 0
        %v5354 = vsel %vm598, %v5303, 0
        %5356 = vmatpush.bf16.msra.mxu0 0
        %5357 = vmatpush.bf16.msra.mxu0 0
        %5358 = vmatpush.bf16.msra.mxu0 0
        %5359 = vmatpush.bf16.msra.mxu0 0
        %5360 = vmatpush.bf16.msra.mxu0 0
        %5361 = vmatpush.bf16.msra.mxu0 0
        %5362 = vmatpush.bf16.msra.mxu0 %v5314
        %5363 = vmatpush.bf16.msra.mxu0 %v5313
        %5364 = vmatmul.bf16.gmra.mxu0 %v5318
        %v5365 = vpop.f32.mrf.mxu0
        %v5366 = vadd.f32 0.0, %v5365
        %v5367 = vpop.f32.mrf.mxu0
        %v5368 = vadd.f32 0.0, %v5367
        %5369 = vmatmul.bf16.gmra.mxu0 %v5321
        %v5370 = vpop.f32.mrf.mxu0
        %v5371 = vadd.f32 0.0, %v5370
        %v5372 = vpop.f32.mrf.mxu0
        %v5373 = vadd.f32 0.0, %v5372
        %5374 = vmatmul.bf16.gmra.mxu0 %v5324
        %v5375 = vpop.f32.mrf.mxu0
        %v5376 = vadd.f32 0.0, %v5375
        %v5377 = vpop.f32.mrf.mxu0
        %v5378 = vadd.f32 0.0, %v5377
        %5379 = vmatmul.bf16.gmra.mxu0 %v5327
        %v5380 = vpop.f32.mrf.mxu0
        %v5381 = vadd.f32 0.0, %v5380
        %v5382 = vpop.f32.mrf.mxu0
        %v5383 = vadd.f32 0.0, %v5382
        %5384 = vmatmul.bf16.gmra.mxu0 %v5330
        %v5385 = vpop.f32.mrf.mxu0
        %v5386 = vadd.f32 0.0, %v5385
        %v5387 = vpop.f32.mrf.mxu0
        %v5388 = vadd.f32 0.0, %v5387
        %5389 = vmatmul.bf16.gmra.mxu0 %v5333
        %v5390 = vpop.f32.mrf.mxu0
        %v5391 = vadd.f32 0.0, %v5390
        %v5392 = vpop.f32.mrf.mxu0
        %v5393 = vadd.f32 0.0, %v5392
        %5394 = vmatmul.bf16.gmra.mxu0 %v5336
        %v5395 = vpop.f32.mrf.mxu0
        %v5396 = vadd.f32 0.0, %v5395
        %v5397 = vpop.f32.mrf.mxu0
        %v5398 = vadd.f32 0.0, %v5397
        %5399 = vmatmul.bf16.gmra.mxu0 %v5339
        %v5400 = vpop.f32.mrf.mxu0
        %v5401 = vadd.f32 0.0, %v5400
        %v5402 = vpop.f32.mrf.mxu0
        %v5403 = vadd.f32 0.0, %v5402
        %5404 = vmatmul.bf16.gmra.mxu0 %v5342
        %v5405 = vpop.f32.mrf.mxu0
        %v5406 = vadd.f32 0.0, %v5405
        %v5407 = vpop.f32.mrf.mxu0
        %v5408 = vadd.f32 0.0, %v5407
        %5409 = vmatmul.bf16.gmra.mxu0 %v5345
        %v5410 = vpop.f32.mrf.mxu0
        %v5411 = vadd.f32 0.0, %v5410
        %v5412 = vpop.f32.mrf.mxu0
        %v5413 = vadd.f32 0.0, %v5412
        %5414 = vmatmul.bf16.gmra.mxu0 %v5348
        %v5415 = vpop.f32.mrf.mxu0
        %v5416 = vadd.f32 0.0, %v5415
        %v5417 = vpop.f32.mrf.mxu0
        %v5418 = vadd.f32 0.0, %v5417
        %5419 = vmatmul.bf16.gmra.mxu0 %v5351
        %v5420 = vpop.f32.mrf.mxu0
        %v5421 = vadd.f32 0.0, %v5420
        %v5422 = vpop.f32.mrf.mxu0
        %v5423 = vadd.f32 0.0, %v5422
        %5424 = vmatmul.bf16.gmra.mxu0 %v5354
        %v5425 = vpop.f32.mrf.mxu0
        %v5426 = vadd.f32 0.0, %v5425
        %v5427 = vpop.f32.mrf.mxu0
        %5428 = vdwg.mxu0
        %v5429 = vadd.f32 %v5210, %v5366
        %v5430 = vadd.f32 %v5211, %v5368
        %v5431 = vadd.f32 %v5212, %v5371
        %v5432 = vadd.f32 %v5213, %v5373
        %v5433 = vadd.f32 %v5214, %v5376
        %v5434 = vadd.f32 %v5215, %v5378
        %v5435 = vadd.f32 %v5216, %v5381
        %v5436 = vadd.f32 %v5217, %v5383
        %v5437 = vadd.f32 %v5218, %v5386
        %v5438 = vadd.f32 %v5219, %v5388
        %v5439 = vadd.f32 %v5220, %v5391
        %v5440 = vadd.f32 %v5221, %v5393
        %v5441 = vadd.f32 %v5222, %v5396
        %v5442 = vadd.f32 %v5223, %v5398
        %v5443 = vadd.f32 %v5224, %v5401
        %v5444 = vadd.f32 %v5225, %v5403
        %v5445 = vadd.f32 %v5226, %v5406
        %v5446 = vadd.f32 %v5227, %v5408
        %v5447 = vadd.f32 %v5228, %v5411
        %v5448 = vadd.f32 %v5229, %v5413
        %v5449 = vadd.f32 %v5230, %v5416
        %v5450 = vadd.f32 %v5231, %v5418
        %v5451 = vadd.f32 %v5232, %v5421
        %v5452 = vadd.f32 %v5233, %v5423
        %v5453 = vadd.f32 %v5234, %v5426
        %v5454 = vld [vmem:[%s6] sm:$0x1]
        %v5456 = vperm.slane %v5454, 0
        %v5458 = vmul.f32 %v5429, %v5456
        %v5459 = vmul.f32 %v5430, %v5456
        %v5460 = vmul.f32 %v5431, %v5456
        %v5461 = vmul.f32 %v5432, %v5456
        %v5462 = vmul.f32 %v5433, %v5456
        %v5463 = vmul.f32 %v5434, %v5456
        %v5464 = vmul.f32 %v5435, %v5456
        %v5465 = vmul.f32 %v5436, %v5456
        %v5466 = vmul.f32 %v5437, %v5456
        %v5467 = vmul.f32 %v5438, %v5456
        %v5468 = vmul.f32 %v5439, %v5456
        %v5469 = vmul.f32 %v5440, %v5456
        %v5470 = vmul.f32 %v5441, %v5456
        %v5471 = vmul.f32 %v5442, %v5456
        %v5472 = vmul.f32 %v5443, %v5456
        %v5473 = vmul.f32 %v5444, %v5456
        %v5474 = vmul.f32 %v5445, %v5456
        %v5475 = vmul.f32 %v5446, %v5456
        %v5476 = vmul.f32 %v5447, %v5456
        %v5477 = vmul.f32 %v5448, %v5456
        %v5478 = vmul.f32 %v5449, %v5456
        %v5479 = vmul.f32 %v5450, %v5456
        %v5480 = vmul.f32 %v5451, %v5456
        %v5481 = vmul.f32 %v5452, %v5456
        %v5482 = vmul.f32 %v5453, %v5456
        %v5483 = vld [vmem:[%s7] sm:$0x1]
        %v5485 = vperm.slane %v5483, 0
        %v5487 = vadd.f32 %v5458, %v5485
        %v5488 = vadd.f32 %v5459, %v5485
        %v5489 = vadd.f32 %v5460, %v5485
        %v5490 = vadd.f32 %v5461, %v5485
        %v5491 = vadd.f32 %v5462, %v5485
        %v5492 = vadd.f32 %v5463, %v5485
        %v5493 = vadd.f32 %v5464, %v5485
        %v5494 = vadd.f32 %v5465, %v5485
        %v5495 = vadd.f32 %v5466, %v5485
        %v5496 = vadd.f32 %v5467, %v5485
        %v5497 = vadd.f32 %v5468, %v5485
        %v5498 = vadd.f32 %v5469, %v5485
        %v5499 = vadd.f32 %v5470, %v5485
        %v5500 = vadd.f32 %v5471, %v5485
        %v5501 = vadd.f32 %v5472, %v5485
        %v5502 = vadd.f32 %v5473, %v5485
        %v5503 = vadd.f32 %v5474, %v5485
        %v5504 = vadd.f32 %v5475, %v5485
        %v5505 = vadd.f32 %v5476, %v5485
        %v5506 = vadd.f32 %v5477, %v5485
        %v5507 = vadd.f32 %v5478, %v5485
        %v5508 = vadd.f32 %v5479, %v5485
        %v5509 = vadd.f32 %v5480, %v5485
        %v5510 = vadd.f32 %v5481, %v5485
        %v5511 = vadd.f32 %v5482, %v5485
        %v5512 = vmax.f32 %v5487, 0.0
        %v5513 = vmax.f32 %v5488, 0.0
        %v5514 = vmax.f32 %v5489, 0.0
        %v5515 = vmax.f32 %v5490, 0.0
        %v5516 = vmax.f32 %v5491, 0.0
        %v5517 = vmax.f32 %v5492, 0.0
        %v5518 = vmax.f32 %v5493, 0.0
        %v5519 = vmax.f32 %v5494, 0.0
        %v5520 = vmax.f32 %v5495, 0.0
        %v5521 = vmax.f32 %v5496, 0.0
        %v5522 = vmax.f32 %v5497, 0.0
        %v5523 = vmax.f32 %v5498, 0.0
        %v5524 = vmax.f32 %v5499, 0.0
        %v5525 = vmax.f32 %v5500, 0.0
        %v5526 = vmax.f32 %v5501, 0.0
        %v5527 = vmax.f32 %v5502, 0.0
        %v5528 = vmax.f32 %v5503, 0.0
        %v5529 = vmax.f32 %v5504, 0.0
        %v5530 = vmax.f32 %v5505, 0.0
        %v5531 = vmax.f32 %v5506, 0.0
        %v5532 = vmax.f32 %v5507, 0.0
        %v5533 = vmax.f32 %v5508, 0.0
        %v5534 = vmax.f32 %v5509, 0.0
        %v5535 = vmax.f32 %v5510, 0.0
        %v5536 = vmax.f32 %v5511, 0.0
        %vm5537 = vcmask 23552
        %5538 = vst.msk [vmem:[%s372] sm:$0xff] %vm5537, %v5512
        %5539 = vst.msk [vmem:[%s372 + $0x8] sm:$0xff] %vm5537, %v5513
        %5540 = vst.msk [vmem:[%s372 + $0x10] sm:$0xff] %vm5537, %v5514
        %5541 = vst.msk [vmem:[%s372 + $0x18] sm:$0xff] %vm5537, %v5515
        %5542 = vst.msk [vmem:[%s372 + $0x20] sm:$0xff] %vm5537, %v5516
        %5543 = vst.msk [vmem:[%s372 + $0x28] sm:$0xff] %vm5537, %v5517
        %5544 = vst.msk [vmem:[%s372 + $0x30] sm:$0xff] %vm5537, %v5518
        %5545 = vst.msk [vmem:[%s372 + $0x38] sm:$0xff] %vm5537, %v5519
        %5546 = vst.msk [vmem:[%s372 + $0x40] sm:$0xff] %vm5537, %v5520
        %5547 = vst.msk [vmem:[%s372 + $0x48] sm:$0xff] %vm5537, %v5521
        %5548 = vst.msk [vmem:[%s372 + $0x50] sm:$0xff] %vm5537, %v5522
        %5549 = vst.msk [vmem:[%s372 + $0x58] sm:$0xff] %vm5537, %v5523
        %5550 = vst.msk [vmem:[%s372 + $0x60] sm:$0xff] %vm5537, %v5524
        %5551 = vst.msk [vmem:[%s372 + $0x68] sm:$0xff] %vm5537, %v5525
        %5552 = vst.msk [vmem:[%s372 + $0x70] sm:$0xff] %vm5537, %v5526
        %5553 = vst.msk [vmem:[%s372 + $0x78] sm:$0xff] %vm5537, %v5527
        %5554 = vst.msk [vmem:[%s372 + $0x80] sm:$0xff] %vm5537, %v5528
        %5555 = vst.msk [vmem:[%s372 + $0x88] sm:$0xff] %vm5537, %v5529
        %5556 = vst.msk [vmem:[%s372 + $0x90] sm:$0xff] %vm5537, %v5530
        %5557 = vst.msk [vmem:[%s372 + $0x98] sm:$0xff] %vm5537, %v5531
        %5558 = vst.msk [vmem:[%s372 + $0xa0] sm:$0xff] %vm5537, %v5532
        %5559 = vst.msk [vmem:[%s372 + $0xa8] sm:$0xff] %vm5537, %v5533
        %5560 = vst.msk [vmem:[%s372 + $0xb0] sm:$0xff] %vm5537, %v5534
        %5561 = vst.msk [vmem:[%s372 + $0xb8] sm:$0xff] %vm5537, %v5535
        %5562 = vst.msk [vmem:[%s372 + $0xc0] sm:$0xff] %vm5537, %v5536
      $region64: #{alphago_forward.2} parent=51 // pred_fallthru
        _
      %s5563 = smul.u32 25, %s23
      %p5564 = scmp.lt.s32.totalorder %s5563, 24
      %s5565 = scalar_select %p5564, %s5563, 24
      %s5566 = smul.addr %s5565, 8
      %s5567 = scalar_lea.vmem %s8, %s5566
      // Predicated region
      $region65: #{alphago_forward.2} parent=51 // pred_check
        %p5568 = pneg %p237
      $region66: #{alphago_forward.2} parent=51 // pred_check_branch
        %5570 = sbr.rel (%p5568) target = $region68
      $region67: #{alphago_forward.2} parent=51 // pred_region
        %s5571 = smul.u32 25, %s23
      $region68: #{alphago_forward.2} parent=51 // pred_fallthru
        _
      // Predicated region
      $region69: #{alphago_forward.2} parent=51 // pred_check
        %p5572 = pneg %p237
      $region70: #{alphago_forward.2} parent=51 // pred_check_branch
        %5574 = sbr.rel (%p5572) target = $region72
      $region71: #{alphago_forward.2} parent=51 // pred_region
        %s5575 = smul.u32 25, %s23
        %p5576 = scmp.lt.s32.totalorder %s5575, 24
        %s5577 = scalar_select %p5576, %s5575, 24
        %s5578 = smul.addr %s5577, 8
        %s5579 = scalar_lea.vmem %s8, %s5578
      $region72: #{alphago_forward.2} parent=51 // pred_fallthru
        _
    $region52: #{alphago_forward.2} parent=5 // pred_fallthru
      _
    %p5580 = scmp.le.s32.totalorder 2, %s14
    // Predicated region
    $region73: #{alphago_forward.2} parent=5 // pred_check
      %p5581 = pneg %p5580
    $region74: #{alphago_forward.2} parent=5 // pred_check_branch
      %5583 = sbr.rel (%p5581) target = $region76
    $region75: #{alphago_forward.2} parent=5 // pred_region
      %s5584 = ssub.s32 %s14, 2
    $region76: #{alphago_forward.2} parent=5 // pred_fallthru
      _
  $region6: #{alphago_forward.2} parent=0 // loop_footer
    %s18 = sadd.s32 1, %s14
  $region7: #{alphago_forward.2} parent=0 // loop_footer_branch
    %13 = sbr.rel target = $region3
  $region8: #{alphago_forward.2} parent=0 // loop_exit
    _

</llo_original>
